<compile_context>
chip_gen: v5e
topology: v5e:2x2
jax: 0.10.0
libtpu: 0.0.40
codegen_flags: <defaults>
</compile_context>

<pallas_src>
import functools

import jax
import jax.numpy as jnp
from jax.experimental import pallas as pl
from jax.experimental.pallas import tpu as pltpu

VMEM = pl.BlockSpec(memory_space=pltpu.MemorySpace.VMEM)
SMEM = pl.BlockSpec(memory_space=pltpu.MemorySpace.SMEM)

# ----------------------------------------------------------------------------
# Model configuration (etypes mirror the torch module's (stype, etype, dtype))
# ----------------------------------------------------------------------------
NTYPES = ("author", "paper", "venue")
ETYPES = [
    ("author", "writes", "paper"),
    ("paper", "written_by", "author"),
    ("venue", "publishes", "paper"),
    ("paper", "published_in", "venue"),
]
REV_ETYPE = {"writes": "written_by", "written_by": "writes",
             "publishes": "published_in", "published_in": "publishes"}


def _round_up(x, m):
    return (x + m - 1) // m * m


# ----------------------------------------------------------------------------
# Kernel 1: batched per-ntype input projection  y = x @ W^T + b (pad rows zeroed)
# ----------------------------------------------------------------------------
def _fc_in_kernel(nrows_ref, x_ref, w_ref, b_ref, o_ref):
    t = pl.program_id(0)
    n = nrows_ref[t]
    y = jnp.dot(x_ref[0], w_ref[0], preferred_element_type=jnp.float32) + b_ref[0]
    ridx = jax.lax.broadcasted_iota(jnp.int32, (y.shape[0], 1), 0)
    o_ref[0] = jnp.where(ridx < n, y, 0.0)          # keep the zero-pad-row invariant


def pallas_fc_in(nrows, x, w, b):
    t, r, p = x.shape
    idx = lambda i, nr: (i, 0, 0)
    return pl.pallas_call(
        _fc_in_kernel,
        out_shape=jax.ShapeDtypeStruct((t, r, p), jnp.float32),
        grid_spec=pltpu.PrefetchScalarGridSpec(
            num_scalar_prefetch=1, grid=(t,),
            in_specs=[pl.BlockSpec((1, r, p), idx),
                      pl.BlockSpec((1, p, p), idx),
                      pl.BlockSpec((1, 1, p), idx)],
            out_specs=pl.BlockSpec((1, r, p), idx)),
        compiler_params=pltpu.CompilerParams(dimension_semantics=("parallel",)),
    )(nrows, x, w, b)


# ----------------------------------------------------------------------------
# Kernel 2: fused per-layer / per-etype BiGraphContrastLayer
#   - builds self-looped pos/neg adjacency + right normalization in-kernel
#   - GraphConv reassociated as A @ (x @ W) with x@W shared by pos/neg branches
#   - PReLU activation, then contrastive loss (single exp pass over cosine matrix)
# Node layout per relation: rows [0, NMAX)  = source nodes (zero-padded),
#                           rows [NMAX, 2*NMAX) = destination / predict nodes.
# ----------------------------------------------------------------------------
def _layer_kernel(nd_ref, a_ref, drop_ref, feat_ref, w_ref, b_ref, alpha_ref,
                  h_ref, loss_ref):
    e = pl.program_id(0)
    nd = nd_ref[e]                               # number of real dst (predict) nodes
    nh = a_ref.shape[1]
    p = feat_ref.shape[-1]
    off = nh // 2                                # dst rows start here

    a = a_ref[0]                                 # (NH, NH) raw bipartite adjacency
    row = jax.lax.broadcasted_iota(jnp.int32, (nh, nh), 0)
    col = jax.lax.broadcasted_iota(jnp.int32, (nh, nh), 1)
    eye = (row == col).astype(jnp.float32)
    a_pos = a + eye                              # dgl.add_self_loop
    a_neg = a * drop_ref[0] + eye                # drop-edge graph + self loops

    # shared x@W  (bf16 MXU operands, f32 accumulate)
    xw = jnp.dot(feat_ref[0].astype(jnp.bfloat16), w_ref[0].astype(jnp.bfloat16),
                 preferred_element_type=jnp.float32)
    xw16 = xw.astype(jnp.bfloat16)
    inv_pos = 1.0 / jnp.sum(a_pos, axis=1, keepdims=True)   # GraphConv norm='right'
    inv_neg = 1.0 / jnp.sum(a_neg, axis=1, keepdims=True)
    y_pos = jnp.dot(a_pos.astype(jnp.bfloat16), xw16,
                    preferred_element_type=jnp.float32) * inv_pos + b_ref[0]
    y_neg = jnp.dot(a_neg.astype(jnp.bfloat16), xw16,
                    preferred_element_type=jnp.float32) * inv_neg + b_ref[0]
    alpha = alpha_ref[0]                         # (1, P) PReLU slope broadcast over lanes
    h_pos = jnp.where(y_pos > 0, y_pos, alpha * y_pos)
    h_neg = jnp.where(y_neg > 0, y_neg, alpha * y_neg)

    # ----- contrastive loss over the predict-type (dst) nodes -----
    eps = 1e-12
    pn = h_pos * jax.lax.rsqrt(jnp.sum(h_pos * h_pos, axis=-1, keepdims=True) + eps)
    qn = h_neg * jax.lax.rsqrt(jnp.sum(h_neg * h_neg, axis=-1, keepdims=True) + eps)
    # C[i, j] = cos(h_pos[i], h_neg[j])
    c = jax.lax.dot_general(pn, qn, (((1,), (1,)), ((), ())),
                            preferred_element_type=jnp.float32)
    ridx = jax.lax.broadcasted_iota(jnp.int32, (nh, 1), 0)
    mask = jnp.logical_and(ridx >= off, ridx < off + nd).astype(jnp.float32)  # dst rows

    pos_cos = jnp.sum(pn * qn, axis=-1, keepdims=True)       # (NH, 1)
    sum_pos_exp = jnp.sum(mask * jnp.exp(pos_cos))
    sum_pos = jnp.sum(mask * pos_cos)
    exp_c = jnp.exp(c)                                        # single exp pass
    # pos-graph edges (u->v): Sum_v mask[v] * Sum_u A_pos[v,u]*expC[u,v]
    #                        = Sum(mask * eye * (A_pos @ expC))   (no transpose needed)
    s1 = jnp.sum(mask * eye * jnp.dot(a_pos, exp_c, preferred_element_type=jnp.float32))
    # neg-graph edges (u->v): expC[v,u] weighted by mask[v]*A_neg[v,u]
    s2 = jnp.sum(mask * a_neg * exp_c)
    loss = jnp.log(sum_pos_exp + s1 + s2 - sum_pos)

    h_ref[0] = h_pos * mask                      # keep only real dst rows (zero-pad rest)
    loss_ref[0] = jnp.zeros((loss_ref.shape[1], p), jnp.float32) + loss


def pallas_layer(nd, a, drop, feat, w, b, alpha):
    e, nh, _ = a.shape
    p = feat.shape[-1]
    idx = lambda i, s: (i, 0, 0)
    return pl.pallas_call(
        _layer_kernel,
        out_shape=(jax.ShapeDtypeStruct((e, nh, p), jnp.float32),
                   jax.ShapeDtypeStruct((e, 8, p), jnp.float32)),
        grid_spec=pltpu.PrefetchScalarGridSpec(
            num_scalar_prefetch=1, grid=(e,),
            in_specs=[pl.BlockSpec((1, nh, nh), idx),     # A
                      pl.BlockSpec((1, nh, nh), idx),     # drop mask
                      pl.BlockSpec((1, nh, p), idx),      # homo features (src ++ dst)
                      pl.BlockSpec((1, p, p), idx),       # W^T (padded)
                      pl.BlockSpec((1, 1, p), idx),       # bias
                      pl.BlockSpec((1, 1, p), idx)],      # PReLU slope
            out_specs=[pl.BlockSpec((1, nh, p), idx),
                       pl.BlockSpec((1, 8, p), idx)]),
        compiler_params=pltpu.CompilerParams(dimension_semantics=("parallel",)),
    )(nd, a, drop, feat, w, b, alpha)


# ----------------------------------------------------------------------------
# Kernel 3: fused final semantic attention + prediction head
#   h_cat: (M * NMAX, P) = meta-path embeddings stacked along rows
# ----------------------------------------------------------------------------
def _attn_predict_kernel(h_ref, wf_ref, bf_ref, attn_ref, wp_ref, bp_ref, nv_ref,
                         o_ref, *, num_groups, rows_per_group):
    p = h_ref.shape[-1]
    h = h_ref[...]
    # one matmul over all meta-paths at once
    s = jnp.tanh(jnp.dot(h, wf_ref[...], preferred_element_type=jnp.float32)
                 + bf_ref[...])
    nv = nv_ref[0, 0]
    valid = (jax.lax.broadcasted_iota(jnp.int32, (rows_per_group, 1), 0) < nv
             ).astype(jnp.float32)
    inv_n = 1.0 / nv.astype(jnp.float32)
    logits = []
    for m in range(num_groups):
        sm = s[m * rows_per_group:(m + 1) * rows_per_group]
        mean_m = jnp.sum(sm * valid, axis=0, keepdims=True) * inv_n        # (1, P)
        logits.append(jnp.sum(mean_m * attn_ref[...], axis=-1, keepdims=True))
    w = jnp.concatenate(logits, axis=0)                                    # (M, 1)
    ew = jnp.exp(w - jnp.max(w, axis=0, keepdims=True))
    beta = ew / jnp.sum(ew, axis=0, keepdims=True)
    z = jnp.zeros((rows_per_group, p), jnp.float32)
    for m in range(num_groups):
        z = z + beta[m:m + 1, :] * h[m * rows_per_group:(m + 1) * rows_per_group]
    o_ref[...] = jnp.dot(z, wp_ref[...], preferred_element_type=jnp.float32) + bp_ref[...]


def pallas_attn_predict(h_cat, wf, bf, a, wp, bp, nv, *, num_groups, rows_per_group):
    p = h_cat.shape[-1]
    kern = functools.partial(_attn_predict_kernel, num_groups=num_groups,
                             rows_per_group=rows_per_group)
    return pl.pallas_call(
        kern,
        out_shape=jax.ShapeDtypeStruct((rows_per_group, p), jnp.float32),
        in_specs=[VMEM, VMEM, VMEM, VMEM, VMEM, VMEM, SMEM],
        out_specs=VMEM,
    )(h_cat, wf, bf, a, wp, bp, nv)


# ----------------------------------------------------------------------------
# Model forward (thin glue: stacking the per-relation feature slabs)
# ----------------------------------------------------------------------------
def contrast_layer_forward(lp, blk, n_feat, nmax):
    src_stack = jnp.stack([n_feat[s][REV_ETYPE[e]] for s, e, d in ETYPES])   # (4, NMAX, P)
    dst_stack = jnp.stack([n_feat[d][e] for s, e, d in ETYPES])              # (4, NMAX, P)
    feat_cat = jnp.concatenate([src_stack, dst_stack], axis=1)               # (4, 2*NMAX, P)

    h_out, loss_out = pallas_layer(blk["nd"], blk["A"], blk["drop"], feat_cat,
                                   lp["w"], lp["b"], lp["alpha"])
    h_dst = h_out[:, nmax:, :]                                               # (4, NMAX, P)

    new_feat = {}
    for i, (s, e, d) in enumerate(ETYPES):
        new_feat.setdefault(d, {})[e] = h_dst[i]

    # cross-relation semantic attention
    cross = {}
    for dtype, d in new_feat.items():
        ets = list(d)
        if len(ets) == 1:
            cross[dtype] = d
            continue
        cross[dtype] = {}
        for et in ets:
            others = [d[o] for o in ets if o != et]
            if len(others) == 1:
                # Attention over a single meta-path: softmax over one logit == 1.0,
                # so the Attention module is exactly the identity map.
                cross[dtype][et] = others[0]
            else:
                # TODO(synk): general (M>1) intra-layer semantic attention not needed for
                # these ETYPES (each dtype receives at most 2 relations).
                raise NotImplementedError
    return cross, jnp.sum(loss_out[:, 0, 0])


def my_model_forward(params, blocks, feat_stack, *, nmax, out_dim, n_predict,
                     predict_ntype):
    h0 = pallas_fc_in(params["fc_in"]["nrows"], feat_stack,
                      params["fc_in"]["w"], params["fc_in"]["b"])            # (3, NMAX, P)
    n_feat = {}
    for _, etype, dtype in ETYPES:
        n_feat.setdefault(dtype, {})[etype] = h0[NTYPES.index(dtype)]

    co_loss = jnp.float32(0.0)
    for blk, lp in zip(blocks, params["layers"]):
        n_feat, co_loss = contrast_layer_forward(lp, blk, n_feat, nmax)

    ets = list(n_feat[predict_ntype])
    h_cat = jnp.concatenate([n_feat[predict_ntype][e] for e in ets], axis=0)
    nv = jnp.full((1, 1), n_predict, jnp.int32)
    out_full = pallas_attn_predict(h_cat, params["attn"]["fc_w"], params["attn"]["fc_b"],
                                   params["attn"]["a"], params["predict"]["w"],
                                   params["predict"]["b"], nv,
                                   num_groups=len(ets), rows_per_group=nmax)
    return out_full[:n_predict, :out_dim], co_loss


# ----------------------------------------------------------------------------
# Deterministic parameter / data initialization (padded & pre-transposed)
# ----------------------------------------------------------------------------
def xavier_normal(key, shape, gain):
    fan_out, fan_in = shape
    std = gain * (2.0 / (fan_in + fan_out)) ** 0.5
    return std * jax.random.normal(key, shape, dtype=jnp.float32)


def init_params(key, in_dims, hidden, out_dim, n_layers, lane):
    gain = 2.0 ** 0.5  # nn.init.calculate_gain('relu')
    keys = iter(jax.random.split(key, 1024))
    nk = lambda: next(keys)

    def pad_w_t(w):   # torch Linear weight (dout, din) -> padded (lane, lane) of W^T
        return jnp.pad(w.T, ((0, lane - w.shape[1]), (0, lane - w.shape[0])))

    def pad_b(b):
        return jnp.pad(b, (0, lane - b.shape[0]))[None, :]

    fc_w, fc_b = [], []
    for ntype in NTYPES:
        fc_w.append(pad_w_t(xavier_normal(nk(), (hidden, in_dims[ntype]), gain)))
        fc_b.append(pad_b(0.01 * jax.random.normal(nk(), (hidden,), jnp.float32)))
    params = {"fc_in": {"w": jnp.stack(fc_w), "b": jnp.stack(fc_b)}}

    layers = []
    for _ in range(n_layers):
        ws, bs, als = [], [], []
        for _ in ETYPES:
            ws.append(pad_w_t(xavier_normal(nk(), (hidden, hidden), gain)))
            bs.append(pad_b(jnp.zeros((hidden,), jnp.float32)))
            als.append(jnp.full((1, lane), 0.25, jnp.float32))   # PReLU init
        layers.append({"w": jnp.stack(ws), "b": jnp.stack(bs), "alpha": jnp.stack(als)})
        # TODO(synk): per-etype intra-layer Attention params omitted -- with <=2 relations
        # per dtype that attention is exactly the identity, so they never affect outputs.
    params["layers"] = layers

    params["attn"] = {"fc_w": pad_w_t(xavier_normal(nk(), (hidden, hidden), gain)),
                      "fc_b": pad_b(0.01 * jax.random.normal(nk(), (hidden,), jnp.float32)),
                      "a": jnp.pad(xavier_normal(nk(), (1, hidden), gain),
                                   ((0, 0), (0, lane - hidden)))}
    params["predict"] = {"w": pad_w_t(xavier_normal(nk(), (out_dim, hidden), gain)),
                         "b": pad_b(jnp.zeros((out_dim,), jnp.float32))}
    return params


def make_block(key, n_nodes):
    block = {}
    for stype, etype, dtype in ETYPES:
        key, k1, k2 = jax.random.split(key, 3)
        a = (jax.random.uniform(k1, (n_nodes[dtype], n_nodes[stype])) < 0.35
             ).astype(jnp.float32)
        drop = (jax.random.uniform(k2, a.shape) < 0.7).astype(jnp.float32)  # drop-edge
        block[etype] = {"A": a, "drop": drop}
    return block


def prepare_block(block_raw, nmax):
    """Pad & stack the per-etype dense adjacency into the fixed homogeneous layout:
    src nodes at rows/cols [0, nmax), dst nodes at rows [nmax, 2*nmax)."""
    a_list, d_list, nd_list = [], [], []
    for stype, etype, dtype in ETYPES:
        a = block_raw[etype]["A"]
        dr = block_raw[etype]["drop"]
        nd_e, ns_e = a.shape
        a_list.append(jnp.pad(a, ((0, nmax - nd_e), (0, nmax - ns_e))))
        d_list.append(jnp.pad(dr, ((0, nmax - nd_e), (0, nmax - ns_e))))
        nd_list.append(nd_e)
    a_full = jnp.pad(jnp.stack(a_list), ((0, 0), (nmax, 0), (0, nmax)))
    d_full = jnp.pad(jnp.stack(d_list), ((0, 0), (nmax, 0), (0, nmax)))
    return {"A": a_full, "drop": d_full, "nd": jnp.array(nd_list, jnp.int32)}


# ----------------------------------------------------------------------------
if __name__ == "__main__":
    key = jax.random.PRNGKey(0)
    n_nodes = {"author": 12, "paper": 16, "venue": 8}
    in_dims = {"author": 24, "paper": 32, "venue": 16}
    hidden, out_dim, n_layers = 32, 8, 2
    predict_ntype = "paper"

    nmax = _round_up(max(n_nodes.values()), 8)                       # 16 rows / slab
    lane = _round_up(max(max(in_dims.values()), hidden, out_dim), 128)   # 128 lanes

    kp, kf, kg = jax.random.split(key, 3)
    params = init_params(kp, in_dims, hidden, out_dim, n_layers, lane)
    params["fc_in"]["nrows"] = jnp.array([n_nodes[t] for t in NTYPES], jnp.int32)

    # node features padded to (nmax, lane), stacked over NTYPES
    feats = []
    for i, nt in enumerate(NTYPES):
        f = jax.random.normal(jax.random.fold_in(kf, i),
                              (n_nodes[nt], in_dims[nt]), jnp.float32)
        feats.append(jnp.pad(f, ((0, nmax - n_nodes[nt]), (0, lane - in_dims[nt]))))
    feat_stack = jnp.stack(feats)                                    # (3, nmax, lane)

    blocks = [prepare_block(make_block(jax.random.fold_in(kg, l), n_nodes), nmax)
              for l in range(n_layers)]

    fwd = jax.jit(functools.partial(my_model_forward, nmax=nmax, out_dim=out_dim,
                                    n_predict=n_nodes[predict_ntype],
                                    predict_ntype=predict_ntype))
    out, co_loss = fwd(params, blocks, feat_stack)
    out = jax.block_until_ready(out)
    co_loss = jax.block_until_ready(co_loss)

    assert out.shape == (n_nodes[predict_ntype], out_dim)
    assert bool(jnp.isfinite(out).all()) and bool(jnp.isfinite(co_loss))
    print("KERNEL_OK")
</pallas_src>

<mosaic_0001>
module attributes {stable_mosaic.version = 11 : i64} {
  func.func @_fc_in_kernel(%arg0: i32, %arg1: memref<3xi32, #tpu.memory_space<smem>>, %arg2: memref<1x16x128xf32, #tpu.memory_space<vmem>>, %arg3: memref<1x128x128xf32, #tpu.memory_space<vmem>>, %arg4: memref<1x1x128xf32, #tpu.memory_space<vmem>>, %arg5: memref<1x16x128xf32, #tpu.memory_space<vmem>>) attributes {dimension_semantics = [#tpu.dimension_semantics<parallel>], iteration_bounds = array<i64: 3>, scalar_prefetch = 1 : i64, scratch_operands = 0 : i64, tpu.core_type = #tpu.core_type<tc>, window_params = [{transform_indices = @transform_0, window_bounds = array<i64: 1, 16, 128>}, {transform_indices = @transform_1, window_bounds = array<i64: 1, 128, 128>}, {transform_indices = @transform_2, window_bounds = array<i64: 1, 1, 128>}, {transform_indices = @transform_3, window_bounds = array<i64: 1, 16, 128>}]} {
    %0 = arith.index_cast %arg0 : i32 to index
    %1 = memref.load %arg1[%0] : memref<3xi32, #tpu.memory_space<smem>>
    %c0 = arith.constant 0 : index
    %c0_0 = arith.constant 0 : index
    %c0_1 = arith.constant 0 : index
    %2 = vector.load %arg2[%c0, %c0_0, %c0_1] : memref<1x16x128xf32, #tpu.memory_space<vmem>>, vector<1x16x128xf32>
    %3 = vector.shape_cast %2 : vector<1x16x128xf32> to vector<16x128xf32>
    %c0_2 = arith.constant 0 : index
    %c0_3 = arith.constant 0 : index
    %c0_4 = arith.constant 0 : index
    %4 = vector.load %arg3[%c0_2, %c0_3, %c0_4] : memref<1x128x128xf32, #tpu.memory_space<vmem>>, vector<1x128x128xf32>
    %5 = vector.shape_cast %4 : vector<1x128x128xf32> to vector<128x128xf32>
    %cst = arith.constant dense<0.000000e+00> : vector<16x128xf32>
    %6 = tpu.matmul %3, %5, %cst {dimension_numbers = #tpu.dot_dimension_numbers<[1], [0], [0], [1], [0, 0, 1, 1], [], []>} : vector<16x128xf32>, vector<128x128xf32>, vector<16x128xf32> -> vector<16x128xf32>
    %c0_5 = arith.constant 0 : index
    %c0_6 = arith.constant 0 : index
    %c0_7 = arith.constant 0 : index
    %7 = vector.load %arg4[%c0_5, %c0_6, %c0_7] : memref<1x1x128xf32, #tpu.memory_space<vmem>>, vector<1x1x128xf32>
    %8 = vector.shape_cast %7 : vector<1x1x128xf32> to vector<1x128xf32>
    %9 = vector.broadcast %8 : vector<1x128xf32> to vector<16x128xf32>
    %10 = arith.addf %6, %9 : vector<16x128xf32>
    %11 = tpu.iota {dimensions = array<i32: 0>} : vector<16x1xi32>
    %12 = vector.broadcast %1 : i32 to vector<16x1xi32>
    %13 = arith.cmpi slt, %11, %12 : vector<16x1xi32>
    %cst_8 = arith.constant 0.000000e+00 : f32
    %14 = vector.shape_cast %13 : vector<16x1xi1> to vector<16x1xi1>
    %15 = vector.broadcast %14 : vector<16x1xi1> to vector<16x128xi1>
    %16 = vector.broadcast %cst_8 : f32 to vector<16x128xf32>
    %17 = arith.select %15, %10, %16 : vector<16x128xi1>, vector<16x128xf32>
    %c0_9 = arith.constant 0 : index
    %c0_10 = arith.constant 0 : index
    %c0_11 = arith.constant 0 : index
    %18 = vector.load %arg5[%c0_9, %c0_10, %c0_11] : memref<1x16x128xf32, #tpu.memory_space<vmem>>, vector<1x16x128xf32>
    %19 = vector.shape_cast %18 : vector<1x16x128xf32> to vector<16x128xf32>
    %20 = vector.shape_cast %17 : vector<16x128xf32> to vector<1x16x128xf32>
    tpu.vector_store %arg5[%c0_9, %c0_10, %c0_11], %20 {strides = array<i32>} : memref<1x16x128xf32, #tpu.memory_space<vmem>>, vector<1x16x128xf32>,
    return
  }
  func.func @transform_0(%arg0: i32, %arg1: memref<3xi32, #tpu.memory_space<smem>>) -> (i32, i32, i32) {
    %c0_i32 = arith.constant 0 : i32
    %c0_i32_0 = arith.constant 0 : i32
    %c0_i32_1 = arith.constant 0 : i32
    return %arg0, %c0_i32, %c0_i32_0 : i32, i32, i32
  }
  func.func @transform_1(%arg0: i32, %arg1: memref<3xi32, #tpu.memory_space<smem>>) -> (i32, i32, i32) {
    %c0_i32 = arith.constant 0 : i32
    %c0_i32_0 = arith.constant 0 : i32
    %c0_i32_1 = arith.constant 0 : i32
    return %arg0, %c0_i32, %c0_i32_0 : i32, i32, i32
  }
  func.func @transform_2(%arg0: i32, %arg1: memref<3xi32, #tpu.memory_space<smem>>) -> (i32, i32, i32) {
    %c0_i32 = arith.constant 0 : i32
    %c0_i32_0 = arith.constant 0 : i32
    %c0_i32_1 = arith.constant 0 : i32
    return %arg0, %c0_i32, %c0_i32_0 : i32, i32, i32
  }
  func.func @transform_3(%arg0: i32, %arg1: memref<3xi32, #tpu.memory_space<smem>>) -> (i32, i32, i32) {
    %c0_i32 = arith.constant 0 : i32
    %c0_i32_0 = arith.constant 0 : i32
    %c0_i32_1 = arith.constant 0 : i32
    return %arg0, %c0_i32, %c0_i32_0 : i32, i32, i32
  }
}

module attributes {stable_mosaic.version = 11 : i64} {
  func.func @_layer_kernel(%arg0: i32, %arg1: memref<4xi32, #tpu.memory_space<smem>>, %arg2: memref<1x32x32xf32, #tpu.memory_space<vmem>>, %arg3: memref<1x32x32xf32, #tpu.memory_space<vmem>>, %arg4: memref<1x32x128xf32, #tpu.memory_space<vmem>>, %arg5: memref<1x128x128xf32, #tpu.memory_space<vmem>>, %arg6: memref<1x1x128xf32, #tpu.memory_space<vmem>>, %arg7: memref<1x1x128xf32, #tpu.memory_space<vmem>>, %arg8: memref<1x32x128xf32, #tpu.memory_space<vmem>>, %arg9: memref<1x8x128xf32, #tpu.memory_space<vmem>>) attributes {dimension_semantics = [#tpu.dimension_semantics<parallel>], iteration_bounds = array<i64: 4>, scalar_prefetch = 1 : i64, scratch_operands = 0 : i64, tpu.core_type = #tpu.core_type<tc>, window_params = [{transform_indices = @transform_0, window_bounds = array<i64: 1, 32, 32>}, {transform_indices = @transform_1, window_bounds = array<i64: 1, 32, 32>}, {transform_indices = @transform_2, window_bounds = array<i64: 1, 32, 128>}, {transform_indices = @transform_3, window_bounds = array<i64: 1, 128, 128>}, {transform_indices = @transform_4, window_bounds = array<i64: 1, 1, 128>}, {transform_indices = @transform_5, window_bounds = array<i64: 1, 1, 128>}, {transform_indices = @transform_6, window_bounds = array<i64: 1, 32, 128>}, {transform_indices = @transform_7, window_bounds = array<i64: 1, 8, 128>}]} {
    %0 = arith.index_cast %arg0 : i32 to index
    %1 = memref.load %arg1[%0] : memref<4xi32, #tpu.memory_space<smem>>
    %c0 = arith.constant 0 : index
    %c0_0 = arith.constant 0 : index
    %c0_1 = arith.constant 0 : index
    %2 = vector.load %arg2[%c0, %c0_0, %c0_1] : memref<1x32x32xf32, #tpu.memory_space<vmem>>, vector<1x32x32xf32>
    %3 = vector.shape_cast %2 : vector<1x32x32xf32> to vector<32x32xf32>
    %4 = tpu.iota {dimensions = array<i32: 0>} : vector<32x32xi32>
    %5 = tpu.iota {dimensions = array<i32: 1>} : vector<32x32xi32>
    %6 = arith.cmpi eq, %4, %5 : vector<32x32xi32>
    %7 = arith.extui %6 : vector<32x32xi1> to vector<32x32xi32>
    %8 = arith.sitofp %7 : vector<32x32xi32> to vector<32x32xf32>
    %9 = arith.addf %3, %8 : vector<32x32xf32>
    %c0_2 = arith.constant 0 : index
    %c0_3 = arith.constant 0 : index
    %c0_4 = arith.constant 0 : index
    %10 = vector.load %arg3[%c0_2, %c0_3, %c0_4] : memref<1x32x32xf32, #tpu.memory_space<vmem>>, vector<1x32x32xf32>
    %11 = vector.shape_cast %10 : vector<1x32x32xf32> to vector<32x32xf32>
    %12 = arith.mulf %3, %11 : vector<32x32xf32>
    %13 = arith.addf %12, %8 : vector<32x32xf32>
    %c0_5 = arith.constant 0 : index
    %c0_6 = arith.constant 0 : index
    %c0_7 = arith.constant 0 : index
    %14 = vector.load %arg4[%c0_5, %c0_6, %c0_7] : memref<1x32x128xf32, #tpu.memory_space<vmem>>, vector<1x32x128xf32>
    %15 = vector.shape_cast %14 : vector<1x32x128xf32> to vector<32x128xf32>
    %16 = arith.truncf %15 : vector<32x128xf32> to vector<32x128xbf16>
    %c0_8 = arith.constant 0 : index
    %c0_9 = arith.constant 0 : index
    %c0_10 = arith.constant 0 : index
    %17 = vector.load %arg5[%c0_8, %c0_9, %c0_10] : memref<1x128x128xf32, #tpu.memory_space<vmem>>, vector<1x128x128xf32>
    %18 = vector.shape_cast %17 : vector<1x128x128xf32> to vector<128x128xf32>
    %19 = arith.truncf %18 : vector<128x128xf32> to vector<128x128xbf16>
    %cst = arith.constant dense<0.000000e+00> : vector<32x128xf32>
    %20 = tpu.matmul %16, %19, %cst {dimension_numbers = #tpu.dot_dimension_numbers<[1], [0], [0], [1], [0, 0, 1, 1], [], []>} : vector<32x128xbf16>, vector<128x128xbf16>, vector<32x128xf32> -> vector<32x128xf32>
    %21 = arith.truncf %20 : vector<32x128xf32> to vector<32x128xbf16>
    %cst_11 = arith.constant dense<0.000000e+00> : vector<32xf32>
    %22 = vector.multi_reduction <add>, %9, %cst_11 [1] : vector<32x32xf32> to vector<32xf32>
    %23 = vector.shape_cast %22 : vector<32xf32> to vector<32x1xf32>
    %cst_12 = arith.constant 1.000000e+00 : f32
    %24 = vector.broadcast %cst_12 : f32 to vector<32x1xf32>
    %25 = arith.divf %24, %23 : vector<32x1xf32>
    %cst_13 = arith.constant dense<0.000000e+00> : vector<32xf32>
    %26 = vector.multi_reduction <add>, %13, %cst_13 [1] : vector<32x32xf32> to vector<32xf32>
    %27 = vector.shape_cast %26 : vector<32xf32> to vector<32x1xf32>
    %cst_14 = arith.constant 1.000000e+00 : f32
    %28 = vector.broadcast %cst_14 : f32 to vector<32x1xf32>
    %29 = arith.divf %28, %27 : vector<32x1xf32>
    %30 = arith.truncf %9 : vector<32x32xf32> to vector<32x32xbf16>
    %cst_15 = arith.constant dense<0.000000e+00> : vector<32x128xf32>
    %31 = tpu.matmul %30, %21, %cst_15 {dimension_numbers = #tpu.dot_dimension_numbers<[1], [0], [0], [1], [0, 0, 1, 1], [], []>} : vector<32x32xbf16>, vector<32x128xbf16>, vector<32x128xf32> -> vector<32x128xf32>
    %32 = vector.broadcast %25 : vector<32x1xf32> to vector<32x128xf32>
    %33 = arith.mulf %31, %32 : vector<32x128xf32>
    %c0_16 = arith.constant 0 : index
    %c0_17 = arith.constant 0 : index
    %c0_18 = arith.constant 0 : index
    %34 = vector.load %arg6[%c0_16, %c0_17, %c0_18] : memref<1x1x128xf32, #tpu.memory_space<vmem>>, vector<1x1x128xf32>
    %35 = vector.shape_cast %34 : vector<1x1x128xf32> to vector<1x128xf32>
    %36 = vector.broadcast %35 : vector<1x128xf32> to vector<32x128xf32>
    %37 = arith.addf %33, %36 : vector<32x128xf32>
    %38 = arith.truncf %13 : vector<32x32xf32> to vector<32x32xbf16>
    %cst_19 = arith.constant dense<0.000000e+00> : vector<32x128xf32>
    %39 = tpu.matmul %38, %21, %cst_19 {dimension_numbers = #tpu.dot_dimension_numbers<[1], [0], [0], [1], [0, 0, 1, 1], [], []>} : vector<32x32xbf16>, vector<32x128xbf16>, vector<32x128xf32> -> vector<32x128xf32>
    %40 = vector.broadcast %29 : vector<32x1xf32> to vector<32x128xf32>
    %41 = arith.mulf %39, %40 : vector<32x128xf32>
    %c0_20 = arith.constant 0 : index
    %c0_21 = arith.constant 0 : index
    %c0_22 = arith.constant 0 : index
    %42 = vector.load %arg6[%c0_20, %c0_21, %c0_22] : memref<1x1x128xf32, #tpu.memory_space<vmem>>, vector<1x1x128xf32>
    %43 = vector.shape_cast %42 : vector<1x1x128xf32> to vector<1x128xf32>
    %44 = vector.broadcast %43 : vector<1x128xf32> to vector<32x128xf32>
    %45 = arith.addf %41, %44 : vector<32x128xf32>
    %c0_23 = arith.constant 0 : index
    %c0_24 = arith.constant 0 : index
    %c0_25 = arith.constant 0 : index
    %46 = vector.load %arg7[%c0_23, %c0_24, %c0_25] : memref<1x1x128xf32, #tpu.memory_space<vmem>>, vector<1x1x128xf32>
    %47 = vector.shape_cast %46 : vector<1x1x128xf32> to vector<1x128xf32>
    %cst_26 = arith.constant 0.000000e+00 : f32
    %48 = vector.broadcast %cst_26 : f32 to vector<32x128xf32>
    %49 = arith.cmpf ogt, %37, %48 : vector<32x128xf32>
    %50 = vector.broadcast %47 : vector<1x128xf32> to vector<32x128xf32>
    %51 = arith.mulf %50, %37 : vector<32x128xf32>
    %52 = arith.select %49, %37, %51 : vector<32x128xi1>, vector<32x128xf32>
    %cst_27 = arith.constant 0.000000e+00 : f32
    %53 = vector.broadcast %cst_27 : f32 to vector<32x128xf32>
    %54 = arith.cmpf ogt, %45, %53 : vector<32x128xf32>
    %55 = vector.broadcast %47 : vector<1x128xf32> to vector<32x128xf32>
    %56 = arith.mulf %55, %45 : vector<32x128xf32>
    %57 = arith.select %54, %45, %56 : vector<32x128xi1>, vector<32x128xf32>
    %58 = arith.mulf %52, %52 : vector<32x128xf32>
    %cst_28 = arith.constant dense<0.000000e+00> : vector<32xf32>
    %59 = vector.multi_reduction <add>, %58, %cst_28 [1] : vector<32x128xf32> to vector<32xf32>
    %60 = vector.shape_cast %59 : vector<32xf32> to vector<32x1xf32>
    %cst_29 = arith.constant 9.99999996E-13 : f32
    %61 = vector.broadcast %cst_29 : f32 to vector<32x1xf32>
    %62 = arith.addf %60, %61 : vector<32x1xf32>
    %63 = math.rsqrt %62 : vector<32x1xf32>
    %64 = vector.broadcast %63 : vector<32x1xf32> to vector<32x128xf32>
    %65 = arith.mulf %52, %64 : vector<32x128xf32>
    %66 = arith.mulf %57, %57 : vector<32x128xf32>
    %cst_30 = arith.constant dense<0.000000e+00> : vector<32xf32>
    %67 = vector.multi_reduction <add>, %66, %cst_30 [1] : vector<32x128xf32> to vector<32xf32>
    %68 = vector.shape_cast %67 : vector<32xf32> to vector<32x1xf32>
    %cst_31 = arith.constant 9.99999996E-13 : f32
    %69 = vector.broadcast %cst_31 : f32 to vector<32x1xf32>
    %70 = arith.addf %68, %69 : vector<32x1xf32>
    %71 = math.rsqrt %70 : vector<32x1xf32>
    %72 = vector.broadcast %71 : vector<32x1xf32> to vector<32x128xf32>
    %73 = arith.mulf %57, %72 : vector<32x128xf32>
    %cst_32 = arith.constant dense<0.000000e+00> : vector<32x32xf32>
    %74 = tpu.matmul %65, %73, %cst_32 {dimension_numbers = #tpu.dot_dimension_numbers<[1], [1], [0], [0], [0, 0, 1, 0], [], []>} : vector<32x128xf32>, vector<32x128xf32>, vector<32x32xf32> -> vector<32x32xf32>
    %75 = tpu.iota {dimensions = array<i32: 0>} : vector<32x1xi32>
    %c16_i32 = arith.constant 16 : i32
    %76 = vector.broadcast %c16_i32 : i32 to vector<32x1xi32>
    %77 = arith.cmpi sge, %75, %76 : vector<32x1xi32>
    %c16_i32_33 = arith.constant 16 : i32
    %78 = arith.addi %c16_i32_33, %1 : i32
    %79 = vector.broadcast %78 : i32 to vector<32x1xi32>
    %80 = arith.cmpi slt, %75, %79 : vector<32x1xi32>
    %81 = arith.andi %77, %80 : vector<32x1xi1>
    %82 = arith.extui %81 : vector<32x1xi1> to vector<32x1xi32>
    %83 = arith.sitofp %82 : vector<32x1xi32> to vector<32x1xf32>
    %84 = arith.mulf %65, %73 : vector<32x128xf32>
    %cst_34 = arith.constant dense<0.000000e+00> : vector<32xf32>
    %85 = vector.multi_reduction <add>, %84, %cst_34 [1] : vector<32x128xf32> to vector<32xf32>
    %86 = vector.shape_cast %85 : vector<32xf32> to vector<32x1xf32>
    %87 = math.exp %86 : vector<32x1xf32>
    %88 = arith.mulf %83, %87 : vector<32x1xf32>
    %89 = vector.shape_cast %88 : vector<32x1xf32> to vector<1x32x1xf32>
    %cst_35 = arith.constant dense<0.000000e+00> : vector<1xf32>
    %90 = vector.multi_reduction <add>, %89, %cst_35 [1, 2] : vector<1x32x1xf32> to vector<1xf32>
    %91 = vector.shape_cast %90 : vector<1xf32> to vector<1x1x1xf32>
    %92 = vector.extract %91[0, 0, 0] : f32 from vector<1x1x1xf32>
    %93 = arith.mulf %83, %86 : vector<32x1xf32>
    %94 = vector.shape_cast %93 : vector<32x1xf32> to vector<1x32x1xf32>
    %cst_36 = arith.constant dense<0.000000e+00> : vector<1xf32>
    %95 = vector.multi_reduction <add>, %94, %cst_36 [1, 2] : vector<1x32x1xf32> to vector<1xf32>
    %96 = vector.shape_cast %95 : vector<1xf32> to vector<1x1x1xf32>
    %97 = vector.extract %96[0, 0, 0] : f32 from vector<1x1x1xf32>
    %98 = math.exp %74 : vector<32x32xf32>
    %99 = vector.broadcast %83 : vector<32x1xf32> to vector<32x32xf32>
    %100 = arith.mulf %99, %8 : vector<32x32xf32>
    %cst_37 = arith.constant dense<0.000000e+00> : vector<32x32xf32>
    %101 = tpu.matmul %9, %98, %cst_37 {dimension_numbers = #tpu.dot_dimension_numbers<[1], [0], [0], [1], [0, 0, 1, 1], [], []>} : vector<32x32xf32>, vector<32x32xf32>, vector<32x32xf32> -> vector<32x32xf32>
    %102 = arith.mulf %100, %101 : vector<32x32xf32>
    %103 = vector.shape_cast %102 : vector<32x32xf32> to vector<1x32x32xf32>
    %cst_38 = arith.constant dense<0.000000e+00> : vector<1xf32>
    %104 = vector.multi_reduction <add>, %103, %cst_38 [1, 2] : vector<1x32x32xf32> to vector<1xf32>
    %105 = vector.shape_cast %104 : vector<1xf32> to vector<1x1x1xf32>
    %106 = vector.extract %105[0, 0, 0] : f32 from vector<1x1x1xf32>
    %107 = vector.broadcast %83 : vector<32x1xf32> to vector<32x32xf32>
    %108 = arith.mulf %107, %13 : vector<32x32xf32>
    %109 = arith.mulf %108, %98 : vector<32x32xf32>
    %110 = vector.shape_cast %109 : vector<32x32xf32> to vector<1x32x32xf32>
    %cst_39 = arith.constant dense<0.000000e+00> : vector<1xf32>
    %111 = vector.multi_reduction <add>, %110, %cst_39 [1, 2] : vector<1x32x32xf32> to vector<1xf32>
    %112 = vector.shape_cast %111 : vector<1xf32> to vector<1x1x1xf32>
    %113 = vector.extract %112[0, 0, 0] : f32 from vector<1x1x1xf32>
    %114 = arith.addf %92, %106 : f32
    %115 = arith.addf %114, %113 : f32
    %116 = arith.subf %115, %97 : f32
    %117 = math.log %116 : f32
    %118 = vector.broadcast %83 : vector<32x1xf32> to vector<32x128xf32>
    %119 = arith.mulf %52, %118 : vector<32x128xf32>
    %c0_40 = arith.constant 0 : index
    %c0_41 = arith.constant 0 : index
    %c0_42 = arith.constant 0 : index
    %120 = vector.load %arg8[%c0_40, %c0_41, %c0_42] : memref<1x32x128xf32, #tpu.memory_space<vmem>>, vector<1x32x128xf32>
    %121 = vector.shape_cast %120 : vector<1x32x128xf32> to vector<32x128xf32>
    %122 = vector.shape_cast %119 : vector<32x128xf32> to vector<1x32x128xf32>
    tpu.vector_store %arg8[%c0_40, %c0_41, %c0_42], %122 {strides = array<i32>} : memref<1x32x128xf32, #tpu.memory_space<vmem>>, vector<1x32x128xf32>,
    %cst_43 = arith.constant 0.000000e+00 : f32
    %123 = vector.broadcast %cst_43 : f32 to vector<8x128xf32>
    %124 = vector.broadcast %117 : f32 to vector<8x128xf32>
    %125 = arith.addf %123, %124 : vector<8x128xf32>
    %c0_44 = arith.constant 0 : index
    %c0_45 = arith.constant 0 : index
    %c0_46 = arith.constant 0 : index
    %126 = vector.load %arg9[%c0_44, %c0_45, %c0_46] : memref<1x8x128xf32, #tpu.memory_space<vmem>>, vector<1x8x128xf32>
    %127 = vector.shape_cast %126 : vector<1x8x128xf32> to vector<8x128xf32>
    %128 = vector.shape_cast %125 : vector<8x128xf32> to vector<1x8x128xf32>
    tpu.vector_store %arg9[%c0_44, %c0_45, %c0_46], %128 {strides = array<i32>} : memref<1x8x128xf32, #tpu.memory_space<vmem>>, vector<1x8x128xf32>,
    return
  }
  func.func @transform_0(%arg0: i32, %arg1: memref<4xi32, #tpu.memory_space<smem>>) -> (i32, i32, i32) {
    %c0_i32 = arith.constant 0 : i32
    %c0_i32_0 = arith.constant 0 : i32
    %c0_i32_1 = arith.constant 0 : i32
    return %arg0, %c0_i32, %c0_i32_0 : i32, i32, i32
  }
  func.func @transform_1(%arg0: i32, %arg1: memref<4xi32, #tpu.memory_space<smem>>) -> (i32, i32, i32) {
    %c0_i32 = arith.constant 0 : i32
    %c0_i32_0 = arith.constant 0 : i32
    %c0_i32_1 = arith.constant 0 : i32
    return %arg0, %c0_i32, %c0_i32_0 : i32, i32, i32
  }
  func.func @transform_2(%arg0: i32, %arg1: memref<4xi32, #tpu.memory_space<smem>>) -> (i32, i32, i32) {
    %c0_i32 = arith.constant 0 : i32
    %c0_i32_0 = arith.constant 0 : i32
    %c0_i32_1 = arith.constant 0 : i32
    return %arg0, %c0_i32, %c0_i32_0 : i32, i32, i32
  }
  func.func @transform_3(%arg0: i32, %arg1: memref<4xi32, #tpu.memory_space<smem>>) -> (i32, i32, i32) {
    %c0_i32 = arith.constant 0 : i32
    %c0_i32_0 = arith.constant 0 : i32
    %c0_i32_1 = arith.constant 0 : i32
    return %arg0, %c0_i32, %c0_i32_0 : i32, i32, i32
  }
  func.func @transform_4(%arg0: i32, %arg1: memref<4xi32, #tpu.memory_space<smem>>) -> (i32, i32, i32) {
    %c0_i32 = arith.constant 0 : i32
    %c0_i32_0 = arith.constant 0 : i32
    %c0_i32_1 = arith.constant 0 : i32
    return %arg0, %c0_i32, %c0_i32_0 : i32, i32, i32
  }
  func.func @transform_5(%arg0: i32, %arg1: memref<4xi32, #tpu.memory_space<smem>>) -> (i32, i32, i32) {
    %c0_i32 = arith.constant 0 : i32
    %c0_i32_0 = arith.constant 0 : i32
    %c0_i32_1 = arith.constant 0 : i32
    return %arg0, %c0_i32, %c0_i32_0 : i32, i32, i32
  }
  func.func @transform_6(%arg0: i32, %arg1: memref<4xi32, #tpu.memory_space<smem>>) -> (i32, i32, i32) {
    %c0_i32 = arith.constant 0 : i32
    %c0_i32_0 = arith.constant 0 : i32
    %c0_i32_1 = arith.constant 0 : i32
    return %arg0, %c0_i32, %c0_i32_0 : i32, i32, i32
  }
  func.func @transform_7(%arg0: i32, %arg1: memref<4xi32, #tpu.memory_space<smem>>) -> (i32, i32, i32) {
    %c0_i32 = arith.constant 0 : i32
    %c0_i32_0 = arith.constant 0 : i32
    %c0_i32_1 = arith.constant 0 : i32
    return %arg0, %c0_i32, %c0_i32_0 : i32, i32, i32
  }
}

module attributes {stable_mosaic.version = 11 : i64} {
  func.func @_layer_kernel(%arg0: i32, %arg1: memref<4xi32, #tpu.memory_space<smem>>, %arg2: memref<1x32x32xf32, #tpu.memory_space<vmem>>, %arg3: memref<1x32x32xf32, #tpu.memory_space<vmem>>, %arg4: memref<1x32x128xf32, #tpu.memory_space<vmem>>, %arg5: memref<1x128x128xf32, #tpu.memory_space<vmem>>, %arg6: memref<1x1x128xf32, #tpu.memory_space<vmem>>, %arg7: memref<1x1x128xf32, #tpu.memory_space<vmem>>, %arg8: memref<1x32x128xf32, #tpu.memory_space<vmem>>, %arg9: memref<1x8x128xf32, #tpu.memory_space<vmem>>) attributes {dimension_semantics = [#tpu.dimension_semantics<parallel>], iteration_bounds = array<i64: 4>, scalar_prefetch = 1 : i64, scratch_operands = 0 : i64, tpu.core_type = #tpu.core_type<tc>, window_params = [{transform_indices = @transform_0, window_bounds = array<i64: 1, 32, 32>}, {transform_indices = @transform_1, window_bounds = array<i64: 1, 32, 32>}, {transform_indices = @transform_2, window_bounds = array<i64: 1, 32, 128>}, {transform_indices = @transform_3, window_bounds = array<i64: 1, 128, 128>}, {transform_indices = @transform_4, window_bounds = array<i64: 1, 1, 128>}, {transform_indices = @transform_5, window_bounds = array<i64: 1, 1, 128>}, {transform_indices = @transform_6, window_bounds = array<i64: 1, 32, 128>}, {transform_indices = @transform_7, window_bounds = array<i64: 1, 8, 128>}]} {
    %0 = arith.index_cast %arg0 : i32 to index
    %1 = memref.load %arg1[%0] : memref<4xi32, #tpu.memory_space<smem>>
    %c0 = arith.constant 0 : index
    %c0_0 = arith.constant 0 : index
    %c0_1 = arith.constant 0 : index
    %2 = vector.load %arg2[%c0, %c0_0, %c0_1] : memref<1x32x32xf32, #tpu.memory_space<vmem>>, vector<1x32x32xf32>
    %3 = vector.shape_cast %2 : vector<1x32x32xf32> to vector<32x32xf32>
    %4 = tpu.iota {dimensions = array<i32: 0>} : vector<32x32xi32>
    %5 = tpu.iota {dimensions = array<i32: 1>} : vector<32x32xi32>
    %6 = arith.cmpi eq, %4, %5 : vector<32x32xi32>
    %7 = arith.extui %6 : vector<32x32xi1> to vector<32x32xi32>
    %8 = arith.sitofp %7 : vector<32x32xi32> to vector<32x32xf32>
    %9 = arith.addf %3, %8 : vector<32x32xf32>
    %c0_2 = arith.constant 0 : index
    %c0_3 = arith.constant 0 : index
    %c0_4 = arith.constant 0 : index
    %10 = vector.load %arg3[%c0_2, %c0_3, %c0_4] : memref<1x32x32xf32, #tpu.memory_space<vmem>>, vector<1x32x32xf32>
    %11 = vector.shape_cast %10 : vector<1x32x32xf32> to vector<32x32xf32>
    %12 = arith.mulf %3, %11 : vector<32x32xf32>
    %13 = arith.addf %12, %8 : vector<32x32xf32>
    %c0_5 = arith.constant 0 : index
    %c0_6 = arith.constant 0 : index
    %c0_7 = arith.constant 0 : index
    %14 = vector.load %arg4[%c0_5, %c0_6, %c0_7] : memref<1x32x128xf32, #tpu.memory_space<vmem>>, vector<1x32x128xf32>
    %15 = vector.shape_cast %14 : vector<1x32x128xf32> to vector<32x128xf32>
    %16 = arith.truncf %15 : vector<32x128xf32> to vector<32x128xbf16>
    %c0_8 = arith.constant 0 : index
    %c0_9 = arith.constant 0 : index
    %c0_10 = arith.constant 0 : index
    %17 = vector.load %arg5[%c0_8, %c0_9, %c0_10] : memref<1x128x128xf32, #tpu.memory_space<vmem>>, vector<1x128x128xf32>
    %18 = vector.shape_cast %17 : vector<1x128x128xf32> to vector<128x128xf32>
    %19 = arith.truncf %18 : vector<128x128xf32> to vector<128x128xbf16>
    %cst = arith.constant dense<0.000000e+00> : vector<32x128xf32>
    %20 = tpu.matmul %16, %19, %cst {dimension_numbers = #tpu.dot_dimension_numbers<[1], [0], [0], [1], [0, 0, 1, 1], [], []>} : vector<32x128xbf16>, vector<128x128xbf16>, vector<32x128xf32> -> vector<32x128xf32>
    %21 = arith.truncf %20 : vector<32x128xf32> to vector<32x128xbf16>
    %cst_11 = arith.constant dense<0.000000e+00> : vector<32xf32>
    %22 = vector.multi_reduction <add>, %9, %cst_11 [1] : vector<32x32xf32> to vector<32xf32>
    %23 = vector.shape_cast %22 : vector<32xf32> to vector<32x1xf32>
    %cst_12 = arith.constant 1.000000e+00 : f32
    %24 = vector.broadcast %cst_12 : f32 to vector<32x1xf32>
    %25 = arith.divf %24, %23 : vector<32x1xf32>
    %cst_13 = arith.constant dense<0.000000e+00> : vector<32xf32>
    %26 = vector.multi_reduction <add>, %13, %cst_13 [1] : vector<32x32xf32> to vector<32xf32>
    %27 = vector.shape_cast %26 : vector<32xf32> to vector<32x1xf32>
    %cst_14 = arith.constant 1.000000e+00 : f32
    %28 = vector.broadcast %cst_14 : f32 to vector<32x1xf32>
    %29 = arith.divf %28, %27 : vector<32x1xf32>
    %30 = arith.truncf %9 : vector<32x32xf32> to vector<32x32xbf16>
    %cst_15 = arith.constant dense<0.000000e+00> : vector<32x128xf32>
    %31 = tpu.matmul %30, %21, %cst_15 {dimension_numbers = #tpu.dot_dimension_numbers<[1], [0], [0], [1], [0, 0, 1, 1], [], []>} : vector<32x32xbf16>, vector<32x128xbf16>, vector<32x128xf32> -> vector<32x128xf32>
    %32 = vector.broadcast %25 : vector<32x1xf32> to vector<32x128xf32>
    %33 = arith.mulf %31, %32 : vector<32x128xf32>
    %c0_16 = arith.constant 0 : index
    %c0_17 = arith.constant 0 : index
    %c0_18 = arith.constant 0 : index
    %34 = vector.load %arg6[%c0_16, %c0_17, %c0_18] : memref<1x1x128xf32, #tpu.memory_space<vmem>>, vector<1x1x128xf32>
    %35 = vector.shape_cast %34 : vector<1x1x128xf32> to vector<1x128xf32>
    %36 = vector.broadcast %35 : vector<1x128xf32> to vector<32x128xf32>
    %37 = arith.addf %33, %36 : vector<32x128xf32>
    %38 = arith.truncf %13 : vector<32x32xf32> to vector<32x32xbf16>
    %cst_19 = arith.constant dense<0.000000e+00> : vector<32x128xf32>
    %39 = tpu.matmul %38, %21, %cst_19 {dimension_numbers = #tpu.dot_dimension_numbers<[1], [0], [0], [1], [0, 0, 1, 1], [], []>} : vector<32x32xbf16>, vector<32x128xbf16>, vector<32x128xf32> -> vector<32x128xf32>
    %40 = vector.broadcast %29 : vector<32x1xf32> to vector<32x128xf32>
    %41 = arith.mulf %39, %40 : vector<32x128xf32>
    %c0_20 = arith.constant 0 : index
    %c0_21 = arith.constant 0 : index
    %c0_22 = arith.constant 0 : index
    %42 = vector.load %arg6[%c0_20, %c0_21, %c0_22] : memref<1x1x128xf32, #tpu.memory_space<vmem>>, vector<1x1x128xf32>
    %43 = vector.shape_cast %42 : vector<1x1x128xf32> to vector<1x128xf32>
    %44 = vector.broadcast %43 : vector<1x128xf32> to vector<32x128xf32>
    %45 = arith.addf %41, %44 : vector<32x128xf32>
    %c0_23 = arith.constant 0 : index
    %c0_24 = arith.constant 0 : index
    %c0_25 = arith.constant 0 : index
    %46 = vector.load %arg7[%c0_23, %c0_24, %c0_25] : memref<1x1x128xf32, #tpu.memory_space<vmem>>, vector<1x1x128xf32>
    %47 = vector.shape_cast %46 : vector<1x1x128xf32> to vector<1x128xf32>
    %cst_26 = arith.constant 0.000000e+00 : f32
    %48 = vector.broadcast %cst_26 : f32 to vector<32x128xf32>
    %49 = arith.cmpf ogt, %37, %48 : vector<32x128xf32>
    %50 = vector.broadcast %47 : vector<1x128xf32> to vector<32x128xf32>
    %51 = arith.mulf %50, %37 : vector<32x128xf32>
    %52 = arith.select %49, %37, %51 : vector<32x128xi1>, vector<32x128xf32>
    %cst_27 = arith.constant 0.000000e+00 : f32
    %53 = vector.broadcast %cst_27 : f32 to vector<32x128xf32>
    %54 = arith.cmpf ogt, %45, %53 : vector<32x128xf32>
    %55 = vector.broadcast %47 : vector<1x128xf32> to vector<32x128xf32>
    %56 = arith.mulf %55, %45 : vector<32x128xf32>
    %57 = arith.select %54, %45, %56 : vector<32x128xi1>, vector<32x128xf32>
    %58 = arith.mulf %52, %52 : vector<32x128xf32>
    %cst_28 = arith.constant dense<0.000000e+00> : vector<32xf32>
    %59 = vector.multi_reduction <add>, %58, %cst_28 [1] : vector<32x128xf32> to vector<32xf32>
    %60 = vector.shape_cast %59 : vector<32xf32> to vector<32x1xf32>
    %cst_29 = arith.constant 9.99999996E-13 : f32
    %61 = vector.broadcast %cst_29 : f32 to vector<32x1xf32>
    %62 = arith.addf %60, %61 : vector<32x1xf32>
    %63 = math.rsqrt %62 : vector<32x1xf32>
    %64 = vector.broadcast %63 : vector<32x1xf32> to vector<32x128xf32>
    %65 = arith.mulf %52, %64 : vector<32x128xf32>
    %66 = arith.mulf %57, %57 : vector<32x128xf32>
    %cst_30 = arith.constant dense<0.000000e+00> : vector<32xf32>
    %67 = vector.multi_reduction <add>, %66, %cst_30 [1] : vector<32x128xf32> to vector<32xf32>
    %68 = vector.shape_cast %67 : vector<32xf32> to vector<32x1xf32>
    %cst_31 = arith.constant 9.99999996E-13 : f32
    %69 = vector.broadcast %cst_31 : f32 to vector<32x1xf32>
    %70 = arith.addf %68, %69 : vector<32x1xf32>
    %71 = math.rsqrt %70 : vector<32x1xf32>
    %72 = vector.broadcast %71 : vector<32x1xf32> to vector<32x128xf32>
    %73 = arith.mulf %57, %72 : vector<32x128xf32>
    %cst_32 = arith.constant dense<0.000000e+00> : vector<32x32xf32>
    %74 = tpu.matmul %65, %73, %cst_32 {dimension_numbers = #tpu.dot_dimension_numbers<[1], [1], [0], [0], [0, 0, 1, 0], [], []>} : vector<32x128xf32>, vector<32x128xf32>, vector<32x32xf32> -> vector<32x32xf32>
    %75 = tpu.iota {dimensions = array<i32: 0>} : vector<32x1xi32>
    %c16_i32 = arith.constant 16 : i32
    %76 = vector.broadcast %c16_i32 : i32 to vector<32x1xi32>
    %77 = arith.cmpi sge, %75, %76 : vector<32x1xi32>
    %c16_i32_33 = arith.constant 16 : i32
    %78 = arith.addi %c16_i32_33, %1 : i32
    %79 = vector.broadcast %78 : i32 to vector<32x1xi32>
    %80 = arith.cmpi slt, %75, %79 : vector<32x1xi32>
    %81 = arith.andi %77, %80 : vector<32x1xi1>
    %82 = arith.extui %81 : vector<32x1xi1> to vector<32x1xi32>
    %83 = arith.sitofp %82 : vector<32x1xi32> to vector<32x1xf32>
    %84 = arith.mulf %65, %73 : vector<32x128xf32>
    %cst_34 = arith.constant dense<0.000000e+00> : vector<32xf32>
    %85 = vector.multi_reduction <add>, %84, %cst_34 [1] : vector<32x128xf32> to vector<32xf32>
    %86 = vector.shape_cast %85 : vector<32xf32> to vector<32x1xf32>
    %87 = math.exp %86 : vector<32x1xf32>
    %88 = arith.mulf %83, %87 : vector<32x1xf32>
    %89 = vector.shape_cast %88 : vector<32x1xf32> to vector<1x32x1xf32>
    %cst_35 = arith.constant dense<0.000000e+00> : vector<1xf32>
    %90 = vector.multi_reduction <add>, %89, %cst_35 [1, 2] : vector<1x32x1xf32> to vector<1xf32>
    %91 = vector.shape_cast %90 : vector<1xf32> to vector<1x1x1xf32>
    %92 = vector.extract %91[0, 0, 0] : f32 from vector<1x1x1xf32>
    %93 = arith.mulf %83, %86 : vector<32x1xf32>
    %94 = vector.shape_cast %93 : vector<32x1xf32> to vector<1x32x1xf32>
    %cst_36 = arith.constant dense<0.000000e+00> : vector<1xf32>
    %95 = vector.multi_reduction <add>, %94, %cst_36 [1, 2] : vector<1x32x1xf32> to vector<1xf32>
    %96 = vector.shape_cast %95 : vector<1xf32> to vector<1x1x1xf32>
    %97 = vector.extract %96[0, 0, 0] : f32 from vector<1x1x1xf32>
    %98 = math.exp %74 : vector<32x32xf32>
    %99 = vector.broadcast %83 : vector<32x1xf32> to vector<32x32xf32>
    %100 = arith.mulf %99, %8 : vector<32x32xf32>
    %cst_37 = arith.constant dense<0.000000e+00> : vector<32x32xf32>
    %101 = tpu.matmul %9, %98, %cst_37 {dimension_numbers = #tpu.dot_dimension_numbers<[1], [0], [0], [1], [0, 0, 1, 1], [], []>} : vector<32x32xf32>, vector<32x32xf32>, vector<32x32xf32> -> vector<32x32xf32>
    %102 = arith.mulf %100, %101 : vector<32x32xf32>
    %103 = vector.shape_cast %102 : vector<32x32xf32> to vector<1x32x32xf32>
    %cst_38 = arith.constant dense<0.000000e+00> : vector<1xf32>
    %104 = vector.multi_reduction <add>, %103, %cst_38 [1, 2] : vector<1x32x32xf32> to vector<1xf32>
    %105 = vector.shape_cast %104 : vector<1xf32> to vector<1x1x1xf32>
    %106 = vector.extract %105[0, 0, 0] : f32 from vector<1x1x1xf32>
    %107 = vector.broadcast %83 : vector<32x1xf32> to vector<32x32xf32>
    %108 = arith.mulf %107, %13 : vector<32x32xf32>
    %109 = arith.mulf %108, %98 : vector<32x32xf32>
    %110 = vector.shape_cast %109 : vector<32x32xf32> to vector<1x32x32xf32>
    %cst_39 = arith.constant dense<0.000000e+00> : vector<1xf32>
    %111 = vector.multi_reduction <add>, %110, %cst_39 [1, 2] : vector<1x32x32xf32> to vector<1xf32>
    %112 = vector.shape_cast %111 : vector<1xf32> to vector<1x1x1xf32>
    %113 = vector.extract %112[0, 0, 0] : f32 from vector<1x1x1xf32>
    %114 = arith.addf %92, %106 : f32
    %115 = arith.addf %114, %113 : f32
    %116 = arith.subf %115, %97 : f32
    %117 = math.log %116 : f32
    %118 = vector.broadcast %83 : vector<32x1xf32> to vector<32x128xf32>
    %119 = arith.mulf %52, %118 : vector<32x128xf32>
    %c0_40 = arith.constant 0 : index
    %c0_41 = arith.constant 0 : index
    %c0_42 = arith.constant 0 : index
    %120 = vector.load %arg8[%c0_40, %c0_41, %c0_42] : memref<1x32x128xf32, #tpu.memory_space<vmem>>, vector<1x32x128xf32>
    %121 = vector.shape_cast %120 : vector<1x32x128xf32> to vector<32x128xf32>
    %122 = vector.shape_cast %119 : vector<32x128xf32> to vector<1x32x128xf32>
    tpu.vector_store %arg8[%c0_40, %c0_41, %c0_42], %122 {strides = array<i32>} : memref<1x32x128xf32, #tpu.memory_space<vmem>>, vector<1x32x128xf32>,
    %cst_43 = arith.constant 0.000000e+00 : f32
    %123 = vector.broadcast %cst_43 : f32 to vector<8x128xf32>
    %124 = vector.broadcast %117 : f32 to vector<8x128xf32>
    %125 = arith.addf %123, %124 : vector<8x128xf32>
    %c0_44 = arith.constant 0 : index
    %c0_45 = arith.constant 0 : index
    %c0_46 = arith.constant 0 : index
    %126 = vector.load %arg9[%c0_44, %c0_45, %c0_46] : memref<1x8x128xf32, #tpu.memory_space<vmem>>, vector<1x8x128xf32>
    %127 = vector.shape_cast %126 : vector<1x8x128xf32> to vector<8x128xf32>
    %128 = vector.shape_cast %125 : vector<8x128xf32> to vector<1x8x128xf32>
    tpu.vector_store %arg9[%c0_44, %c0_45, %c0_46], %128 {strides = array<i32>} : memref<1x8x128xf32, #tpu.memory_space<vmem>>, vector<1x8x128xf32>,
    return
  }
  func.func @transform_0(%arg0: i32, %arg1: memref<4xi32, #tpu.memory_space<smem>>) -> (i32, i32, i32) {
    %c0_i32 = arith.constant 0 : i32
    %c0_i32_0 = arith.constant 0 : i32
    %c0_i32_1 = arith.constant 0 : i32
    return %arg0, %c0_i32, %c0_i32_0 : i32, i32, i32
  }
  func.func @transform_1(%arg0: i32, %arg1: memref<4xi32, #tpu.memory_space<smem>>) -> (i32, i32, i32) {
    %c0_i32 = arith.constant 0 : i32
    %c0_i32_0 = arith.constant 0 : i32
    %c0_i32_1 = arith.constant 0 : i32
    return %arg0, %c0_i32, %c0_i32_0 : i32, i32, i32
  }
  func.func @transform_2(%arg0: i32, %arg1: memref<4xi32, #tpu.memory_space<smem>>) -> (i32, i32, i32) {
    %c0_i32 = arith.constant 0 : i32
    %c0_i32_0 = arith.constant 0 : i32
    %c0_i32_1 = arith.constant 0 : i32
    return %arg0, %c0_i32, %c0_i32_0 : i32, i32, i32
  }
  func.func @transform_3(%arg0: i32, %arg1: memref<4xi32, #tpu.memory_space<smem>>) -> (i32, i32, i32) {
    %c0_i32 = arith.constant 0 : i32
    %c0_i32_0 = arith.constant 0 : i32
    %c0_i32_1 = arith.constant 0 : i32
    return %arg0, %c0_i32, %c0_i32_0 : i32, i32, i32
  }
  func.func @transform_4(%arg0: i32, %arg1: memref<4xi32, #tpu.memory_space<smem>>) -> (i32, i32, i32) {
    %c0_i32 = arith.constant 0 : i32
    %c0_i32_0 = arith.constant 0 : i32
    %c0_i32_1 = arith.constant 0 : i32
    return %arg0, %c0_i32, %c0_i32_0 : i32, i32, i32
  }
  func.func @transform_5(%arg0: i32, %arg1: memref<4xi32, #tpu.memory_space<smem>>) -> (i32, i32, i32) {
    %c0_i32 = arith.constant 0 : i32
    %c0_i32_0 = arith.constant 0 : i32
    %c0_i32_1 = arith.constant 0 : i32
    return %arg0, %c0_i32, %c0_i32_0 : i32, i32, i32
  }
  func.func @transform_6(%arg0: i32, %arg1: memref<4xi32, #tpu.memory_space<smem>>) -> (i32, i32, i32) {
    %c0_i32 = arith.constant 0 : i32
    %c0_i32_0 = arith.constant 0 : i32
    %c0_i32_1 = arith.constant 0 : i32
    return %arg0, %c0_i32, %c0_i32_0 : i32, i32, i32
  }
  func.func @transform_7(%arg0: i32, %arg1: memref<4xi32, #tpu.memory_space<smem>>) -> (i32, i32, i32) {
    %c0_i32 = arith.constant 0 : i32
    %c0_i32_0 = arith.constant 0 : i32
    %c0_i32_1 = arith.constant 0 : i32
    return %arg0, %c0_i32, %c0_i32_0 : i32, i32, i32
  }
}

module attributes {stable_mosaic.version = 11 : i64} {
  func.func @_attn_predict_kernel(%arg0: memref<32x128xf32, #tpu.memory_space<vmem>>, %arg1: memref<128x128xf32, #tpu.memory_space<vmem>>, %arg2: memref<1x128xf32, #tpu.memory_space<vmem>>, %arg3: memref<1x128xf32, #tpu.memory_space<vmem>>, %arg4: memref<128x128xf32, #tpu.memory_space<vmem>>, %arg5: memref<1x128xf32, #tpu.memory_space<vmem>>, %arg6: memref<1x1xi32, #tpu.memory_space<smem>>, %arg7: memref<16x128xf32, #tpu.memory_space<vmem>>) attributes {dimension_semantics = [], scalar_prefetch = 0 : i64, scratch_operands = 0 : i64, tpu.core_type = #tpu.core_type<tc>} {
    %c0 = arith.constant 0 : index
    %c0_0 = arith.constant 0 : index
    %0 = vector.load %arg0[%c0, %c0_0] : memref<32x128xf32, #tpu.memory_space<vmem>>, vector<32x128xf32>
    %c0_1 = arith.constant 0 : index
    %c0_2 = arith.constant 0 : index
    %1 = vector.load %arg1[%c0_1, %c0_2] : memref<128x128xf32, #tpu.memory_space<vmem>>, vector<128x128xf32>
    %cst = arith.constant dense<0.000000e+00> : vector<32x128xf32>
    %2 = tpu.matmul %0, %1, %cst {dimension_numbers = #tpu.dot_dimension_numbers<[1], [0], [0], [1], [0, 0, 1, 1], [], []>} : vector<32x128xf32>, vector<128x128xf32>, vector<32x128xf32> -> vector<32x128xf32>
    %c0_3 = arith.constant 0 : index
    %c0_4 = arith.constant 0 : index
    %3 = vector.load %arg2[%c0_3, %c0_4] : memref<1x128xf32, #tpu.memory_space<vmem>>, vector<1x128xf32>
    %4 = vector.broadcast %3 : vector<1x128xf32> to vector<32x128xf32>
    %5 = arith.addf %2, %4 : vector<32x128xf32>
    %6 = math.tanh %5 : vector<32x128xf32>
    %c0_5 = arith.constant 0 : index
    %c0_6 = arith.constant 0 : index
    %7 = memref.load %arg6[%c0_5, %c0_6] : memref<1x1xi32, #tpu.memory_space<smem>>
    %8 = tpu.iota {dimensions = array<i32: 0>} : vector<16x1xi32>
    %9 = vector.broadcast %7 : i32 to vector<16x1xi32>
    %10 = arith.cmpi slt, %8, %9 : vector<16x1xi32>
    %11 = arith.extui %10 : vector<16x1xi1> to vector<16x1xi32>
    %12 = arith.sitofp %11 : vector<16x1xi32> to vector<16x1xf32>
    %13 = arith.sitofp %7 : i32 to f32
    %cst_7 = arith.constant 1.000000e+00 : f32
    %14 = arith.divf %cst_7, %13 : f32
    %15 = vector.extract_strided_slice %6 {offsets = [0, 0], sizes = [16, 128], strides = [1, 1]} : vector<32x128xf32> to vector<16x128xf32>
    %16 = vector.broadcast %12 : vector<16x1xf32> to vector<16x128xf32>
    %17 = arith.mulf %15, %16 : vector<16x128xf32>
    %cst_8 = arith.constant dense<0.000000e+00> : vector<128xf32>
    %18 = vector.multi_reduction <add>, %17, %cst_8 [0] : vector<16x128xf32> to vector<128xf32>
    %19 = vector.shape_cast %18 : vector<128xf32> to vector<1x128xf32>
    %20 = vector.broadcast %14 : f32 to vector<1x128xf32>
    %21 = arith.mulf %19, %20 : vector<1x128xf32>
    %c0_9 = arith.constant 0 : index
    %c0_10 = arith.constant 0 : index
    %22 = vector.load %arg3[%c0_9, %c0_10] : memref<1x128xf32, #tpu.memory_space<vmem>>, vector<1x128xf32>
    %23 = arith.mulf %21, %22 : vector<1x128xf32>
    %cst_11 = arith.constant dense<0.000000e+00> : vector<1xf32>
    %24 = vector.multi_reduction <add>, %23, %cst_11 [1] : vector<1x128xf32> to vector<1xf32>
    %25 = vector.shape_cast %24 : vector<1xf32> to vector<1x1xf32>
    %26 = vector.extract_strided_slice %6 {offsets = [16, 0], sizes = [16, 128], strides = [1, 1]} : vector<32x128xf32> to vector<16x128xf32>
    %27 = vector.broadcast %12 : vector<16x1xf32> to vector<16x128xf32>
    %28 = arith.mulf %26, %27 : vector<16x128xf32>
    %cst_12 = arith.constant dense<0.000000e+00> : vector<128xf32>
    %29 = vector.multi_reduction <add>, %28, %cst_12 [0] : vector<16x128xf32> to vector<128xf32>
    %30 = vector.shape_cast %29 : vector<128xf32> to vector<1x128xf32>
    %31 = vector.broadcast %14 : f32 to vector<1x128xf32>
    %32 = arith.mulf %30, %31 : vector<1x128xf32>
    %c0_13 = arith.constant 0 : index
    %c0_14 = arith.constant 0 : index
    %33 = vector.load %arg3[%c0_13, %c0_14] : memref<1x128xf32, #tpu.memory_space<vmem>>, vector<1x128xf32>
    %34 = arith.mulf %32, %33 : vector<1x128xf32>
    %cst_15 = arith.constant dense<0.000000e+00> : vector<1xf32>
    %35 = vector.multi_reduction <add>, %34, %cst_15 [1] : vector<1x128xf32> to vector<1xf32>
    %36 = vector.shape_cast %35 : vector<1xf32> to vector<1x1xf32>
    %37 = tpu.concatenate %25, %36 in 0 : vector<1x1xf32>, vector<1x1xf32> -> vector<2x1xf32>
    %cst_16 = arith.constant dense<0xFF800000> : vector<1xf32>
    %38 = vector.multi_reduction <maximumf>, %37, %cst_16 [0] : vector<2x1xf32> to vector<1xf32>
    %39 = vector.shape_cast %38 : vector<1xf32> to vector<1x1xf32>
    %40 = vector.broadcast %39 : vector<1x1xf32> to vector<2x1xf32>
    %41 = arith.subf %37, %40 : vector<2x1xf32>
    %42 = math.exp %41 : vector<2x1xf32>
    %cst_17 = arith.constant dense<0.000000e+00> : vector<1xf32>
    %43 = vector.multi_reduction <add>, %42, %cst_17 [0] : vector<2x1xf32> to vector<1xf32>
    %44 = vector.shape_cast %43 : vector<1xf32> to vector<1x1xf32>
    %45 = vector.broadcast %44 : vector<1x1xf32> to vector<2x1xf32>
    %46 = arith.divf %42, %45 : vector<2x1xf32>
    %cst_18 = arith.constant 0.000000e+00 : f32
    %47 = vector.broadcast %cst_18 : f32 to vector<16x128xf32>
    %48 = vector.extract_strided_slice %46 {offsets = [0, 0], sizes = [1, 1], strides = [1, 1]} : vector<2x1xf32> to vector<1x1xf32>
    %49 = vector.extract_strided_slice %0 {offsets = [0, 0], sizes = [16, 128], strides = [1, 1]} : vector<32x128xf32> to vector<16x128xf32>
    %50 = vector.broadcast %48 : vector<1x1xf32> to vector<16x128xf32>
    %51 = arith.mulf %50, %49 : vector<16x128xf32>
    %52 = arith.addf %47, %51 : vector<16x128xf32>
    %53 = vector.extract_strided_slice %46 {offsets = [1, 0], sizes = [1, 1], strides = [1, 1]} : vector<2x1xf32> to vector<1x1xf32>
    %54 = vector.extract_strided_slice %0 {offsets = [16, 0], sizes = [16, 128], strides = [1, 1]} : vector<32x128xf32> to vector<16x128xf32>
    %55 = vector.broadcast %53 : vector<1x1xf32> to vector<16x128xf32>
    %56 = arith.mulf %55, %54 : vector<16x128xf32>
    %57 = arith.addf %52, %56 : vector<16x128xf32>
    %c0_19 = arith.constant 0 : index
    %c0_20 = arith.constant 0 : index
    %58 = vector.load %arg4[%c0_19, %c0_20] : memref<128x128xf32, #tpu.memory_space<vmem>>, vector<128x128xf32>
    %cst_21 = arith.constant dense<0.000000e+00> : vector<16x128xf32>
    %59 = tpu.matmul %57, %58, %cst_21 {dimension_numbers = #tpu.dot_dimension_numbers<[1], [0], [0], [1], [0, 0, 1, 1], [], []>} : vector<16x128xf32>, vector<128x128xf32>, vector<16x128xf32> -> vector<16x128xf32>
    %c0_22 = arith.constant 0 : index
    %c0_23 = arith.constant 0 : index
    %60 = vector.load %arg5[%c0_22, %c0_23] : memref<1x128xf32, #tpu.memory_space<vmem>>, vector<1x128xf32>
    %61 = vector.broadcast %60 : vector<1x128xf32> to vector<16x128xf32>
    %62 = arith.addf %59, %61 : vector<16x128xf32>
    %c0_24 = arith.constant 0 : index
    %c0_25 = arith.constant 0 : index
    %63 = vector.load %arg7[%c0_24, %c0_25] : memref<16x128xf32, #tpu.memory_space<vmem>>, vector<16x128xf32>
    tpu.vector_store %arg7[%c0_24, %c0_25], %62 {strides = array<i32>} : memref<16x128xf32, #tpu.memory_space<vmem>>, vector<16x128xf32>,
    return
  }
}

</mosaic_0001>

<llo_original>
// kernel: my_model_forward.4
$region0: #{my_model_forward.4}
  #allocation0 [shape = 'u32[]', space=smem, size = 0x4, offset = 0x4, fixed_abs, tag = 'smem constant byte address 0x4 - core index']
  #allocation1 [shape = 'u32[72,128]{1,0:T(1,128)}', space=vmem, size = 0x9000, scoped, tag = 'internal scratch']
  #allocation2 [shape = 's32[1]{0}', space=sflag, size = 0x4, scoped, tag = 'scoped memory for my_model_forward.4']
  #allocation3 [shape = 'u8[512]{0}', space=smem, size = 0x200, scoped, tag = 'prefetched SMEM operand 0']
  %s0 = inlined_call_operand.hbm [shape: s32[3], index: 0, kind: input, shape index: {}]
  %s1 = inlined_call_operand.hbm [shape: f32[3,16,128], index: 1, kind: input, shape index: {}]
  %s2 = inlined_call_operand.hbm [shape: f32[3,128,128], index: 2, kind: input, shape index: {}]
  %s3 = inlined_call_operand.hbm [shape: f32[3,1,128], index: 3, kind: input, shape index: {}]
  %s4 = inlined_call_operand.vmem [shape: f32[3,16,128], index: 4, kind: output, shape index: {}]
  %s5 = sld [smem:[#allocation0]]
  $region57: #{my_model_forward.4} parent=0
    _
  %s7 = ssub.s32 1, %s5
  %s8 = scalar_select 0, %s7, %s5
  %s10 = sshll.u32 %s0, 4
  %s11 = int_to_ptr.hbm [resolvable:$true] %s10
  %13 = dma.hbm_to_smem %s11, 16, [#allocation3], [#allocation2]
  %15 = dma.done [#allocation2], 16
  %16 = sfence
  $region1: #{my_model_forward.4} parent=0
    #allocation4 [shape = 'u8[16384]{0}', space=vmem, size = 0x4000, scoped, tag = 'input window, operand 1']
    #allocation5 [shape = 's32[2]{0}', space=sflag, size = 0x8, scoped, tag = 'scoped memory for my_model_forward.4']
    #allocation6 [shape = 'u8[131072]{0}', space=vmem, size = 0x20000, scoped, tag = 'input window, operand 2']
    #allocation7 [shape = 's32[2]{0}', space=sflag, size = 0x8, scoped, tag = 'scoped memory for my_model_forward.4']
    #allocation8 [shape = 'u8[1024]{0}', space=vmem, size = 0x400, scoped, tag = 'input window, operand 3']
    %17 = vsyncpa [#allocation5], 0
    %s18 = scalar_lea.sflag [#allocation5], 1
    %19 = vsyncpa %s18, 0
    %20 = vsyncpa [#allocation7], 0
    %s21 = scalar_lea.sflag [#allocation7], 1
    %22 = vsyncpa %s21, 0
    loop: start=0, step=1, limit=5
    $region2: #{my_model_forward.4} parent=1 // loop_pre_header
      _
    $region3: #{my_model_forward.4} parent=1 // loop_header
      %s24 = sphi 0, %s28
      %p25 = scmp.ge.s32.totalorder %s24, 5
      %s34 = sphi 0, %s36
      %s37 = sphi 0, %s34
      %s38 = sphi 0, %s37
      %s54 = sphi 0, %s38
      %s60 = sphi 0, %s62
      %s63 = sphi 0, %s60
      %s64 = sphi 0, %s63
      %s80 = sphi 0, %s64
      %s86 = sphi 0, %s88
      %s89 = sphi 0, %s86
      %s90 = sphi 0, %s89
      %s106 = sphi 0, %s90
      %s112 = sphi 0, %s114
      %s115 = sphi 0, %s112
      %s116 = sphi 0, %s115
      %s132 = sphi 0, %s116
    $region4: #{my_model_forward.4} parent=1 // loop_header_branch
      %27 = sbr.rel (%p25) target = $region8
    $region5: #{my_model_forward.4} parent=1 // loop_body
      %s29 = ssub.s32 %s24, 1
      %s30 = ssub.s32 %s24, 2
      %s31 = sadd.s32 %s24, 1
      %s32 = ssub.s32 %s24, %s31
      %p33 = scmp.eq.s32.totalorder %s32, 0
      %s35 = sadd.s32 %s34, 1
      %s36 = scalar_select %p33, %s34, %s35
      %p39 = pneg %p33
      %p40 = scmp.eq.s32.totalorder %s24, 2
      %p41 = por %p39, %p40
      %p42 = scmp.ne.s32.totalorder %s34, %s37
      %p43 = scmp.eq.s32.totalorder %s24, 0
      %p44 = por %p42, %p43
      %p45 = scmp.ne.s32.totalorder %s34, %s37
      %p46 = scmp.eq.s32.totalorder %s29, 2
      %p47 = por %p45, %p46
      %p48 = scmp.ne.s32.totalorder %s37, %s38
      %p49 = scmp.eq.s32.totalorder %s29, 0
      %p50 = por %p48, %p49
      %p51 = scmp.ne.s32.totalorder %s37, %s38
      %p52 = scmp.eq.s32.totalorder %s30, 2
      %p53 = por %p51, %p52
      %p55 = scmp.ne.s32.totalorder %s38, %s54
      %p56 = scmp.eq.s32.totalorder %s30, 0
      %p57 = por %p55, %p56
      %s58 = ssub.s32 %s24, %s31
      %p59 = scmp.eq.s32.totalorder %s58, 0
      %s61 = sadd.s32 %s60, 1
      %s62 = scalar_select %p59, %s60, %s61
      %p65 = pneg %p59
      %p66 = scmp.eq.s32.totalorder %s24, 2
      %p67 = por %p65, %p66
      %p68 = scmp.ne.s32.totalorder %s60, %s63
      %p69 = scmp.eq.s32.totalorder %s24, 0
      %p70 = por %p68, %p69
      %p71 = scmp.ne.s32.totalorder %s60, %s63
      %p72 = scmp.eq.s32.totalorder %s29, 2
      %p73 = por %p71, %p72
      %p74 = scmp.ne.s32.totalorder %s63, %s64
      %p75 = scmp.eq.s32.totalorder %s29, 0
      %p76 = por %p74, %p75
      %p77 = scmp.ne.s32.totalorder %s63, %s64
      %p78 = scmp.eq.s32.totalorder %s30, 2
      %p79 = por %p77, %p78
      %p81 = scmp.ne.s32.totalorder %s64, %s80
      %p82 = scmp.eq.s32.totalorder %s30, 0
      %p83 = por %p81, %p82
      %s84 = ssub.s32 %s24, %s31
      %p85 = scmp.eq.s32.totalorder %s84, 0
      %s87 = sadd.s32 %s86, 1
      %s88 = scalar_select %p85, %s86, %s87
      %p91 = pneg %p85
      %p92 = scmp.eq.s32.totalorder %s24, 2
      %p93 = por %p91, %p92
      %p94 = scmp.ne.s32.totalorder %s86, %s89
      %p95 = scmp.eq.s32.totalorder %s24, 0
      %p96 = por %p94, %p95
      %p97 = scmp.ne.s32.totalorder %s86, %s89
      %p98 = scmp.eq.s32.totalorder %s29, 2
      %p99 = por %p97, %p98
      %p100 = scmp.ne.s32.totalorder %s89, %s90
      %p101 = scmp.eq.s32.totalorder %s29, 0
      %p102 = por %p100, %p101
      %p103 = scmp.ne.s32.totalorder %s89, %s90
      %p104 = scmp.eq.s32.totalorder %s30, 2
      %p105 = por %p103, %p104
      %p107 = scmp.ne.s32.totalorder %s90, %s106
      %p108 = scmp.eq.s32.totalorder %s30, 0
      %p109 = por %p107, %p108
      %s110 = ssub.s32 %s24, %s31
      %p111 = scmp.eq.s32.totalorder %s110, 0
      %s113 = sadd.s32 %s112, 1
      %s114 = scalar_select %p111, %s112, %s113
      %p117 = pneg %p111
      %p118 = scmp.eq.s32.totalorder %s24, 2
      %p119 = por %p117, %p118
      %p120 = scmp.ne.s32.totalorder %s112, %s115
      %p121 = scmp.eq.s32.totalorder %s24, 0
      %p122 = por %p120, %p121
      %p123 = scmp.ne.s32.totalorder %s112, %s115
      %p124 = scmp.eq.s32.totalorder %s29, 2
      %p125 = por %p123, %p124
      %p126 = scmp.ne.s32.totalorder %s115, %s116
      %p127 = scmp.eq.s32.totalorder %s29, 0
      %p128 = por %p126, %p127
      %p129 = scmp.ne.s32.totalorder %s115, %s116
      %p130 = scmp.eq.s32.totalorder %s30, 2
      %p131 = por %p129, %p130
      %p133 = scmp.ne.s32.totalorder %s116, %s132
      %p134 = scmp.eq.s32.totalorder %s30, 0
      %p135 = por %p133, %p134
      %p136 = scmp.le.s32.totalorder 1, %s24
      %p137 = scmp.lt.s32.totalorder %s24, 4
      %p138 = pnand %p136, %p137
      %p139 = pneg %p138
      // Predicated region
      $region9: #{my_model_forward.4} parent=5 // pred_check
        _
      $region10: #{my_model_forward.4} parent=5 // pred_check_branch
        %141 = sbr.rel (%p138) target = $region12
      $region11: #{my_model_forward.4} parent=5 // pred_region
        %s142 = ssub.s32 %s24, 1
      $region12: #{my_model_forward.4} parent=5 // pred_fallthru
        _
      %p143 = scmp.lt.s32.totalorder %s24, 3
      // Predicated region
      $region13: #{my_model_forward.4} parent=5 // pred_check
        %p144 = pneg %p143
      $region14: #{my_model_forward.4} parent=5 // pred_check_branch
        %146 = sbr.rel (%p144) target = $region16
      $region15: #{my_model_forward.4} parent=5 // pred_region
        // Predicated region
        $region17: #{my_model_forward.4} parent=15 // pred_check
          %p147 = pneg %p44
        $region18: #{my_model_forward.4} parent=15 // pred_check_branch
          %149 = sbr.rel (%p147) target = $region20
        $region19: #{my_model_forward.4} parent=15 // pred_region
          %s150 = sand.u32 %s34, 1
          %s151 = scalar_lea.sflag [#allocation5], %s150
          %s152 = sand.u32 %s34, 1
          %s153 = smul.addr %s152, 16
          %s154 = scalar_lea.vmem [#allocation4], %s153
          %156 = vsyncadd %s151, 0
          %s157 = smul.addr %s24, 2
          %s158 = smul.addr %s157, 8
          %s159 = scalar_lea.hbm %s1, %s158
          %s160 = sshll.u32 %s159, 4
          %s161 = int_to_ptr.hbm [resolvable:$true] %s160
          %s162 = sshll.u32 %s154, 4
          %s163 = int_to_ptr.vmem [resolvable:$true] %s162
          %168 = dma.hbm_to_vmem [thread:$0]  %s161, 256, %s163, %s151, 128, 128, 8
        $region20: #{my_model_forward.4} parent=15 // pred_fallthru
          _
        // Predicated region
        $region21: #{my_model_forward.4} parent=15 // pred_check
          %p169 = pneg %p70
        $region22: #{my_model_forward.4} parent=15 // pred_check_branch
          %171 = sbr.rel (%p169) target = $region24
        $region23: #{my_model_forward.4} parent=15 // pred_region
          %s172 = sand.u32 %s24, 1
          %s173 = scalar_lea.sflag [#allocation7], %s172
          %s174 = sand.u32 %s60, 1
          %s175 = smul.addr %s174, 128
          %s176 = scalar_lea.vmem [#allocation6], %s175
          %178 = vsyncadd %s173, 0
          %s179 = smul.addr %s24, 16
          %s180 = smul.addr %s179, 8
          %s181 = scalar_lea.hbm %s2, %s180
          %s182 = sshll.u32 %s181, 4
          %s183 = int_to_ptr.hbm [resolvable:$true] %s182
          %s184 = sshll.u32 %s176, 4
          %s185 = int_to_ptr.vmem [resolvable:$true] %s184
          %190 = dma.hbm_to_vmem [thread:$0]  %s183, 2048, %s185, %s173, 128, 128, 8
        $region24: #{my_model_forward.4} parent=15 // pred_fallthru
          _
        // Predicated region
        $region25: #{my_model_forward.4} parent=15 // pred_check
          %p191 = pneg %p96
        $region26: #{my_model_forward.4} parent=15 // pred_check_branch
          %193 = sbr.rel (%p191) target = $region28
        $region27: #{my_model_forward.4} parent=15 // pred_region
          %s194 = sand.u32 %s24, 1
          %s195 = scalar_lea.sflag [#allocation7], %s194
          %s196 = sand.u32 %s86, 1
          %s197 = scalar_lea.vmem [#allocation8], %s196
          %199 = vsyncadd %s195, 0
          %s200 = scalar_lea.hbm %s3, %s24
          %s202 = sshll.u32 %s200, 4
          %s203 = int_to_ptr.hbm [resolvable:$true] %s202
          %s204 = sshll.u32 %s197, 4
          %s205 = int_to_ptr.vmem [resolvable:$true] %s204
          %207 = dma.hbm_to_vmem [thread:$0]  %s203, 16, %s205, %s195
        $region28: #{my_model_forward.4} parent=15 // pred_fallthru
          _
      $region16: #{my_model_forward.4} parent=5 // pred_fallthru
        _
      %p208 = scmp.le.s32.totalorder 1, %s24
      %p209 = scmp.lt.s32.totalorder %s24, 4
      %p210 = pnand %p208, %p209
      %p211 = pneg %p210
      // Predicated region
      $region29: #{my_model_forward.4} parent=5 // pred_check
        _
      $region30: #{my_model_forward.4} parent=5 // pred_check_branch
        %213 = sbr.rel (%p210) target = $region32
      $region31: #{my_model_forward.4} parent=5 // pred_region
        %s214 = ssub.s32 %s24, 1
        %s215 = sand.u32 %s37, 1
        %s216 = scalar_lea.sflag [#allocation5], %s215
        %s217 = sand.u32 %s37, 1
        %s218 = smul.addr %s217, 16
        %s219 = scalar_lea.vmem [#allocation4], %s218
        // Predicated region
        $region33: #{my_model_forward.4} parent=31 // pred_check
          %p220 = pneg %p50
        $region34: #{my_model_forward.4} parent=31 // pred_check_branch
          %222 = sbr.rel (%p220) target = $region36
        $region35: #{my_model_forward.4} parent=31 // pred_region
          %224 = dma.done %s216, 256
        $region36: #{my_model_forward.4} parent=31 // pred_fallthru
          _
        %s225 = sand.u32 %s29, 1
        %s226 = scalar_lea.sflag [#allocation7], %s225
        %s227 = sand.u32 %s63, 1
        %s228 = smul.addr %s227, 128
        %s229 = scalar_lea.vmem [#allocation6], %s228
        // Predicated region
        $region37: #{my_model_forward.4} parent=31 // pred_check
          %p230 = pneg %p76
        $region38: #{my_model_forward.4} parent=31 // pred_check_branch
          %232 = sbr.rel (%p230) target = $region40
        $region39: #{my_model_forward.4} parent=31 // pred_region
          %234 = dma.done %s226, 2048
        $region40: #{my_model_forward.4} parent=31 // pred_fallthru
          _
        %s235 = sand.u32 %s29, 1
        %s236 = scalar_lea.sflag [#allocation7], %s235
        %s237 = sand.u32 %s89, 1
        %s238 = scalar_lea.vmem [#allocation8], %s237
        // Predicated region
        $region41: #{my_model_forward.4} parent=31 // pred_check
          %p239 = pneg %p102
        $region42: #{my_model_forward.4} parent=31 // pred_check_branch
          %241 = sbr.rel (%p239) target = $region44
        $region43: #{my_model_forward.4} parent=31 // pred_region
          %243 = dma.done %s236, 16
        $region44: #{my_model_forward.4} parent=31 // pred_fallthru
          _
        %s244 = sand.u32 %s37, 1
        %s245 = scalar_lea.sflag [#allocation5], %s244
        %s246 = sand.u32 %s37, 1
        %s247 = smul.addr %s246, 16
        %s248 = scalar_lea.vmem [#allocation4], %s247
        %p249 = pneg %p50
        %p250 = pneg %p47
        %s251 = sand.u32 %s29, 1
        %s252 = scalar_lea.sflag [#allocation7], %s251
        %s253 = sand.u32 %s63, 1
        %s254 = smul.addr %s253, 128
        %s255 = scalar_lea.vmem [#allocation6], %s254
        %p256 = pneg %p76
        %p257 = pneg %p73
        %s258 = sand.u32 %s29, 1
        %s259 = scalar_lea.sflag [#allocation7], %s258
        %s260 = sand.u32 %s89, 1
        %s261 = scalar_lea.vmem [#allocation8], %s260
        %p262 = pneg %p102
        %p263 = pneg %p99
        %p264 = pneg %p128
        %p265 = pneg %p125
        %p266 = scmp.lt.s32.totalorder %s29, 2
        %s267 = scalar_select %p266, %s29, 2
        %s268 = smul.addr %s267, 2
        %s269 = smul.addr %s268, 8
        %s270 = scalar_lea.vmem %s4, %s269
        %p271 = scmp.lt.s32.totalorder %s29, 2
        %s272 = scalar_select %p271, %s29, 2
        %s273 = smul.addr %s272, 2
        %s274 = smul.addr %s273, 8
        %s275 = scalar_lea.vmem %s4, %s274
        %s276 = sld [smem:[#allocation3 + %s29]]
        %v277 = vld [vmem:[%s219] sm:$0xff]
        %v278 = vld [vmem:[%s219 + $0x8] sm:$0xff]
        %v279 = vld [vmem:[%s229] sm:$0xff]
        %v280 = vld [vmem:[%s229 + $0x8] sm:$0xff]
        %v281 = vld [vmem:[%s229 + $0x10] sm:$0xff]
        %v282 = vld [vmem:[%s229 + $0x18] sm:$0xff]
        %v283 = vld [vmem:[%s229 + $0x20] sm:$0xff]
        %v284 = vld [vmem:[%s229 + $0x28] sm:$0xff]
        %v285 = vld [vmem:[%s229 + $0x30] sm:$0xff]
        %v286 = vld [vmem:[%s229 + $0x38] sm:$0xff]
        %v287 = vld [vmem:[%s229 + $0x40] sm:$0xff]
        %v288 = vld [vmem:[%s229 + $0x48] sm:$0xff]
        %v289 = vld [vmem:[%s229 + $0x50] sm:$0xff]
        %v290 = vld [vmem:[%s229 + $0x58] sm:$0xff]
        %v291 = vld [vmem:[%s229 + $0x60] sm:$0xff]
        %v292 = vld [vmem:[%s229 + $0x68] sm:$0xff]
        %v293 = vld [vmem:[%s229 + $0x70] sm:$0xff]
        %v294 = vld [vmem:[%s229 + $0x78] sm:$0xff]
        %v295 = vld [vmem:[%s238] sm:$0x1]
        %v297 = vperm.slane %v295, 0
        %299 = vmatpush.msra.mxu0 %v294
        %300 = vmatpush.msra.mxu0 %v293
        %301 = vmatpush.msra.mxu0 %v292
        %302 = vmatpush.msra.mxu0 %v291
        %303 = vmatpush.msra.mxu0 %v290
        %304 = vmatpush.msra.mxu0 %v289
        %305 = vmatpush.msra.mxu0 %v288
        %306 = vmatpush.msra.mxu0 %v287
        %307 = vmatpush.msra.mxu0 %v286
        %308 = vmatpush.msra.mxu0 %v285
        %309 = vmatpush.msra.mxu0 %v284
        %310 = vmatpush.msra.mxu0 %v283
        %311 = vmatpush.msra.mxu0 %v282
        %312 = vmatpush.msra.mxu0 %v281
        %313 = vmatpush.msra.mxu0 %v280
        %314 = vmatpush.msra.mxu0 %v279
        %315 = vmatmul.f32.gmra.mxu0 %v277
        %v316 = vpop.f32.mrf.mxu0
        %v317 = vadd.f32 %v297, %v316
        %318 = vmatmul.f32.gmra.mxu0 %v278
        %v319 = vpop.f32.mrf.mxu0
        %v320 = vadd.f32 %v297, %v319
        %321 = vdwg.mxu0
        %v322 = vlaneseq
        %v323 = vshrl.u32 %v322, 7
        %v324 = vadd.s32 %v323, 8
        %v325 = vstv %s276
        %vm326 = vcmp.lt.s32.totalorder %v323, %v325
        %vm327 = vcmp.lt.s32.totalorder %v324, %v325
        %v328 = vsel %vm326, 1, 0
        %v329 = vsel %vm327, 1, 0
        %vm330 = vcmp.eq.s32.totalorder %v328, 1
        %vm331 = vcmp.eq.s32.totalorder %v329, 1
        %v332 = vsel %vm330, %v317, 0.0
        %v333 = vsel %vm331, %v320, 0.0
        %334 = vst [vmem:[%s275] sm:$0xff] %v332
        %335 = vst [vmem:[%s275 + $0x8] sm:$0xff] %v333
        %p336 = scmp.lt.s32.totalorder %s29, 2
        %s337 = scalar_select %p336, %s29, 2
        %s338 = smul.addr %s337, 2
        %s339 = smul.addr %s338, 8
        %s340 = scalar_lea.vmem %s4, %s339
        // Predicated region
        $region45: #{my_model_forward.4} parent=31 // pred_check
          %p341 = pneg %p125
        $region46: #{my_model_forward.4} parent=31 // pred_check_branch
          %343 = sbr.rel (%p341) target = $region48
        $region47: #{my_model_forward.4} parent=31 // pred_region
          _
        $region48: #{my_model_forward.4} parent=31 // pred_fallthru
          _
      $region32: #{my_model_forward.4} parent=5 // pred_fallthru
        _
      %p344 = scmp.le.s32.totalorder 2, %s24
      // Predicated region
      $region49: #{my_model_forward.4} parent=5 // pred_check
        %p345 = pneg %p344
      $region50: #{my_model_forward.4} parent=5 // pred_check_branch
        %347 = sbr.rel (%p345) target = $region52
      $region51: #{my_model_forward.4} parent=5 // pred_region
        %s348 = ssub.s32 %s24, 2
        // Predicated region
        $region53: #{my_model_forward.4} parent=51 // pred_check
          %p349 = pneg %p131
        $region54: #{my_model_forward.4} parent=51 // pred_check_branch
          %351 = sbr.rel (%p349) target = $region56
        $region55: #{my_model_forward.4} parent=51 // pred_region
          %p352 = scmp.lt.s32.totalorder %s30, 2
          %s353 = scalar_select %p352, %s30, 2
          %s354 = smul.addr %s353, 2
          %s355 = smul.addr %s354, 8
          %s356 = scalar_lea.vmem %s4, %s355
        $region56: #{my_model_forward.4} parent=51 // pred_fallthru
          _
      $region52: #{my_model_forward.4} parent=5 // pred_fallthru
        _
    $region6: #{my_model_forward.4} parent=1 // loop_footer
      %s28 = sadd.s32 1, %s24
    $region7: #{my_model_forward.4} parent=1 // loop_footer_branch
      %23 = sbr.rel target = $region3
    $region8: #{my_model_forward.4} parent=1 // loop_exit
      _
    %357 = vsyncpa [#allocation5], 1
    %s358 = scalar_lea.sflag [#allocation5], 1
    %359 = vsyncpa %s358, 1
    %360 = vsyncpa [#allocation7], 1
    %s361 = scalar_lea.sflag [#allocation7], 1
    %362 = vsyncpa %s361, 1

// kernel: my_model_forward.5
$region0: #{my_model_forward.5}
  #allocation0 [shape = 'u32[]', space=smem, size = 0x4, offset = 0x4, fixed_abs, tag = 'smem constant byte address 0x4 - core index']
  #allocation1 [shape = 'u32[72,128]{1,0:T(1,128)}', space=vmem, size = 0x9000, scoped, tag = 'internal scratch']
  #allocation2 [shape = 's32[1]{0}', space=sflag, size = 0x4, scoped, tag = 'scoped memory for my_model_forward.5']
  #allocation3 [shape = 'u8[512]{0}', space=smem, size = 0x200, scoped, tag = 'prefetched SMEM operand 0']
  %s0 = inlined_call_operand.vmem [shape: s32[4], index: 0, kind: input, shape index: {}]
  %s1 = inlined_call_operand.vmem [shape: f32[4,32,32], index: 1, kind: input, shape index: {}]
  %s2 = inlined_call_operand.hbm [shape: f32[4,32,32], index: 2, kind: input, shape index: {}]
  %s3 = inlined_call_operand.vmem [shape: f32[4,32,128], index: 3, kind: input, shape index: {}]
  %s4 = inlined_call_operand.hbm [shape: f32[4,128,128], index: 4, kind: input, shape index: {}]
  %s5 = inlined_call_operand.hbm [shape: f32[4,1,128], index: 5, kind: input, shape index: {}]
  %s6 = inlined_call_operand.hbm [shape: f32[4,1,128], index: 6, kind: input, shape index: {}]
  %s7 = inlined_call_operand.vmem [shape: f32[4,32,128], index: 7, kind: output, shape index: {0}]
  %s8 = inlined_call_operand.hbm [shape: f32[4,8,128], index: 8, kind: output, shape index: {1}]
  %9 = xla_tuple %s7, %s8
  %s10 = sld [smem:[#allocation0]]
  $region81: #{my_model_forward.5} parent=0
    _
  %s12 = ssub.s32 1, %s10
  %s13 = scalar_select 0, %s12, %s10
  %s15 = sshll.u32 %s0, 4
  %s16 = int_to_ptr.vmem [resolvable:$true] %s15
  %18 = dma.vmem_to_smem %s16, 16, [#allocation3], [#allocation2]
  %20 = dma.done [#allocation2], 16
  %21 = sfence
  $region1: #{my_model_forward.5} parent=0
    #allocation4 [shape = 'u8[32768]{0}', space=vmem, size = 0x8000, scoped, tag = 'input window, operand 2']
    #allocation5 [shape = 's32[2]{0}', space=sflag, size = 0x8, scoped, tag = 'scoped memory for my_model_forward.5']
    #allocation6 [shape = 's32[2]{0}', space=sflag, size = 0x8, scoped, tag = 'scoped memory for my_model_forward.5']
    #allocation7 [shape = 'u8[131072]{0}', space=vmem, size = 0x20000, scoped, tag = 'input window, operand 4']
    #allocation8 [shape = 's32[2]{0}', space=sflag, size = 0x8, scoped, tag = 'scoped memory for my_model_forward.5']
    #allocation9 [shape = 'u8[1024]{0}', space=vmem, size = 0x400, scoped, tag = 'input window, operand 5']
    #allocation10 [shape = 'u8[1024]{0}', space=vmem, size = 0x400, scoped, tag = 'input window, operand 6']
    #allocation11 [shape = 's32[2]{0}', space=sflag, size = 0x8, scoped, tag = 'scoped memory for my_model_forward.5']
    #allocation12 [shape = 'u8[8192]{0}', space=vmem, size = 0x2000, scoped, tag = 'output window, operand 1']
    %22 = vsyncpa [#allocation5], 0
    %s23 = scalar_lea.sflag [#allocation5], 1
    %24 = vsyncpa %s23, 0
    %25 = vsyncpa [#allocation8], 0
    %s26 = scalar_lea.sflag [#allocation8], 1
    %27 = vsyncpa %s26, 0
    %28 = vsyncpa [#allocation11], 0
    %s29 = scalar_lea.sflag [#allocation11], 1
    %30 = vsyncpa %s29, 0
    %31 = vsyncpa [#allocation6], 0
    %s32 = scalar_lea.sflag [#allocation6], 1
    %33 = vsyncpa %s32, 0
    loop: start=0, step=1, limit=6
    $region2: #{my_model_forward.5} parent=1 // loop_pre_header
      _
    $region3: #{my_model_forward.5} parent=1 // loop_header
      %s35 = sphi 0, %s39
      %p36 = scmp.ge.s32.totalorder %s35, 6
      %s45 = sphi 0, %s47
      %s48 = sphi 0, %s45
      %s49 = sphi 0, %s48
      %s65 = sphi 0, %s49
      %s71 = sphi 0, %s73
      %s74 = sphi 0, %s71
      %s75 = sphi 0, %s74
      %s91 = sphi 0, %s75
      %s97 = sphi 0, %s99
      %s100 = sphi 0, %s97
      %s101 = sphi 0, %s100
      %s117 = sphi 0, %s101
      %s123 = sphi 0, %s125
      %s126 = sphi 0, %s123
      %s127 = sphi 0, %s126
      %s143 = sphi 0, %s127
      %s149 = sphi 0, %s151
      %s152 = sphi 0, %s149
      %s153 = sphi 0, %s152
      %s169 = sphi 0, %s153
      %s175 = sphi 0, %s177
      %s178 = sphi 0, %s175
      %s179 = sphi 0, %s178
      %s195 = sphi 0, %s179
      %s201 = sphi 0, %s203
      %s204 = sphi 0, %s201
      %s205 = sphi 0, %s204
      %s221 = sphi 0, %s205
      %s227 = sphi 0, %s229
      %s230 = sphi 0, %s227
      %s231 = sphi 0, %s230
      %s247 = sphi 0, %s231
    $region4: #{my_model_forward.5} parent=1 // loop_header_branch
      %38 = sbr.rel (%p36) target = $region8
    $region5: #{my_model_forward.5} parent=1 // loop_body
      %s40 = ssub.s32 %s35, 1
      %s41 = ssub.s32 %s35, 2
      %s42 = sadd.s32 %s35, 1
      %s43 = ssub.s32 %s35, %s42
      %p44 = scmp.eq.s32.totalorder %s43, 0
      %s46 = sadd.s32 %s45, 1
      %s47 = scalar_select %p44, %s45, %s46
      %p50 = pneg %p44
      %p51 = scmp.eq.s32.totalorder %s35, 3
      %p52 = por %p50, %p51
      %p53 = scmp.ne.s32.totalorder %s45, %s48
      %p54 = scmp.eq.s32.totalorder %s35, 0
      %p55 = por %p53, %p54
      %p56 = scmp.ne.s32.totalorder %s45, %s48
      %p57 = scmp.eq.s32.totalorder %s40, 3
      %p58 = por %p56, %p57
      %p59 = scmp.ne.s32.totalorder %s48, %s49
      %p60 = scmp.eq.s32.totalorder %s40, 0
      %p61 = por %p59, %p60
      %p62 = scmp.ne.s32.totalorder %s48, %s49
      %p63 = scmp.eq.s32.totalorder %s41, 3
      %p64 = por %p62, %p63
      %p66 = scmp.ne.s32.totalorder %s49, %s65
      %p67 = scmp.eq.s32.totalorder %s41, 0
      %p68 = por %p66, %p67
      %s69 = ssub.s32 %s35, %s42
      %p70 = scmp.eq.s32.totalorder %s69, 0
      %s72 = sadd.s32 %s71, 1
      %s73 = scalar_select %p70, %s71, %s72
      %p76 = pneg %p70
      %p77 = scmp.eq.s32.totalorder %s35, 3
      %p78 = por %p76, %p77
      %p79 = scmp.ne.s32.totalorder %s71, %s74
      %p80 = scmp.eq.s32.totalorder %s35, 0
      %p81 = por %p79, %p80
      %p82 = scmp.ne.s32.totalorder %s71, %s74
      %p83 = scmp.eq.s32.totalorder %s40, 3
      %p84 = por %p82, %p83
      %p85 = scmp.ne.s32.totalorder %s74, %s75
      %p86 = scmp.eq.s32.totalorder %s40, 0
      %p87 = por %p85, %p86
      %p88 = scmp.ne.s32.totalorder %s74, %s75
      %p89 = scmp.eq.s32.totalorder %s41, 3
      %p90 = por %p88, %p89
      %p92 = scmp.ne.s32.totalorder %s75, %s91
      %p93 = scmp.eq.s32.totalorder %s41, 0
      %p94 = por %p92, %p93
      %s95 = ssub.s32 %s35, %s42
      %p96 = scmp.eq.s32.totalorder %s95, 0
      %s98 = sadd.s32 %s97, 1
      %s99 = scalar_select %p96, %s97, %s98
      %p102 = pneg %p96
      %p103 = scmp.eq.s32.totalorder %s35, 3
      %p104 = por %p102, %p103
      %p105 = scmp.ne.s32.totalorder %s97, %s100
      %p106 = scmp.eq.s32.totalorder %s35, 0
      %p107 = por %p105, %p106
      %p108 = scmp.ne.s32.totalorder %s97, %s100
      %p109 = scmp.eq.s32.totalorder %s40, 3
      %p110 = por %p108, %p109
      %p111 = scmp.ne.s32.totalorder %s100, %s101
      %p112 = scmp.eq.s32.totalorder %s40, 0
      %p113 = por %p111, %p112
      %p114 = scmp.ne.s32.totalorder %s100, %s101
      %p115 = scmp.eq.s32.totalorder %s41, 3
      %p116 = por %p114, %p115
      %p118 = scmp.ne.s32.totalorder %s101, %s117
      %p119 = scmp.eq.s32.totalorder %s41, 0
      %p120 = por %p118, %p119
      %s121 = ssub.s32 %s35, %s42
      %p122 = scmp.eq.s32.totalorder %s121, 0
      %s124 = sadd.s32 %s123, 1
      %s125 = scalar_select %p122, %s123, %s124
      %p128 = pneg %p122
      %p129 = scmp.eq.s32.totalorder %s35, 3
      %p130 = por %p128, %p129
      %p131 = scmp.ne.s32.totalorder %s123, %s126
      %p132 = scmp.eq.s32.totalorder %s35, 0
      %p133 = por %p131, %p132
      %p134 = scmp.ne.s32.totalorder %s123, %s126
      %p135 = scmp.eq.s32.totalorder %s40, 3
      %p136 = por %p134, %p135
      %p137 = scmp.ne.s32.totalorder %s126, %s127
      %p138 = scmp.eq.s32.totalorder %s40, 0
      %p139 = por %p137, %p138
      %p140 = scmp.ne.s32.totalorder %s126, %s127
      %p141 = scmp.eq.s32.totalorder %s41, 3
      %p142 = por %p140, %p141
      %p144 = scmp.ne.s32.totalorder %s127, %s143
      %p145 = scmp.eq.s32.totalorder %s41, 0
      %p146 = por %p144, %p145
      %s147 = ssub.s32 %s35, %s42
      %p148 = scmp.eq.s32.totalorder %s147, 0
      %s150 = sadd.s32 %s149, 1
      %s151 = scalar_select %p148, %s149, %s150
      %p154 = pneg %p148
      %p155 = scmp.eq.s32.totalorder %s35, 3
      %p156 = por %p154, %p155
      %p157 = scmp.ne.s32.totalorder %s149, %s152
      %p158 = scmp.eq.s32.totalorder %s35, 0
      %p159 = por %p157, %p158
      %p160 = scmp.ne.s32.totalorder %s149, %s152
      %p161 = scmp.eq.s32.totalorder %s40, 3
      %p162 = por %p160, %p161
      %p163 = scmp.ne.s32.totalorder %s152, %s153
      %p164 = scmp.eq.s32.totalorder %s40, 0
      %p165 = por %p163, %p164
      %p166 = scmp.ne.s32.totalorder %s152, %s153
      %p167 = scmp.eq.s32.totalorder %s41, 3
      %p168 = por %p166, %p167
      %p170 = scmp.ne.s32.totalorder %s153, %s169
      %p171 = scmp.eq.s32.totalorder %s41, 0
      %p172 = por %p170, %p171
      %s173 = ssub.s32 %s35, %s42
      %p174 = scmp.eq.s32.totalorder %s173, 0
      %s176 = sadd.s32 %s175, 1
      %s177 = scalar_select %p174, %s175, %s176
      %p180 = pneg %p174
      %p181 = scmp.eq.s32.totalorder %s35, 3
      %p182 = por %p180, %p181
      %p183 = scmp.ne.s32.totalorder %s175, %s178
      %p184 = scmp.eq.s32.totalorder %s35, 0
      %p185 = por %p183, %p184
      %p186 = scmp.ne.s32.totalorder %s175, %s178
      %p187 = scmp.eq.s32.totalorder %s40, 3
      %p188 = por %p186, %p187
      %p189 = scmp.ne.s32.totalorder %s178, %s179
      %p190 = scmp.eq.s32.totalorder %s40, 0
      %p191 = por %p189, %p190
      %p192 = scmp.ne.s32.totalorder %s178, %s179
      %p193 = scmp.eq.s32.totalorder %s41, 3
      %p194 = por %p192, %p193
      %p196 = scmp.ne.s32.totalorder %s179, %s195
      %p197 = scmp.eq.s32.totalorder %s41, 0
      %p198 = por %p196, %p197
      %s199 = ssub.s32 %s35, %s42
      %p200 = scmp.eq.s32.totalorder %s199, 0
      %s202 = sadd.s32 %s201, 1
      %s203 = scalar_select %p200, %s201, %s202
      %p206 = pneg %p200
      %p207 = scmp.eq.s32.totalorder %s35, 3
      %p208 = por %p206, %p207
      %p209 = scmp.ne.s32.totalorder %s201, %s204
      %p210 = scmp.eq.s32.totalorder %s35, 0
      %p211 = por %p209, %p210
      %p212 = scmp.ne.s32.totalorder %s201, %s204
      %p213 = scmp.eq.s32.totalorder %s40, 3
      %p214 = por %p212, %p213
      %p215 = scmp.ne.s32.totalorder %s204, %s205
      %p216 = scmp.eq.s32.totalorder %s40, 0
      %p217 = por %p215, %p216
      %p218 = scmp.ne.s32.totalorder %s204, %s205
      %p219 = scmp.eq.s32.totalorder %s41, 3
      %p220 = por %p218, %p219
      %p222 = scmp.ne.s32.totalorder %s205, %s221
      %p223 = scmp.eq.s32.totalorder %s41, 0
      %p224 = por %p222, %p223
      %s225 = ssub.s32 %s35, %s42
      %p226 = scmp.eq.s32.totalorder %s225, 0
      %s228 = sadd.s32 %s227, 1
      %s229 = scalar_select %p226, %s227, %s228
      %p232 = pneg %p226
      %p233 = scmp.eq.s32.totalorder %s35, 3
      %p234 = por %p232, %p233
      %p235 = scmp.ne.s32.totalorder %s227, %s230
      %p236 = scmp.eq.s32.totalorder %s35, 0
      %p237 = por %p235, %p236
      %p238 = scmp.ne.s32.totalorder %s227, %s230
      %p239 = scmp.eq.s32.totalorder %s40, 3
      %p240 = por %p238, %p239
      %p241 = scmp.ne.s32.totalorder %s230, %s231
      %p242 = scmp.eq.s32.totalorder %s40, 0
      %p243 = por %p241, %p242
      %p244 = scmp.ne.s32.totalorder %s230, %s231
      %p245 = scmp.eq.s32.totalorder %s41, 3
      %p246 = por %p244, %p245
      %p248 = scmp.ne.s32.totalorder %s231, %s247
      %p249 = scmp.eq.s32.totalorder %s41, 0
      %p250 = por %p248, %p249
      %p251 = scmp.le.s32.totalorder 1, %s35
      %p252 = scmp.lt.s32.totalorder %s35, 5
      %p253 = pnand %p251, %p252
      %p254 = pneg %p253
      // Predicated region
      $region9: #{my_model_forward.5} parent=5 // pred_check
        _
      $region10: #{my_model_forward.5} parent=5 // pred_check_branch
        %256 = sbr.rel (%p253) target = $region12
      $region11: #{my_model_forward.5} parent=5 // pred_region
        %s257 = ssub.s32 %s35, 1
      $region12: #{my_model_forward.5} parent=5 // pred_fallthru
        _
      %p258 = scmp.lt.s32.totalorder %s35, 4
      // Predicated region
      $region13: #{my_model_forward.5} parent=5 // pred_check
        %p259 = pneg %p258
      $region14: #{my_model_forward.5} parent=5 // pred_check_branch
        %261 = sbr.rel (%p259) target = $region16
      $region15: #{my_model_forward.5} parent=5 // pred_region
        // Predicated region
        $region17: #{my_model_forward.5} parent=15 // pred_check
          %p262 = pneg %p55
        $region18: #{my_model_forward.5} parent=15 // pred_check_branch
          %264 = sbr.rel (%p262) target = $region20
        $region19: #{my_model_forward.5} parent=15 // pred_region
          %p265 = scmp.lt.s32.totalorder %s35, 3
          %s266 = scalar_select %p265, %s35, 3
          %s267 = smul.addr %s266, 4
          %s268 = smul.addr %s267, 8
          %s269 = scalar_lea.vmem %s1, %s268
        $region20: #{my_model_forward.5} parent=15 // pred_fallthru
          _
        // Predicated region
        $region21: #{my_model_forward.5} parent=15 // pred_check
          %p270 = pneg %p81
        $region22: #{my_model_forward.5} parent=15 // pred_check_branch
          %272 = sbr.rel (%p270) target = $region24
        $region23: #{my_model_forward.5} parent=15 // pred_region
          %s273 = sand.u32 %s71, 1
          %s274 = scalar_lea.sflag [#allocation5], %s273
          %s275 = sand.u32 %s71, 1
          %s276 = smul.addr %s275, 32
          %s277 = scalar_lea.vmem [#allocation4], %s276
          %279 = vsyncadd %s274, 0
          %s280 = smul.addr %s35, 4
          %s281 = smul.addr %s280, 8
          %s282 = scalar_lea.hbm %s2, %s281
          %s283 = sshll.u32 %s282, 4
          %s284 = int_to_ptr.hbm [resolvable:$true] %s283
          %s285 = sshll.u32 %s277, 4
          %s286 = int_to_ptr.vmem [resolvable:$true] %s285
          %291 = dma.hbm_to_vmem [thread:$0]  %s284, 512, %s286, %s274, 128, 128, 8
        $region24: #{my_model_forward.5} parent=15 // pred_fallthru
          _
        // Predicated region
        $region25: #{my_model_forward.5} parent=15 // pred_check
          %p292 = pneg %p107
        $region26: #{my_model_forward.5} parent=15 // pred_check_branch
          %294 = sbr.rel (%p292) target = $region28
        $region27: #{my_model_forward.5} parent=15 // pred_region
          %p295 = scmp.lt.s32.totalorder %s35, 3
          %s296 = scalar_select %p295, %s35, 3
          %s297 = smul.addr %s296, 4
          %s298 = smul.addr %s297, 8
          %s299 = scalar_lea.vmem %s3, %s298
        $region28: #{my_model_forward.5} parent=15 // pred_fallthru
          _
        // Predicated region
        $region29: #{my_model_forward.5} parent=15 // pred_check
          %p300 = pneg %p133
        $region30: #{my_model_forward.5} parent=15 // pred_check_branch
          %302 = sbr.rel (%p300) target = $region32
        $region31: #{my_model_forward.5} parent=15 // pred_region
          %s303 = sand.u32 %s35, 1
          %s304 = scalar_lea.sflag [#allocation8], %s303
          %s305 = sand.u32 %s123, 1
          %s306 = smul.addr %s305, 128
          %s307 = scalar_lea.vmem [#allocation7], %s306
          %309 = vsyncadd %s304, 0
          %s310 = smul.addr %s35, 16
          %s311 = smul.addr %s310, 8
          %s312 = scalar_lea.hbm %s4, %s311
          %s313 = sshll.u32 %s312, 4
          %s314 = int_to_ptr.hbm [resolvable:$true] %s313
          %s315 = sshll.u32 %s307, 4
          %s316 = int_to_ptr.vmem [resolvable:$true] %s315
          %321 = dma.hbm_to_vmem [thread:$0]  %s314, 2048, %s316, %s304, 128, 128, 8
        $region32: #{my_model_forward.5} parent=15 // pred_fallthru
          _
        // Predicated region
        $region33: #{my_model_forward.5} parent=15 // pred_check
          %p322 = pneg %p159
        $region34: #{my_model_forward.5} parent=15 // pred_check_branch
          %324 = sbr.rel (%p322) target = $region36
        $region35: #{my_model_forward.5} parent=15 // pred_region
          %s325 = sand.u32 %s35, 1
          %s326 = scalar_lea.sflag [#allocation8], %s325
          %s327 = sand.u32 %s149, 1
          %s328 = scalar_lea.vmem [#allocation9], %s327
          %330 = vsyncadd %s326, 0
          %s331 = scalar_lea.hbm %s5, %s35
          %s333 = sshll.u32 %s331, 4
          %s334 = int_to_ptr.hbm [resolvable:$true] %s333
          %s335 = sshll.u32 %s328, 4
          %s336 = int_to_ptr.vmem [resolvable:$true] %s335
          %338 = dma.hbm_to_vmem [thread:$0]  %s334, 16, %s336, %s326
        $region36: #{my_model_forward.5} parent=15 // pred_fallthru
          _
        // Predicated region
        $region37: #{my_model_forward.5} parent=15 // pred_check
          %p339 = pneg %p185
        $region38: #{my_model_forward.5} parent=15 // pred_check_branch
          %341 = sbr.rel (%p339) target = $region40
        $region39: #{my_model_forward.5} parent=15 // pred_region
          %s342 = sand.u32 %s175, 1
          %s343 = scalar_lea.sflag [#allocation11], %s342
          %s344 = sand.u32 %s175, 1
          %s345 = scalar_lea.vmem [#allocation10], %s344
          %347 = vsyncadd %s343, 0
          %s348 = scalar_lea.hbm %s6, %s35
          %s350 = sshll.u32 %s348, 4
          %s351 = int_to_ptr.hbm [resolvable:$true] %s350
          %s352 = sshll.u32 %s345, 4
          %s353 = int_to_ptr.vmem [resolvable:$true] %s352
          %355 = dma.hbm_to_vmem [thread:$0]  %s351, 16, %s353, %s343
        $region40: #{my_model_forward.5} parent=15 // pred_fallthru
          _
      $region16: #{my_model_forward.5} parent=5 // pred_fallthru
        _
      %p356 = scmp.le.s32.totalorder 1, %s35
      %p357 = scmp.lt.s32.totalorder %s35, 5
      %p358 = pnand %p356, %p357
      %p359 = pneg %p358
      // Predicated region
      $region41: #{my_model_forward.5} parent=5 // pred_check
        _
      $region42: #{my_model_forward.5} parent=5 // pred_check_branch
        %361 = sbr.rel (%p358) target = $region44
      $region43: #{my_model_forward.5} parent=5 // pred_region
        %s362 = ssub.s32 %s35, 1
        %s363 = sand.u32 %s74, 1
        %s364 = scalar_lea.sflag [#allocation5], %s363
        %s365 = sand.u32 %s74, 1
        %s366 = smul.addr %s365, 32
        %s367 = scalar_lea.vmem [#allocation4], %s366
        // Predicated region
        $region45: #{my_model_forward.5} parent=43 // pred_check
          %p368 = pneg %p87
        $region46: #{my_model_forward.5} parent=43 // pred_check_branch
          %370 = sbr.rel (%p368) target = $region48
        $region47: #{my_model_forward.5} parent=43 // pred_region
          %372 = dma.done %s364, 512
        $region48: #{my_model_forward.5} parent=43 // pred_fallthru
          _
        %s373 = sand.u32 %s40, 1
        %s374 = scalar_lea.sflag [#allocation8], %s373
        %s375 = sand.u32 %s126, 1
        %s376 = smul.addr %s375, 128
        %s377 = scalar_lea.vmem [#allocation7], %s376
        // Predicated region
        $region49: #{my_model_forward.5} parent=43 // pred_check
          %p378 = pneg %p139
        $region50: #{my_model_forward.5} parent=43 // pred_check_branch
          %380 = sbr.rel (%p378) target = $region52
        $region51: #{my_model_forward.5} parent=43 // pred_region
          %382 = dma.done %s374, 2048
        $region52: #{my_model_forward.5} parent=43 // pred_fallthru
          _
        %s383 = sand.u32 %s40, 1
        %s384 = scalar_lea.sflag [#allocation8], %s383
        %s385 = sand.u32 %s152, 1
        %s386 = scalar_lea.vmem [#allocation9], %s385
        // Predicated region
        $region53: #{my_model_forward.5} parent=43 // pred_check
          %p387 = pneg %p165
        $region54: #{my_model_forward.5} parent=43 // pred_check_branch
          %389 = sbr.rel (%p387) target = $region56
        $region55: #{my_model_forward.5} parent=43 // pred_region
          %391 = dma.done %s384, 16
        $region56: #{my_model_forward.5} parent=43 // pred_fallthru
          _
        %s392 = sand.u32 %s178, 1
        %s393 = scalar_lea.sflag [#allocation11], %s392
        %s394 = sand.u32 %s178, 1
        %s395 = scalar_lea.vmem [#allocation10], %s394
        // Predicated region
        $region57: #{my_model_forward.5} parent=43 // pred_check
          %p396 = pneg %p191
        $region58: #{my_model_forward.5} parent=43 // pred_check_branch
          %398 = sbr.rel (%p396) target = $region60
        $region59: #{my_model_forward.5} parent=43 // pred_region
          %400 = dma.done %s393, 16
        $region60: #{my_model_forward.5} parent=43 // pred_fallthru
          _
        %p401 = scmp.lt.s32.totalorder %s40, 3
        %s402 = scalar_select %p401, %s40, 3
        %s403 = smul.addr %s402, 4
        %s404 = smul.addr %s403, 8
        %s405 = scalar_lea.vmem %s1, %s404
        %p406 = pneg %p61
        %p407 = pneg %p58
        %s408 = sand.u32 %s74, 1
        %s409 = scalar_lea.sflag [#allocation5], %s408
        %s410 = sand.u32 %s74, 1
        %s411 = smul.addr %s410, 32
        %s412 = scalar_lea.vmem [#allocation4], %s411
        %p413 = pneg %p87
        %p414 = pneg %p84
        %p415 = scmp.lt.s32.totalorder %s40, 3
        %s416 = scalar_select %p415, %s40, 3
        %s417 = smul.addr %s416, 4
        %s418 = smul.addr %s417, 8
        %s419 = scalar_lea.vmem %s3, %s418
        %p420 = pneg %p113
        %p421 = pneg %p110
        %s422 = sand.u32 %s40, 1
        %s423 = scalar_lea.sflag [#allocation8], %s422
        %s424 = sand.u32 %s126, 1
        %s425 = smul.addr %s424, 128
        %s426 = scalar_lea.vmem [#allocation7], %s425
        %p427 = pneg %p139
        %p428 = pneg %p136
        %s429 = sand.u32 %s40, 1
        %s430 = scalar_lea.sflag [#allocation8], %s429
        %s431 = sand.u32 %s152, 1
        %s432 = scalar_lea.vmem [#allocation9], %s431
        %p433 = pneg %p165
        %p434 = pneg %p162
        %s435 = sand.u32 %s178, 1
        %s436 = scalar_lea.sflag [#allocation11], %s435
        %s437 = sand.u32 %s178, 1
        %s438 = scalar_lea.vmem [#allocation10], %s437
        %p439 = pneg %p191
        %p440 = pneg %p188
        %p441 = pneg %p217
        %p442 = pneg %p214
        %p443 = scmp.lt.s32.totalorder %s40, 3
        %s444 = scalar_select %p443, %s40, 3
        %s445 = smul.addr %s444, 4
        %s446 = smul.addr %s445, 8
        %s447 = scalar_lea.vmem %s7, %s446
        %p448 = pneg %p243
        %p449 = pneg %p240
        %s450 = sand.u32 %s230, 1
        %s451 = scalar_lea.sflag [#allocation6], %s450
        %s452 = sand.u32 %s230, 1
        %s453 = smul.addr %s452, 8
        %s454 = scalar_lea.vmem [#allocation12], %s453
        %p455 = scmp.lt.s32.totalorder %s40, 3
        %s456 = scalar_select %p455, %s40, 3
        %s457 = smul.addr %s456, 4
        %s458 = smul.addr %s457, 8
        %s459 = scalar_lea.vmem %s1, %s458
        %p460 = scmp.lt.s32.totalorder %s40, 3
        %s461 = scalar_select %p460, %s40, 3
        %s462 = smul.addr %s461, 4
        %s463 = smul.addr %s462, 8
        %s464 = scalar_lea.vmem %s3, %s463
        %p465 = scmp.lt.s32.totalorder %s40, 3
        %s466 = scalar_select %p465, %s40, 3
        %s467 = smul.addr %s466, 4
        %s468 = smul.addr %s467, 8
        %s469 = scalar_lea.vmem %s7, %s468
        %s471 = sld [smem:[#allocation3 + %s40]]
        %v472 = vld [vmem:[%s459] sm:$0xff]
        %v473 = vld [vmem:[%s459 + $0x8] sm:$0xff]
        %v474 = vld [vmem:[%s459 + $0x10] sm:$0xff]
        %v475 = vld [vmem:[%s459 + $0x18] sm:$0xff]
        %v476 = vlaneseq
        %v477 = vshrl.u32 %v476, 7
        %v478 = vadd.s32 %v477, 8
        %v479 = vadd.s32 %v477, 16
        %v480 = vadd.s32 %v477, 24
        %v481 = vlaneseq
        %v482 = vand.u32 %v481, 127
        %vm483 = vcmp.eq.s32.totalorder %v477, %v482
        %vm484 = vcmp.eq.s32.totalorder %v478, %v482
        %vm485 = vcmp.eq.s32.totalorder %v479, %v482
        %vm486 = vcmp.eq.s32.totalorder %v480, %v482
        %v487 = vsel %vm483, 1, 0
        %v488 = vsel %vm484, 1, 0
        %v489 = vsel %vm485, 1, 0
        %v490 = vsel %vm486, 1, 0
        %v491 = vcvt.s32.f32 %v487
        %v492 = vcvt.s32.f32 %v488
        %v493 = vcvt.s32.f32 %v489
        %v494 = vcvt.s32.f32 %v490
        %v495 = vadd.f32 %v472, %v491
        %v496 = vadd.f32 %v473, %v492
        %v497 = vadd.f32 %v474, %v493
        %v498 = vadd.f32 %v475, %v494
        %v499 = vld [vmem:[%s367] sm:$0xff]
        %v500 = vld [vmem:[%s367 + $0x8] sm:$0xff]
        %v501 = vld [vmem:[%s367 + $0x10] sm:$0xff]
        %v502 = vld [vmem:[%s367 + $0x18] sm:$0xff]
        %v503 = vmul.f32 %v472, %v499
        %v504 = vmul.f32 %v473, %v500
        %v505 = vmul.f32 %v474, %v501
        %v506 = vmul.f32 %v475, %v502
        %v507 = vadd.f32 %v503, %v491
        %v508 = vadd.f32 %v504, %v492
        %v509 = vadd.f32 %v505, %v493
        %v510 = vadd.f32 %v506, %v494
        %v511 = vld [vmem:[%s464] sm:$0xff]
        %v512 = vld [vmem:[%s464 + $0x8] sm:$0xff]
        %v513 = vld [vmem:[%s464 + $0x10] sm:$0xff]
        %v514 = vld [vmem:[%s464 + $0x18] sm:$0xff]
        %v515 = vpack.c.bf16 %v512, %v511
        %v516 = vpack.c.bf16 %v514, %v513
        %v517 = vld [vmem:[%s377] sm:$0xff]
        %v518 = vld [vmem:[%s377 + $0x8] sm:$0xff]
        %v519 = vld [vmem:[%s377 + $0x10] sm:$0xff]
        %v520 = vld [vmem:[%s377 + $0x18] sm:$0xff]
        %v521 = vld [vmem:[%s377 + $0x20] sm:$0xff]
        %v522 = vld [vmem:[%s377 + $0x28] sm:$0xff]
        %v523 = vld [vmem:[%s377 + $0x30] sm:$0xff]
        %v524 = vld [vmem:[%s377 + $0x38] sm:$0xff]
        %v525 = vld [vmem:[%s377 + $0x40] sm:$0xff]
        %v526 = vld [vmem:[%s377 + $0x48] sm:$0xff]
        %v527 = vld [vmem:[%s377 + $0x50] sm:$0xff]
        %v528 = vld [vmem:[%s377 + $0x58] sm:$0xff]
        %v529 = vld [vmem:[%s377 + $0x60] sm:$0xff]
        %v530 = vld [vmem:[%s377 + $0x68] sm:$0xff]
        %v531 = vld [vmem:[%s377 + $0x70] sm:$0xff]
        %v532 = vld [vmem:[%s377 + $0x78] sm:$0xff]
        %v533 = vpack.c.bf16 %v518, %v517
        %v534 = vpack.c.bf16 %v520, %v519
        %v535 = vpack.c.bf16 %v522, %v521
        %v536 = vpack.c.bf16 %v524, %v523
        %v537 = vpack.c.bf16 %v526, %v525
        %v538 = vpack.c.bf16 %v528, %v527
        %v539 = vpack.c.bf16 %v530, %v529
        %v540 = vpack.c.bf16 %v532, %v531
        %541 = vmatpush.bf16.msra.mxu0 %v540
        %542 = vmatpush.bf16.msra.mxu0 %v539
        %543 = vmatpush.bf16.msra.mxu0 %v538
        %544 = vmatpush.bf16.msra.mxu0 %v537
        %545 = vmatpush.bf16.msra.mxu0 %v536
        %546 = vmatpush.bf16.msra.mxu0 %v535
        %547 = vmatpush.bf16.msra.mxu0 %v534
        %548 = vmatpush.bf16.msra.mxu0 %v533
        %549 = vmatmul.bf16.gmra.mxu0 %v515
        %v550 = vpop.f32.mrf.mxu0
        %v551 = vadd.f32 0.0, %v550
        %v552 = vpop.f32.mrf.mxu0
        %v553 = vadd.f32 0.0, %v552
        %554 = vmatmul.bf16.gmra.mxu0 %v516
        %v555 = vpop.f32.mrf.mxu0
        %v556 = vadd.f32 0.0, %v555
        %v557 = vpop.f32.mrf.mxu0
        %v558 = vadd.f32 0.0, %v557
        %559 = vdwg.mxu0
        %v560 = vpack.c.bf16 %v553, %v551
        %v561 = vpack.c.bf16 %v558, %v556
        %vm562 = vcmask 261120
        %v563 = vsel %vm562, %v495, 0.0
        %564 = vadd.xlane.f32.xlu0 %v563
        %v565 = vpop.xlane.xlu0 %564
        %v566 = vsel %vm562, %v496, 0.0
        %567 = vadd.xlane.f32.xlu0 %v566
        %v568 = vpop.xlane.xlu0 %567
        %v569 = vsel %vm562, %v497, 0.0
        %570 = vadd.xlane.f32.xlu0 %v569
        %v571 = vpop.xlane.xlu0 %570
        %v572 = vsel %vm562, %v498, 0.0
        %573 = vadd.xlane.f32.xlu0 %v572
        %v574 = vpop.xlane.xlu0 %573
        %v575 = vrcp.pop %v565
        %v576 = vmul.f32 %v565, %v575
        %v577 = vsub.f32 1.0, %v576
        %v578 = vmul.f32 %v575, %v577
        %v579 = vadd.f32 %v575, %v578
        %vm580 = vweird.f32 %v565
        %vm581 = vweird.f32 %v575
        %vm582 = vmor %vm580, %vm581
        %v583 = vsel %vm582, %v575, %v579
        %v584 = vand.u32 2147483647, %v565
        %vm585 = vcmp.eq.f32.partialorder %v584, 8.507059e+37
        %v586 = vand.u32 %v565, 2147483648
        %v587 = vor.u32 1.1754944e-38, %v586
        %v588 = vsel %vm585, %v587, %v583
        %v589 = vmul.f32 1.0, %v588
        %v590 = vrcp.pop %v568
        %v591 = vmul.f32 %v568, %v590
        %v592 = vsub.f32 1.0, %v591
        %v593 = vmul.f32 %v590, %v592
        %v594 = vadd.f32 %v590, %v593
        %vm595 = vweird.f32 %v568
        %vm596 = vweird.f32 %v590
        %vm597 = vmor %vm595, %vm596
        %v598 = vsel %vm597, %v590, %v594
        %v599 = vand.u32 2147483647, %v568
        %vm600 = vcmp.eq.f32.partialorder %v599, 8.507059e+37
        %v601 = vand.u32 %v568, 2147483648
        %v602 = vor.u32 1.1754944e-38, %v601
        %v603 = vsel %vm600, %v602, %v598
        %v604 = vmul.f32 1.0, %v603
        %v605 = vrcp.pop %v571
        %v606 = vmul.f32 %v571, %v605
        %v607 = vsub.f32 1.0, %v606
        %v608 = vmul.f32 %v605, %v607
        %v609 = vadd.f32 %v605, %v608
        %vm610 = vweird.f32 %v571
        %vm611 = vweird.f32 %v605
        %vm612 = vmor %vm610, %vm611
        %v613 = vsel %vm612, %v605, %v609
        %v614 = vand.u32 2147483647, %v571
        %vm615 = vcmp.eq.f32.partialorder %v614, 8.507059e+37
        %v616 = vand.u32 %v571, 2147483648
        %v617 = vor.u32 1.1754944e-38, %v616
        %v618 = vsel %vm615, %v617, %v613
        %v619 = vmul.f32 1.0, %v618
        %v620 = vrcp.pop %v574
        %v621 = vmul.f32 %v574, %v620
        %v622 = vsub.f32 1.0, %v621
        %v623 = vmul.f32 %v620, %v622
        %v624 = vadd.f32 %v620, %v623
        %vm625 = vweird.f32 %v574
        %vm626 = vweird.f32 %v620
        %vm627 = vmor %vm625, %vm626
        %v628 = vsel %vm627, %v620, %v624
        %v629 = vand.u32 2147483647, %v574
        %vm630 = vcmp.eq.f32.partialorder %v629, 8.507059e+37
        %v631 = vand.u32 %v574, 2147483648
        %v632 = vor.u32 1.1754944e-38, %v631
        %v633 = vsel %vm630, %v632, %v628
        %v634 = vmul.f32 1.0, %v633
        %v635 = vsel %vm562, %v507, 0.0
        %636 = vadd.xlane.f32.xlu0 %v635
        %v637 = vpop.xlane.xlu0 %636
        %v638 = vsel %vm562, %v508, 0.0
        %639 = vadd.xlane.f32.xlu0 %v638
        %v640 = vpop.xlane.xlu0 %639
        %v641 = vsel %vm562, %v509, 0.0
        %642 = vadd.xlane.f32.xlu0 %v641
        %v643 = vpop.xlane.xlu0 %642
        %v644 = vsel %vm562, %v510, 0.0
        %645 = vadd.xlane.f32.xlu0 %v644
        %v646 = vpop.xlane.xlu0 %645
        %v647 = vrcp.pop %v637
        %v648 = vmul.f32 %v637, %v647
        %v649 = vsub.f32 1.0, %v648
        %v650 = vmul.f32 %v647, %v649
        %v651 = vadd.f32 %v647, %v650
        %vm652 = vweird.f32 %v637
        %vm653 = vweird.f32 %v647
        %vm654 = vmor %vm652, %vm653
        %v655 = vsel %vm654, %v647, %v651
        %v656 = vand.u32 2147483647, %v637
        %vm657 = vcmp.eq.f32.partialorder %v656, 8.507059e+37
        %v658 = vand.u32 %v637, 2147483648
        %v659 = vor.u32 1.1754944e-38, %v658
        %v660 = vsel %vm657, %v659, %v655
        %v661 = vmul.f32 1.0, %v660
        %v662 = vrcp.pop %v640
        %v663 = vmul.f32 %v640, %v662
        %v664 = vsub.f32 1.0, %v663
        %v665 = vmul.f32 %v662, %v664
        %v666 = vadd.f32 %v662, %v665
        %vm667 = vweird.f32 %v640
        %vm668 = vweird.f32 %v662
        %vm669 = vmor %vm667, %vm668
        %v670 = vsel %vm669, %v662, %v666
        %v671 = vand.u32 2147483647, %v640
        %vm672 = vcmp.eq.f32.partialorder %v671, 8.507059e+37
        %v673 = vand.u32 %v640, 2147483648
        %v674 = vor.u32 1.1754944e-38, %v673
        %v675 = vsel %vm672, %v674, %v670
        %v676 = vmul.f32 1.0, %v675
        %v677 = vrcp.pop %v643
        %v678 = vmul.f32 %v643, %v677
        %v679 = vsub.f32 1.0, %v678
        %v680 = vmul.f32 %v677, %v679
        %v681 = vadd.f32 %v677, %v680
        %vm682 = vweird.f32 %v643
        %vm683 = vweird.f32 %v677
        %vm684 = vmor %vm682, %vm683
        %v685 = vsel %vm684, %v677, %v681
        %v686 = vand.u32 2147483647, %v643
        %vm687 = vcmp.eq.f32.partialorder %v686, 8.507059e+37
        %v688 = vand.u32 %v643, 2147483648
        %v689 = vor.u32 1.1754944e-38, %v688
        %v690 = vsel %vm687, %v689, %v685
        %v691 = vmul.f32 1.0, %v690
        %v692 = vrcp.pop %v646
        %v693 = vmul.f32 %v646, %v692
        %v694 = vsub.f32 1.0, %v693
        %v695 = vmul.f32 %v692, %v694
        %v696 = vadd.f32 %v692, %v695
        %vm697 = vweird.f32 %v646
        %vm698 = vweird.f32 %v692
        %vm699 = vmor %vm697, %vm698
        %v700 = vsel %vm699, %v692, %v696
        %v701 = vand.u32 2147483647, %v646
        %vm702 = vcmp.eq.f32.partialorder %v701, 8.507059e+37
        %v703 = vand.u32 %v646, 2147483648
        %v704 = vor.u32 1.1754944e-38, %v703
        %v705 = vsel %vm702, %v704, %v700
        %v706 = vmul.f32 1.0, %v705
        %v707 = vpack.c.bf16 %v496, %v495
        %v708 = vpack.c.bf16 %v498, %v497
        %v710 = vsel %vm562, %v707, 0
        %v713 = vsel %vm562, %v708, 0
        %715 = vmatpush.bf16.msra.mxu0 0
        %716 = vmatpush.bf16.msra.mxu0 0
        %717 = vmatpush.bf16.msra.mxu0 0
        %718 = vmatpush.bf16.msra.mxu0 0
        %719 = vmatpush.bf16.msra.mxu0 0
        %720 = vmatpush.bf16.msra.mxu0 0
        %721 = vmatpush.bf16.msra.mxu0 %v561
        %722 = vmatpush.bf16.msra.mxu0 %v560
        %723 = vmatmul.bf16.gmra.mxu0 %v710
        %v724 = vpop.f32.mrf.mxu0
        %v725 = vadd.f32 0.0, %v724
        %v726 = vpop.f32.mrf.mxu0
        %v727 = vadd.f32 0.0, %v726
        %728 = vmatmul.bf16.gmra.mxu0 %v713
        %v729 = vpop.f32.mrf.mxu0
        %v730 = vadd.f32 0.0, %v729
        %v731 = vpop.f32.mrf.mxu0
        %v732 = vadd.f32 0.0, %v731
        %733 = vdwg.mxu0
        %v734 = vmul.f32 %v725, %v589
        %v735 = vmul.f32 %v727, %v604
        %v736 = vmul.f32 %v730, %v619
        %v737 = vmul.f32 %v732, %v634
        %v738 = vld [vmem:[%s386] sm:$0x1]
        %v740 = vperm.slane %v738, 0
        %v742 = vadd.f32 %v734, %v740
        %v743 = vadd.f32 %v735, %v740
        %v744 = vadd.f32 %v736, %v740
        %v745 = vadd.f32 %v737, %v740
        %v746 = vpack.c.bf16 %v508, %v507
        %v747 = vpack.c.bf16 %v510, %v509
        %v749 = vsel %vm562, %v746, 0
        %v752 = vsel %vm562, %v747, 0
        %754 = vmatpush.bf16.msra.mxu0 0
        %755 = vmatpush.bf16.msra.mxu0 0
        %756 = vmatpush.bf16.msra.mxu0 0
        %757 = vmatpush.bf16.msra.mxu0 0
        %758 = vmatpush.bf16.msra.mxu0 0
        %759 = vmatpush.bf16.msra.mxu0 0
        %760 = vmatpush.bf16.msra.mxu0 %v561
        %761 = vmatpush.bf16.msra.mxu0 %v560
        %762 = vmatmul.bf16.gmra.mxu0 %v749
        %v763 = vpop.f32.mrf.mxu0
        %v764 = vadd.f32 0.0, %v763
        %v765 = vpop.f32.mrf.mxu0
        %v766 = vadd.f32 0.0, %v765
        %767 = vmatmul.bf16.gmra.mxu0 %v752
        %v768 = vpop.f32.mrf.mxu0
        %v769 = vadd.f32 0.0, %v768
        %v770 = vpop.f32.mrf.mxu0
        %v771 = vadd.f32 0.0, %v770
        %772 = vdwg.mxu0
        %v773 = vmul.f32 %v764, %v661
        %v774 = vmul.f32 %v766, %v676
        %v775 = vmul.f32 %v769, %v691
        %v776 = vmul.f32 %v771, %v706
        %v777 = vadd.f32 %v773, %v740
        %v778 = vadd.f32 %v774, %v740
        %v779 = vadd.f32 %v775, %v740
        %v780 = vadd.f32 %v776, %v740
        %v781 = vld [vmem:[%s395] sm:$0x1]
        %vm782 = vcmp.gt.f32.partialorder %v742, 0.0
        %vm783 = vcmp.gt.f32.partialorder %v743, 0.0
        %vm784 = vcmp.gt.f32.partialorder %v744, 0.0
        %vm785 = vcmp.gt.f32.partialorder %v745, 0.0
        %v787 = vperm.slane %v781, 0
        %v789 = vmul.f32 %v787, %v742
        %v790 = vmul.f32 %v787, %v743
        %v791 = vmul.f32 %v787, %v744
        %v792 = vmul.f32 %v787, %v745
        %v793 = vsel %vm782, %v742, %v789
        %v794 = vsel %vm783, %v743, %v790
        %v795 = vsel %vm784, %v744, %v791
        %v796 = vsel %vm785, %v745, %v792
        %vm797 = vcmp.gt.f32.partialorder %v777, 0.0
        %vm798 = vcmp.gt.f32.partialorder %v778, 0.0
        %vm799 = vcmp.gt.f32.partialorder %v779, 0.0
        %vm800 = vcmp.gt.f32.partialorder %v780, 0.0
        %v801 = vmul.f32 %v787, %v777
        %v802 = vmul.f32 %v787, %v778
        %v803 = vmul.f32 %v787, %v779
        %v804 = vmul.f32 %v787, %v780
        %v805 = vsel %vm797, %v777, %v801
        %v806 = vsel %vm798, %v778, %v802
        %v807 = vsel %vm799, %v779, %v803
        %v808 = vsel %vm800, %v780, %v804
        %v809 = vmul.f32 %v793, %v793
        %v810 = vmul.f32 %v794, %v794
        %v811 = vmul.f32 %v795, %v795
        %v812 = vmul.f32 %v796, %v796
        %813 = vadd.xlane.f32.xlu0 %v809
        %v814 = vpop.xlane.xlu0 %813
        %815 = vadd.xlane.f32.xlu0 %v810
        %v816 = vpop.xlane.xlu0 %815
        %817 = vadd.xlane.f32.xlu0 %v811
        %v818 = vpop.xlane.xlu0 %817
        %819 = vadd.xlane.f32.xlu0 %v812
        %v820 = vpop.xlane.xlu0 %819
        %v821 = vadd.f32 %v814, 1e-12
        %v822 = vadd.f32 %v816, 1e-12
        %v823 = vadd.f32 %v818, 1e-12
        %v824 = vadd.f32 %v820, 1e-12
        %v825 = vrsqrt.pop %v821
        %v826 = vmul.f32 %v825, %v821
        %v827 = vmul.f32 %v826, %v825
        %v828 = vmul.f32 0.5, %v827
        %v829 = vsub.f32 1.5, %v828
        %v830 = vmul.f32 %v825, %v829
        %vm831 = vweird.f32 %v821
        %vm832 = vweird.f32 %v825
        %vm833 = vmor %vm831, %vm832
        %v834 = vsel %vm833, %v825, %v830
        %v835 = vrsqrt.pop %v822
        %v836 = vmul.f32 %v835, %v822
        %v837 = vmul.f32 %v836, %v835
        %v838 = vmul.f32 0.5, %v837
        %v839 = vsub.f32 1.5, %v838
        %v840 = vmul.f32 %v835, %v839
        %vm841 = vweird.f32 %v822
        %vm842 = vweird.f32 %v835
        %vm843 = vmor %vm841, %vm842
        %v844 = vsel %vm843, %v835, %v840
        %v845 = vrsqrt.pop %v823
        %v846 = vmul.f32 %v845, %v823
        %v847 = vmul.f32 %v846, %v845
        %v848 = vmul.f32 0.5, %v847
        %v849 = vsub.f32 1.5, %v848
        %v850 = vmul.f32 %v845, %v849
        %vm851 = vweird.f32 %v823
        %vm852 = vweird.f32 %v845
        %vm853 = vmor %vm851, %vm852
        %v854 = vsel %vm853, %v845, %v850
        %v855 = vrsqrt.pop %v824
        %v856 = vmul.f32 %v855, %v824
        %v857 = vmul.f32 %v856, %v855
        %v858 = vmul.f32 0.5, %v857
        %v859 = vsub.f32 1.5, %v858
        %v860 = vmul.f32 %v855, %v859
        %vm861 = vweird.f32 %v824
        %vm862 = vweird.f32 %v855
        %vm863 = vmor %vm861, %vm862
        %v864 = vsel %vm863, %v855, %v860
        %v865 = vmul.f32 %v793, %v834
        %v866 = vmul.f32 %v794, %v844
        %v867 = vmul.f32 %v795, %v854
        %v868 = vmul.f32 %v796, %v864
        %v869 = vmul.f32 %v805, %v805
        %v870 = vmul.f32 %v806, %v806
        %v871 = vmul.f32 %v807, %v807
        %v872 = vmul.f32 %v808, %v808
        %873 = vadd.xlane.f32.xlu0 %v869
        %v874 = vpop.xlane.xlu0 %873
        %875 = vadd.xlane.f32.xlu0 %v870
        %v876 = vpop.xlane.xlu0 %875
        %877 = vadd.xlane.f32.xlu0 %v871
        %v878 = vpop.xlane.xlu0 %877
        %879 = vadd.xlane.f32.xlu0 %v872
        %v880 = vpop.xlane.xlu0 %879
        %v881 = vadd.f32 %v874, 1e-12
        %v882 = vadd.f32 %v876, 1e-12
        %v883 = vadd.f32 %v878, 1e-12
        %v884 = vadd.f32 %v880, 1e-12
        %v885 = vrsqrt.pop %v881
        %v886 = vmul.f32 %v885, %v881
        %v887 = vmul.f32 %v886, %v885
        %v888 = vmul.f32 0.5, %v887
        %v889 = vsub.f32 1.5, %v888
        %v890 = vmul.f32 %v885, %v889
        %vm891 = vweird.f32 %v881
        %vm892 = vweird.f32 %v885
        %vm893 = vmor %vm891, %vm892
        %v894 = vsel %vm893, %v885, %v890
        %v895 = vrsqrt.pop %v882
        %v896 = vmul.f32 %v895, %v882
        %v897 = vmul.f32 %v896, %v895
        %v898 = vmul.f32 0.5, %v897
        %v899 = vsub.f32 1.5, %v898
        %v900 = vmul.f32 %v895, %v899
        %vm901 = vweird.f32 %v882
        %vm902 = vweird.f32 %v895
        %vm903 = vmor %vm901, %vm902
        %v904 = vsel %vm903, %v895, %v900
        %v905 = vrsqrt.pop %v883
        %v906 = vmul.f32 %v905, %v883
        %v907 = vmul.f32 %v906, %v905
        %v908 = vmul.f32 0.5, %v907
        %v909 = vsub.f32 1.5, %v908
        %v910 = vmul.f32 %v905, %v909
        %vm911 = vweird.f32 %v883
        %vm912 = vweird.f32 %v905
        %vm913 = vmor %vm911, %vm912
        %v914 = vsel %vm913, %v905, %v910
        %v915 = vrsqrt.pop %v884
        %v916 = vmul.f32 %v915, %v884
        %v917 = vmul.f32 %v916, %v915
        %v918 = vmul.f32 0.5, %v917
        %v919 = vsub.f32 1.5, %v918
        %v920 = vmul.f32 %v915, %v919
        %vm921 = vweird.f32 %v884
        %vm922 = vweird.f32 %v915
        %vm923 = vmor %vm921, %vm922
        %v924 = vsel %vm923, %v915, %v920
        %v925 = vmul.f32 %v805, %v894
        %v926 = vmul.f32 %v806, %v904
        %v927 = vmul.f32 %v807, %v914
        %v928 = vmul.f32 %v808, %v924
        %929 = vmatpush.xpose.msra.mxu0 0.0
        %930 = vmatpush.xpose.msra.mxu0 0.0
        %931 = vmatpush.xpose.msra.mxu0 0.0
        %932 = vmatpush.xpose.msra.mxu0 0.0
        %933 = vmatpush.xpose.msra.mxu0 0.0
        %934 = vmatpush.xpose.msra.mxu0 0.0
        %935 = vmatpush.xpose.msra.mxu0 0.0
        %936 = vmatpush.xpose.msra.mxu0 0.0
        %937 = vmatpush.xpose.msra.mxu0 0.0
        %938 = vmatpush.xpose.msra.mxu0 0.0
        %939 = vmatpush.xpose.msra.mxu0 0.0
        %940 = vmatpush.xpose.msra.mxu0 0.0
        %941 = vmatpush.xpose.msra.mxu0 %v928
        %942 = vmatpush.xpose.msra.mxu0 %v927
        %943 = vmatpush.xpose.msra.mxu0 %v926
        %944 = vmatpush.xpose.msra.mxu0 %v925
        %945 = vmatmul.f32.gmra.mxu0 %v865
        %v946 = vpop.f32.mrf.mxu0
        %v947 = vadd.f32 0.0, %v946
        %948 = vmatmul.f32.gmra.mxu0 %v866
        %v949 = vpop.f32.mrf.mxu0
        %v950 = vadd.f32 0.0, %v949
        %951 = vmatmul.f32.gmra.mxu0 %v867
        %v952 = vpop.f32.mrf.mxu0
        %v953 = vadd.f32 0.0, %v952
        %954 = vmatmul.f32.gmra.mxu0 %v868
        %v955 = vpop.f32.mrf.mxu0
        %v956 = vadd.f32 0.0, %v955
        %957 = vdwg.mxu0
        %vm958 = vcmp.ge.s32.totalorder %v477, 16
        %vm959 = vcmp.ge.s32.totalorder %v478, 16
        %vm960 = vcmp.ge.s32.totalorder %v479, 16
        %vm961 = vcmp.ge.s32.totalorder %v480, 16
        %s962 = sadd.s32 %s471, 16
        %v963 = vstv %s962
        %vm964 = vcmp.lt.s32.totalorder %v477, %v963
        %vm965 = vcmp.lt.s32.totalorder %v478, %v963
        %vm966 = vcmp.lt.s32.totalorder %v479, %v963
        %vm967 = vcmp.lt.s32.totalorder %v480, %v963
        %vm968 = vmand %vm958, %vm964
        %vm969 = vmand %vm959, %vm965
        %vm970 = vmand %vm960, %vm966
        %vm971 = vmand %vm961, %vm967
        %v972 = vsel %vm968, 1, 0
        %v973 = vsel %vm969, 1, 0
        %v974 = vsel %vm970, 1, 0
        %v975 = vsel %vm971, 1, 0
        %v976 = vcvt.s32.f32 %v972
        %v977 = vcvt.s32.f32 %v973
        %v978 = vcvt.s32.f32 %v974
        %v979 = vcvt.s32.f32 %v975
        %v980 = vmul.f32 %v865, %v925
        %v981 = vmul.f32 %v866, %v926
        %v982 = vmul.f32 %v867, %v927
        %v983 = vmul.f32 %v868, %v928
        %984 = vadd.xlane.f32.xlu0 %v980
        %v985 = vpop.xlane.xlu0 %984
        %986 = vadd.xlane.f32.xlu0 %v981
        %v987 = vpop.xlane.xlu0 %986
        %988 = vadd.xlane.f32.xlu0 %v982
        %v989 = vpop.xlane.xlu0 %988
        %990 = vadd.xlane.f32.xlu0 %v983
        %v991 = vpop.xlane.xlu0 %990
        %v992 = vmul.f32 %v985, 1.442695
        %v993 = vpow.pop %v992
        %v994 = vmul.f32 %v987, 1.442695
        %v995 = vpow.pop %v994
        %v996 = vmul.f32 %v989, 1.442695
        %v997 = vpow.pop %v996
        %v998 = vmul.f32 %v991, 1.442695
        %v999 = vpow.pop %v998
        %v1000 = vmul.f32 %v976, %v993
        %v1001 = vmul.f32 %v977, %v995
        %v1002 = vmul.f32 %v978, %v997
        %v1003 = vmul.f32 %v979, %v999
        %vm1004 = vcmask 7168
        %v1005 = vsel %vm1004, %v1000, 0.0
        %v1006 = vsel %vm1004, %v1001, 0.0
        %v1007 = vadd.f32 %v1005, %v1006
        %v1008 = vsel %vm1004, %v1002, 0.0
        %v1009 = vadd.f32 %v1007, %v1008
        %v1010 = vsel %vm1004, %v1003, 0.0
        %v1011 = vadd.f32 %v1009, %v1010
        %1012 = vadd.xlane.f32.xlu0 %v1011
        %v1013 = vpop.xlane.xlu0 %1012
        %v1014 = vrot.slane %v1013, 4
        %v1015 = vadd.f32 %v1013, %v1014
        %v1016 = vrot.slane %v1015, 2
        %v1017 = vadd.f32 %v1015, %v1016
        %v1018 = vrot.slane %v1017, 1
        %v1019 = vadd.f32 %v1017, %v1018
        %s1020 = vtos %v1019
        %v1021 = vmul.f32 %v976, %v985
        %v1022 = vmul.f32 %v977, %v987
        %v1023 = vmul.f32 %v978, %v989
        %v1024 = vmul.f32 %v979, %v991
        %v1025 = vsel %vm1004, %v1021, 0.0
        %v1026 = vsel %vm1004, %v1022, 0.0
        %v1027 = vadd.f32 %v1025, %v1026
        %v1028 = vsel %vm1004, %v1023, 0.0
        %v1029 = vadd.f32 %v1027, %v1028
        %v1030 = vsel %vm1004, %v1024, 0.0
        %v1031 = vadd.f32 %v1029, %v1030
        %1032 = vadd.xlane.f32.xlu0 %v1031
        %v1033 = vpop.xlane.xlu0 %1032
        %v1034 = vrot.slane %v1033, 4
        %v1035 = vadd.f32 %v1033, %v1034
        %v1036 = vrot.slane %v1035, 2
        %v1037 = vadd.f32 %v1035, %v1036
        %v1038 = vrot.slane %v1037, 1
        %v1039 = vadd.f32 %v1037, %v1038
        %s1040 = vtos %v1039
        %v1041 = vmul.f32 %v947, 1.442695
        %v1042 = vpow.pop %v1041
        %v1043 = vmul.f32 %v950, 1.442695
        %v1044 = vpow.pop %v1043
        %v1045 = vmul.f32 %v953, 1.442695
        %v1046 = vpow.pop %v1045
        %v1047 = vmul.f32 %v956, 1.442695
        %v1048 = vpow.pop %v1047
        %v1049 = vmul.f32 %v976, %v491
        %v1050 = vmul.f32 %v977, %v492
        %v1051 = vmul.f32 %v978, %v493
        %v1052 = vmul.f32 %v979, %v494
        %v1054 = vsel %vm562, %v495, 0
        %v1057 = vsel %vm562, %v496, 0
        %v1060 = vsel %vm562, %v497, 0
        %v1063 = vsel %vm562, %v498, 0
        %1065 = vmatpush.msra.mxu0 0.0
        %1066 = vmatpush.msra.mxu0 0.0
        %1067 = vmatpush.msra.mxu0 0.0
        %1068 = vmatpush.msra.mxu0 0.0
        %1069 = vmatpush.msra.mxu0 0.0
        %1070 = vmatpush.msra.mxu0 0.0
        %1071 = vmatpush.msra.mxu0 0.0
        %1072 = vmatpush.msra.mxu0 0.0
        %1073 = vmatpush.msra.mxu0 0.0
        %1074 = vmatpush.msra.mxu0 0.0
        %1075 = vmatpush.msra.mxu0 0.0
        %1076 = vmatpush.msra.mxu0 0.0
        %1077 = vmatpush.msra.mxu0 %v1048
        %1078 = vmatpush.msra.mxu0 %v1046
        %1079 = vmatpush.msra.mxu0 %v1044
        %1080 = vmatpush.msra.mxu0 %v1042
        %1081 = vmatmul.f32.gmra.mxu0 %v1054
        %v1082 = vpop.f32.mrf.mxu0
        %v1083 = vadd.f32 0.0, %v1082
        %1084 = vmatmul.f32.gmra.mxu0 %v1057
        %v1085 = vpop.f32.mrf.mxu0
        %v1086 = vadd.f32 0.0, %v1085
        %1087 = vmatmul.f32.gmra.mxu0 %v1060
        %v1088 = vpop.f32.mrf.mxu0
        %v1089 = vadd.f32 0.0, %v1088
        %1090 = vmatmul.f32.gmra.mxu0 %v1063
        %v1091 = vpop.f32.mrf.mxu0
        %v1092 = vadd.f32 0.0, %v1091
        %1093 = vdwg.mxu0
        %v1094 = vmul.f32 %v1049, %v1083
        %v1095 = vmul.f32 %v1050, %v1086
        %v1096 = vmul.f32 %v1051, %v1089
        %v1097 = vmul.f32 %v1052, %v1092
        %v1098 = vsel %vm562, %v1094, 0.0
        %v1099 = vsel %vm562, %v1095, 0.0
        %v1100 = vadd.f32 %v1098, %v1099
        %v1101 = vsel %vm562, %v1096, 0.0
        %v1102 = vadd.f32 %v1100, %v1101
        %v1103 = vsel %vm562, %v1097, 0.0
        %v1104 = vadd.f32 %v1102, %v1103
        %1105 = vadd.xlane.f32.xlu0 %v1104
        %v1106 = vpop.xlane.xlu0 %1105
        %v1107 = vrot.slane %v1106, 4
        %v1108 = vadd.f32 %v1106, %v1107
        %v1109 = vrot.slane %v1108, 2
        %v1110 = vadd.f32 %v1108, %v1109
        %v1111 = vrot.slane %v1110, 1
        %v1112 = vadd.f32 %v1110, %v1111
        %s1113 = vtos %v1112
        %v1114 = vmul.f32 %v976, %v507
        %v1115 = vmul.f32 %v977, %v508
        %v1116 = vmul.f32 %v978, %v509
        %v1117 = vmul.f32 %v979, %v510
        %v1118 = vmul.f32 %v1114, %v1042
        %v1119 = vmul.f32 %v1115, %v1044
        %v1120 = vmul.f32 %v1116, %v1046
        %v1121 = vmul.f32 %v1117, %v1048
        %v1122 = vsel %vm562, %v1118, 0.0
        %v1123 = vsel %vm562, %v1119, 0.0
        %v1124 = vadd.f32 %v1122, %v1123
        %v1125 = vsel %vm562, %v1120, 0.0
        %v1126 = vadd.f32 %v1124, %v1125
        %v1127 = vsel %vm562, %v1121, 0.0
        %v1128 = vadd.f32 %v1126, %v1127
        %1129 = vadd.xlane.f32.xlu0 %v1128
        %v1130 = vpop.xlane.xlu0 %1129
        %v1131 = vrot.slane %v1130, 4
        %v1132 = vadd.f32 %v1130, %v1131
        %v1133 = vrot.slane %v1132, 2
        %v1134 = vadd.f32 %v1132, %v1133
        %v1135 = vrot.slane %v1134, 1
        %v1136 = vadd.f32 %v1134, %v1135
        %s1137 = vtos %v1136
        %s1138 = sadd.f32 %s1020, %s1113
        %s1139 = sadd.f32 %s1138, %s1137
        %s1140 = ssub.f32 %s1139, %s1040
        %v1141 = vstv %s1140
        %v1142 = vlog2.pop %v1141
        %v1143 = vmul.f32 %v1142, 0.6931472
        %s1144 = vtos %v1143
        %v1145 = vmul.f32 %v793, %v976
        %v1146 = vmul.f32 %v794, %v977
        %v1147 = vmul.f32 %v795, %v978
        %v1148 = vmul.f32 %v796, %v979
        %1149 = vst [vmem:[%s469] sm:$0xff] %v1145
        %1150 = vst [vmem:[%s469 + $0x8] sm:$0xff] %v1146
        %1151 = vst [vmem:[%s469 + $0x10] sm:$0xff] %v1147
        %1152 = vst [vmem:[%s469 + $0x18] sm:$0xff] %v1148
        %v1153 = vstv %s1144
        %v1154 = vadd.f32 %v1153, 0.0
        %1155 = vst [vmem:[%s454] sm:$0xff] %v1154
        %p1156 = scmp.lt.s32.totalorder %s40, 3
        %s1157 = scalar_select %p1156, %s40, 3
        %s1158 = smul.addr %s1157, 4
        %s1159 = smul.addr %s1158, 8
        %s1160 = scalar_lea.vmem %s7, %s1159
        %s1161 = sand.u32 %s230, 1
        %s1162 = scalar_lea.sflag [#allocation6], %s1161
        %s1163 = sand.u32 %s230, 1
        %s1164 = smul.addr %s1163, 8
        %s1165 = scalar_lea.vmem [#allocation12], %s1164
        // Predicated region
        $region61: #{my_model_forward.5} parent=43 // pred_check
          %p1166 = pneg %p214
        $region62: #{my_model_forward.5} parent=43 // pred_check_branch
          %1168 = sbr.rel (%p1166) target = $region64
        $region63: #{my_model_forward.5} parent=43 // pred_region
          _
        $region64: #{my_model_forward.5} parent=43 // pred_fallthru
          _
        // Predicated region
        $region65: #{my_model_forward.5} parent=43 // pred_check
          %p1169 = pneg %p240
        $region66: #{my_model_forward.5} parent=43 // pred_check_branch
          %1171 = sbr.rel (%p1169) target = $region68
        $region67: #{my_model_forward.5} parent=43 // pred_region
          %1173 = vsyncadd %s1162, 0
          %s1174 = smul.addr %s40, 8
          %s1175 = scalar_lea.hbm %s8, %s1174
          %s1177 = sshll.u32 %s1165, 4
          %s1178 = int_to_ptr.vmem [resolvable:$true] %s1177
          %s1179 = sshll.u32 %s1175, 4
          %s1180 = int_to_ptr.hbm [resolvable:$true] %s1179
          %1182 = dma.vmem_to_hbm [thread:$0]  %s1178, 128, %s1180, %s1162
        $region68: #{my_model_forward.5} parent=43 // pred_fallthru
          _
      $region44: #{my_model_forward.5} parent=5 // pred_fallthru
        _
      %p1183 = scmp.le.s32.totalorder 2, %s35
      // Predicated region
      $region69: #{my_model_forward.5} parent=5 // pred_check
        %p1184 = pneg %p1183
      $region70: #{my_model_forward.5} parent=5 // pred_check_branch
        %1186 = sbr.rel (%p1184) target = $region72
      $region71: #{my_model_forward.5} parent=5 // pred_region
        %s1187 = ssub.s32 %s35, 2
        // Predicated region
        $region73: #{my_model_forward.5} parent=71 // pred_check
          %p1188 = pneg %p220
        $region74: #{my_model_forward.5} parent=71 // pred_check_branch
          %1190 = sbr.rel (%p1188) target = $region76
        $region75: #{my_model_forward.5} parent=71 // pred_region
          %p1191 = scmp.lt.s32.totalorder %s41, 3
          %s1192 = scalar_select %p1191, %s41, 3
          %s1193 = smul.addr %s1192, 4
          %s1194 = smul.addr %s1193, 8
          %s1195 = scalar_lea.vmem %s7, %s1194
        $region76: #{my_model_forward.5} parent=71 // pred_fallthru
          _
        // Predicated region
        $region77: #{my_model_forward.5} parent=71 // pred_check
          %p1196 = pneg %p246
        $region78: #{my_model_forward.5} parent=71 // pred_check_branch
          %1198 = sbr.rel (%p1196) target = $region80
        $region79: #{my_model_forward.5} parent=71 // pred_region
          %s1199 = sand.u32 %s231, 1
          %s1200 = scalar_lea.sflag [#allocation6], %s1199
          %s1201 = sand.u32 %s231, 1
          %s1202 = smul.addr %s1201, 8
          %s1203 = scalar_lea.vmem [#allocation12], %s1202
          %1205 = dma.done %s1200, 128
        $region80: #{my_model_forward.5} parent=71 // pred_fallthru
          _
      $region72: #{my_model_forward.5} parent=5 // pred_fallthru
        _
    $region6: #{my_model_forward.5} parent=1 // loop_footer
      %s39 = sadd.s32 1, %s35
    $region7: #{my_model_forward.5} parent=1 // loop_footer_branch
      %34 = sbr.rel target = $region3
    $region8: #{my_model_forward.5} parent=1 // loop_exit
      _
    %1206 = vsyncpa [#allocation5], 1
    %s1207 = scalar_lea.sflag [#allocation5], 1
    %1208 = vsyncpa %s1207, 1
    %1209 = vsyncpa [#allocation8], 1
    %s1210 = scalar_lea.sflag [#allocation8], 1
    %1211 = vsyncpa %s1210, 1
    %1212 = vsyncpa [#allocation11], 1
    %s1213 = scalar_lea.sflag [#allocation11], 1
    %1214 = vsyncpa %s1213, 1
    %1215 = vsyncpa [#allocation6], 1
    %s1216 = scalar_lea.sflag [#allocation6], 1
    %1217 = vsyncpa %s1216, 1

// kernel: my_model_forward.6
$region0: #{my_model_forward.6}
  #allocation0 [shape = 'u32[]', space=smem, size = 0x4, offset = 0x4, fixed_abs, tag = 'smem constant byte address 0x4 - core index']
  #allocation1 [shape = 'u32[72,128]{1,0:T(1,128)}', space=vmem, size = 0x9000, scoped, tag = 'internal scratch']
  #allocation2 [shape = 's32[1]{0}', space=sflag, size = 0x4, scoped, tag = 'scoped memory for my_model_forward.6']
  #allocation3 [shape = 'u8[512]{0}', space=smem, size = 0x200, scoped, tag = 'prefetched SMEM operand 0']
  %s0 = inlined_call_operand.vmem [shape: s32[4], index: 0, kind: input, shape index: {}]
  %s1 = inlined_call_operand.hbm [shape: f32[4,32,32], index: 1, kind: input, shape index: {}]
  %s2 = inlined_call_operand.hbm [shape: f32[4,32,32], index: 2, kind: input, shape index: {}]
  %s3 = inlined_call_operand.vmem [shape: f32[4,32,128], index: 3, kind: input, shape index: {}]
  %s4 = inlined_call_operand.vmem [shape: f32[4,128,128], index: 4, kind: input, shape index: {}]
  %s5 = inlined_call_operand.vmem [shape: f32[4,1,128], index: 5, kind: input, shape index: {}]
  %s6 = inlined_call_operand.vmem [shape: f32[4,1,128], index: 6, kind: input, shape index: {}]
  %s7 = inlined_call_operand.vmem [shape: f32[4,32,128], index: 7, kind: output, shape index: {0}]
  %s8 = inlined_call_operand.vmem [shape: f32[4,8,128], index: 8, kind: output, shape index: {1}]
  %9 = xla_tuple %s7, %s8
  %s10 = sld [smem:[#allocation0]]
  $region73: #{my_model_forward.6} parent=0
    _
  %s12 = ssub.s32 1, %s10
  %s13 = scalar_select 0, %s12, %s10
  %s15 = sshll.u32 %s0, 4
  %s16 = int_to_ptr.vmem [resolvable:$true] %s15
  %18 = dma.vmem_to_smem %s16, 16, [#allocation3], [#allocation2]
  %20 = dma.done [#allocation2], 16
  %21 = sfence
  $region1: #{my_model_forward.6} parent=0
    #allocation4 [shape = 'u8[32768]{0}', space=vmem, size = 0x8000, scoped, tag = 'input window, operand 1']
    #allocation5 [shape = 's32[2]{0}', space=sflag, size = 0x8, scoped, tag = 'scoped memory for my_model_forward.6']
    #allocation6 [shape = 'u8[32768]{0}', space=vmem, size = 0x8000, scoped, tag = 'input window, operand 2']
    #allocation7 [shape = 's32[2]{0}', space=sflag, size = 0x8, scoped, tag = 'scoped memory for my_model_forward.6']
    %22 = vsyncpa [#allocation5], 0
    %s23 = scalar_lea.sflag [#allocation5], 1
    %24 = vsyncpa %s23, 0
    %25 = vsyncpa [#allocation7], 0
    %s26 = scalar_lea.sflag [#allocation7], 1
    %27 = vsyncpa %s26, 0
    loop: start=0, step=1, limit=6
    $region2: #{my_model_forward.6} parent=1 // loop_pre_header
      _
    $region3: #{my_model_forward.6} parent=1 // loop_header
      %s29 = sphi 0, %s33
      %p30 = scmp.ge.s32.totalorder %s29, 6
      %s39 = sphi 0, %s41
      %s42 = sphi 0, %s39
      %s43 = sphi 0, %s42
      %s59 = sphi 0, %s43
      %s65 = sphi 0, %s67
      %s68 = sphi 0, %s65
      %s69 = sphi 0, %s68
      %s85 = sphi 0, %s69
      %s91 = sphi 0, %s93
      %s94 = sphi 0, %s91
      %s95 = sphi 0, %s94
      %s111 = sphi 0, %s95
      %s117 = sphi 0, %s119
      %s120 = sphi 0, %s117
      %s121 = sphi 0, %s120
      %s137 = sphi 0, %s121
      %s143 = sphi 0, %s145
      %s146 = sphi 0, %s143
      %s147 = sphi 0, %s146
      %s163 = sphi 0, %s147
      %s169 = sphi 0, %s171
      %s172 = sphi 0, %s169
      %s173 = sphi 0, %s172
      %s189 = sphi 0, %s173
      %s195 = sphi 0, %s197
      %s198 = sphi 0, %s195
      %s199 = sphi 0, %s198
      %s215 = sphi 0, %s199
      %s221 = sphi 0, %s223
      %s224 = sphi 0, %s221
      %s225 = sphi 0, %s224
      %s241 = sphi 0, %s225
    $region4: #{my_model_forward.6} parent=1 // loop_header_branch
      %32 = sbr.rel (%p30) target = $region8
    $region5: #{my_model_forward.6} parent=1 // loop_body
      %s34 = ssub.s32 %s29, 1
      %s35 = ssub.s32 %s29, 2
      %s36 = sadd.s32 %s29, 1
      %s37 = ssub.s32 %s29, %s36
      %p38 = scmp.eq.s32.totalorder %s37, 0
      %s40 = sadd.s32 %s39, 1
      %s41 = scalar_select %p38, %s39, %s40
      %p44 = pneg %p38
      %p45 = scmp.eq.s32.totalorder %s29, 3
      %p46 = por %p44, %p45
      %p47 = scmp.ne.s32.totalorder %s39, %s42
      %p48 = scmp.eq.s32.totalorder %s29, 0
      %p49 = por %p47, %p48
      %p50 = scmp.ne.s32.totalorder %s39, %s42
      %p51 = scmp.eq.s32.totalorder %s34, 3
      %p52 = por %p50, %p51
      %p53 = scmp.ne.s32.totalorder %s42, %s43
      %p54 = scmp.eq.s32.totalorder %s34, 0
      %p55 = por %p53, %p54
      %p56 = scmp.ne.s32.totalorder %s42, %s43
      %p57 = scmp.eq.s32.totalorder %s35, 3
      %p58 = por %p56, %p57
      %p60 = scmp.ne.s32.totalorder %s43, %s59
      %p61 = scmp.eq.s32.totalorder %s35, 0
      %p62 = por %p60, %p61
      %s63 = ssub.s32 %s29, %s36
      %p64 = scmp.eq.s32.totalorder %s63, 0
      %s66 = sadd.s32 %s65, 1
      %s67 = scalar_select %p64, %s65, %s66
      %p70 = pneg %p64
      %p71 = scmp.eq.s32.totalorder %s29, 3
      %p72 = por %p70, %p71
      %p73 = scmp.ne.s32.totalorder %s65, %s68
      %p74 = scmp.eq.s32.totalorder %s29, 0
      %p75 = por %p73, %p74
      %p76 = scmp.ne.s32.totalorder %s65, %s68
      %p77 = scmp.eq.s32.totalorder %s34, 3
      %p78 = por %p76, %p77
      %p79 = scmp.ne.s32.totalorder %s68, %s69
      %p80 = scmp.eq.s32.totalorder %s34, 0
      %p81 = por %p79, %p80
      %p82 = scmp.ne.s32.totalorder %s68, %s69
      %p83 = scmp.eq.s32.totalorder %s35, 3
      %p84 = por %p82, %p83
      %p86 = scmp.ne.s32.totalorder %s69, %s85
      %p87 = scmp.eq.s32.totalorder %s35, 0
      %p88 = por %p86, %p87
      %s89 = ssub.s32 %s29, %s36
      %p90 = scmp.eq.s32.totalorder %s89, 0
      %s92 = sadd.s32 %s91, 1
      %s93 = scalar_select %p90, %s91, %s92
      %p96 = pneg %p90
      %p97 = scmp.eq.s32.totalorder %s29, 3
      %p98 = por %p96, %p97
      %p99 = scmp.ne.s32.totalorder %s91, %s94
      %p100 = scmp.eq.s32.totalorder %s29, 0
      %p101 = por %p99, %p100
      %p102 = scmp.ne.s32.totalorder %s91, %s94
      %p103 = scmp.eq.s32.totalorder %s34, 3
      %p104 = por %p102, %p103
      %p105 = scmp.ne.s32.totalorder %s94, %s95
      %p106 = scmp.eq.s32.totalorder %s34, 0
      %p107 = por %p105, %p106
      %p108 = scmp.ne.s32.totalorder %s94, %s95
      %p109 = scmp.eq.s32.totalorder %s35, 3
      %p110 = por %p108, %p109
      %p112 = scmp.ne.s32.totalorder %s95, %s111
      %p113 = scmp.eq.s32.totalorder %s35, 0
      %p114 = por %p112, %p113
      %s115 = ssub.s32 %s29, %s36
      %p116 = scmp.eq.s32.totalorder %s115, 0
      %s118 = sadd.s32 %s117, 1
      %s119 = scalar_select %p116, %s117, %s118
      %p122 = pneg %p116
      %p123 = scmp.eq.s32.totalorder %s29, 3
      %p124 = por %p122, %p123
      %p125 = scmp.ne.s32.totalorder %s117, %s120
      %p126 = scmp.eq.s32.totalorder %s29, 0
      %p127 = por %p125, %p126
      %p128 = scmp.ne.s32.totalorder %s117, %s120
      %p129 = scmp.eq.s32.totalorder %s34, 3
      %p130 = por %p128, %p129
      %p131 = scmp.ne.s32.totalorder %s120, %s121
      %p132 = scmp.eq.s32.totalorder %s34, 0
      %p133 = por %p131, %p132
      %p134 = scmp.ne.s32.totalorder %s120, %s121
      %p135 = scmp.eq.s32.totalorder %s35, 3
      %p136 = por %p134, %p135
      %p138 = scmp.ne.s32.totalorder %s121, %s137
      %p139 = scmp.eq.s32.totalorder %s35, 0
      %p140 = por %p138, %p139
      %s141 = ssub.s32 %s29, %s36
      %p142 = scmp.eq.s32.totalorder %s141, 0
      %s144 = sadd.s32 %s143, 1
      %s145 = scalar_select %p142, %s143, %s144
      %p148 = pneg %p142
      %p149 = scmp.eq.s32.totalorder %s29, 3
      %p150 = por %p148, %p149
      %p151 = scmp.ne.s32.totalorder %s143, %s146
      %p152 = scmp.eq.s32.totalorder %s29, 0
      %p153 = por %p151, %p152
      %p154 = scmp.ne.s32.totalorder %s143, %s146
      %p155 = scmp.eq.s32.totalorder %s34, 3
      %p156 = por %p154, %p155
      %p157 = scmp.ne.s32.totalorder %s146, %s147
      %p158 = scmp.eq.s32.totalorder %s34, 0
      %p159 = por %p157, %p158
      %p160 = scmp.ne.s32.totalorder %s146, %s147
      %p161 = scmp.eq.s32.totalorder %s35, 3
      %p162 = por %p160, %p161
      %p164 = scmp.ne.s32.totalorder %s147, %s163
      %p165 = scmp.eq.s32.totalorder %s35, 0
      %p166 = por %p164, %p165
      %s167 = ssub.s32 %s29, %s36
      %p168 = scmp.eq.s32.totalorder %s167, 0
      %s170 = sadd.s32 %s169, 1
      %s171 = scalar_select %p168, %s169, %s170
      %p174 = pneg %p168
      %p175 = scmp.eq.s32.totalorder %s29, 3
      %p176 = por %p174, %p175
      %p177 = scmp.ne.s32.totalorder %s169, %s172
      %p178 = scmp.eq.s32.totalorder %s29, 0
      %p179 = por %p177, %p178
      %p180 = scmp.ne.s32.totalorder %s169, %s172
      %p181 = scmp.eq.s32.totalorder %s34, 3
      %p182 = por %p180, %p181
      %p183 = scmp.ne.s32.totalorder %s172, %s173
      %p184 = scmp.eq.s32.totalorder %s34, 0
      %p185 = por %p183, %p184
      %p186 = scmp.ne.s32.totalorder %s172, %s173
      %p187 = scmp.eq.s32.totalorder %s35, 3
      %p188 = por %p186, %p187
      %p190 = scmp.ne.s32.totalorder %s173, %s189
      %p191 = scmp.eq.s32.totalorder %s35, 0
      %p192 = por %p190, %p191
      %s193 = ssub.s32 %s29, %s36
      %p194 = scmp.eq.s32.totalorder %s193, 0
      %s196 = sadd.s32 %s195, 1
      %s197 = scalar_select %p194, %s195, %s196
      %p200 = pneg %p194
      %p201 = scmp.eq.s32.totalorder %s29, 3
      %p202 = por %p200, %p201
      %p203 = scmp.ne.s32.totalorder %s195, %s198
      %p204 = scmp.eq.s32.totalorder %s29, 0
      %p205 = por %p203, %p204
      %p206 = scmp.ne.s32.totalorder %s195, %s198
      %p207 = scmp.eq.s32.totalorder %s34, 3
      %p208 = por %p206, %p207
      %p209 = scmp.ne.s32.totalorder %s198, %s199
      %p210 = scmp.eq.s32.totalorder %s34, 0
      %p211 = por %p209, %p210
      %p212 = scmp.ne.s32.totalorder %s198, %s199
      %p213 = scmp.eq.s32.totalorder %s35, 3
      %p214 = por %p212, %p213
      %p216 = scmp.ne.s32.totalorder %s199, %s215
      %p217 = scmp.eq.s32.totalorder %s35, 0
      %p218 = por %p216, %p217
      %s219 = ssub.s32 %s29, %s36
      %p220 = scmp.eq.s32.totalorder %s219, 0
      %s222 = sadd.s32 %s221, 1
      %s223 = scalar_select %p220, %s221, %s222
      %p226 = pneg %p220
      %p227 = scmp.eq.s32.totalorder %s29, 3
      %p228 = por %p226, %p227
      %p229 = scmp.ne.s32.totalorder %s221, %s224
      %p230 = scmp.eq.s32.totalorder %s29, 0
      %p231 = por %p229, %p230
      %p232 = scmp.ne.s32.totalorder %s221, %s224
      %p233 = scmp.eq.s32.totalorder %s34, 3
      %p234 = por %p232, %p233
      %p235 = scmp.ne.s32.totalorder %s224, %s225
      %p236 = scmp.eq.s32.totalorder %s34, 0
      %p237 = por %p235, %p236
      %p238 = scmp.ne.s32.totalorder %s224, %s225
      %p239 = scmp.eq.s32.totalorder %s35, 3
      %p240 = por %p238, %p239
      %p242 = scmp.ne.s32.totalorder %s225, %s241
      %p243 = scmp.eq.s32.totalorder %s35, 0
      %p244 = por %p242, %p243
      %p245 = scmp.le.s32.totalorder 1, %s29
      %p246 = scmp.lt.s32.totalorder %s29, 5
      %p247 = pnand %p245, %p246
      %p248 = pneg %p247
      // Predicated region
      $region9: #{my_model_forward.6} parent=5 // pred_check
        _
      $region10: #{my_model_forward.6} parent=5 // pred_check_branch
        %250 = sbr.rel (%p247) target = $region12
      $region11: #{my_model_forward.6} parent=5 // pred_region
        %s251 = ssub.s32 %s29, 1
      $region12: #{my_model_forward.6} parent=5 // pred_fallthru
        _
      %p252 = scmp.lt.s32.totalorder %s29, 4
      // Predicated region
      $region13: #{my_model_forward.6} parent=5 // pred_check
        %p253 = pneg %p252
      $region14: #{my_model_forward.6} parent=5 // pred_check_branch
        %255 = sbr.rel (%p253) target = $region16
      $region15: #{my_model_forward.6} parent=5 // pred_region
        // Predicated region
        $region17: #{my_model_forward.6} parent=15 // pred_check
          %p256 = pneg %p49
        $region18: #{my_model_forward.6} parent=15 // pred_check_branch
          %258 = sbr.rel (%p256) target = $region20
        $region19: #{my_model_forward.6} parent=15 // pred_region
          %s259 = sand.u32 %s39, 1
          %s260 = scalar_lea.sflag [#allocation5], %s259
          %s261 = sand.u32 %s39, 1
          %s262 = smul.addr %s261, 32
          %s263 = scalar_lea.vmem [#allocation4], %s262
          %265 = vsyncadd %s260, 0
          %s266 = smul.addr %s29, 4
          %s267 = smul.addr %s266, 8
          %s268 = scalar_lea.hbm %s1, %s267
          %s269 = sshll.u32 %s268, 4
          %s270 = int_to_ptr.hbm [resolvable:$true] %s269
          %s271 = sshll.u32 %s263, 4
          %s272 = int_to_ptr.vmem [resolvable:$true] %s271
          %277 = dma.hbm_to_vmem [thread:$0]  %s270, 512, %s272, %s260, 128, 128, 8
        $region20: #{my_model_forward.6} parent=15 // pred_fallthru
          _
        // Predicated region
        $region21: #{my_model_forward.6} parent=15 // pred_check
          %p278 = pneg %p75
        $region22: #{my_model_forward.6} parent=15 // pred_check_branch
          %280 = sbr.rel (%p278) target = $region24
        $region23: #{my_model_forward.6} parent=15 // pred_region
          %s281 = sand.u32 %s65, 1
          %s282 = scalar_lea.sflag [#allocation7], %s281
          %s283 = sand.u32 %s65, 1
          %s284 = smul.addr %s283, 32
          %s285 = scalar_lea.vmem [#allocation6], %s284
          %287 = vsyncadd %s282, 0
          %s288 = smul.addr %s29, 4
          %s289 = smul.addr %s288, 8
          %s290 = scalar_lea.hbm %s2, %s289
          %s291 = sshll.u32 %s290, 4
          %s292 = int_to_ptr.hbm [resolvable:$true] %s291
          %s293 = sshll.u32 %s285, 4
          %s294 = int_to_ptr.vmem [resolvable:$true] %s293
          %299 = dma.hbm_to_vmem [thread:$0]  %s292, 512, %s294, %s282, 128, 128, 8
        $region24: #{my_model_forward.6} parent=15 // pred_fallthru
          _
        // Predicated region
        $region25: #{my_model_forward.6} parent=15 // pred_check
          %p300 = pneg %p101
        $region26: #{my_model_forward.6} parent=15 // pred_check_branch
          %302 = sbr.rel (%p300) target = $region28
        $region27: #{my_model_forward.6} parent=15 // pred_region
          %p303 = scmp.lt.s32.totalorder %s29, 3
          %s304 = scalar_select %p303, %s29, 3
          %s305 = smul.addr %s304, 4
          %s306 = smul.addr %s305, 8
          %s307 = scalar_lea.vmem %s3, %s306
        $region28: #{my_model_forward.6} parent=15 // pred_fallthru
          _
        // Predicated region
        $region29: #{my_model_forward.6} parent=15 // pred_check
          %p308 = pneg %p127
        $region30: #{my_model_forward.6} parent=15 // pred_check_branch
          %310 = sbr.rel (%p308) target = $region32
        $region31: #{my_model_forward.6} parent=15 // pred_region
          %p311 = scmp.lt.s32.totalorder %s29, 3
          %s312 = scalar_select %p311, %s29, 3
          %s313 = smul.addr %s312, 16
          %s314 = smul.addr %s313, 8
          %s315 = scalar_lea.vmem %s4, %s314
        $region32: #{my_model_forward.6} parent=15 // pred_fallthru
          _
        // Predicated region
        $region33: #{my_model_forward.6} parent=15 // pred_check
          %p316 = pneg %p153
        $region34: #{my_model_forward.6} parent=15 // pred_check_branch
          %318 = sbr.rel (%p316) target = $region36
        $region35: #{my_model_forward.6} parent=15 // pred_region
          %p319 = scmp.lt.s32.totalorder %s29, 3
          %s320 = scalar_select %p319, %s29, 3
          %s321 = scalar_lea.vmem %s5, %s320
        $region36: #{my_model_forward.6} parent=15 // pred_fallthru
          _
        // Predicated region
        $region37: #{my_model_forward.6} parent=15 // pred_check
          %p322 = pneg %p179
        $region38: #{my_model_forward.6} parent=15 // pred_check_branch
          %324 = sbr.rel (%p322) target = $region40
        $region39: #{my_model_forward.6} parent=15 // pred_region
          %p325 = scmp.lt.s32.totalorder %s29, 3
          %s326 = scalar_select %p325, %s29, 3
          %s327 = scalar_lea.vmem %s6, %s326
        $region40: #{my_model_forward.6} parent=15 // pred_fallthru
          _
      $region16: #{my_model_forward.6} parent=5 // pred_fallthru
        _
      %p328 = scmp.le.s32.totalorder 1, %s29
      %p329 = scmp.lt.s32.totalorder %s29, 5
      %p330 = pnand %p328, %p329
      %p331 = pneg %p330
      // Predicated region
      $region41: #{my_model_forward.6} parent=5 // pred_check
        _
      $region42: #{my_model_forward.6} parent=5 // pred_check_branch
        %333 = sbr.rel (%p330) target = $region44
      $region43: #{my_model_forward.6} parent=5 // pred_region
        %s334 = ssub.s32 %s29, 1
        %s335 = sand.u32 %s42, 1
        %s336 = scalar_lea.sflag [#allocation5], %s335
        %s337 = sand.u32 %s42, 1
        %s338 = smul.addr %s337, 32
        %s339 = scalar_lea.vmem [#allocation4], %s338
        // Predicated region
        $region45: #{my_model_forward.6} parent=43 // pred_check
          %p340 = pneg %p55
        $region46: #{my_model_forward.6} parent=43 // pred_check_branch
          %342 = sbr.rel (%p340) target = $region48
        $region47: #{my_model_forward.6} parent=43 // pred_region
          %344 = dma.done %s336, 512
        $region48: #{my_model_forward.6} parent=43 // pred_fallthru
          _
        %s345 = sand.u32 %s68, 1
        %s346 = scalar_lea.sflag [#allocation7], %s345
        %s347 = sand.u32 %s68, 1
        %s348 = smul.addr %s347, 32
        %s349 = scalar_lea.vmem [#allocation6], %s348
        // Predicated region
        $region49: #{my_model_forward.6} parent=43 // pred_check
          %p350 = pneg %p81
        $region50: #{my_model_forward.6} parent=43 // pred_check_branch
          %352 = sbr.rel (%p350) target = $region52
        $region51: #{my_model_forward.6} parent=43 // pred_region
          %354 = dma.done %s346, 512
        $region52: #{my_model_forward.6} parent=43 // pred_fallthru
          _
        %s355 = sand.u32 %s42, 1
        %s356 = scalar_lea.sflag [#allocation5], %s355
        %s357 = sand.u32 %s42, 1
        %s358 = smul.addr %s357, 32
        %s359 = scalar_lea.vmem [#allocation4], %s358
        %p360 = pneg %p55
        %p361 = pneg %p52
        %s362 = sand.u32 %s68, 1
        %s363 = scalar_lea.sflag [#allocation7], %s362
        %s364 = sand.u32 %s68, 1
        %s365 = smul.addr %s364, 32
        %s366 = scalar_lea.vmem [#allocation6], %s365
        %p367 = pneg %p81
        %p368 = pneg %p78
        %p369 = scmp.lt.s32.totalorder %s34, 3
        %s370 = scalar_select %p369, %s34, 3
        %s371 = smul.addr %s370, 4
        %s372 = smul.addr %s371, 8
        %s373 = scalar_lea.vmem %s3, %s372
        %p374 = pneg %p107
        %p375 = pneg %p104
        %p376 = scmp.lt.s32.totalorder %s34, 3
        %s377 = scalar_select %p376, %s34, 3
        %s378 = smul.addr %s377, 16
        %s379 = smul.addr %s378, 8
        %s380 = scalar_lea.vmem %s4, %s379
        %p381 = pneg %p133
        %p382 = pneg %p130
        %p383 = scmp.lt.s32.totalorder %s34, 3
        %s384 = scalar_select %p383, %s34, 3
        %s385 = scalar_lea.vmem %s5, %s384
        %p386 = pneg %p159
        %p387 = pneg %p156
        %p388 = scmp.lt.s32.totalorder %s34, 3
        %s389 = scalar_select %p388, %s34, 3
        %s390 = scalar_lea.vmem %s6, %s389
        %p391 = pneg %p185
        %p392 = pneg %p182
        %p393 = pneg %p211
        %p394 = pneg %p208
        %p395 = scmp.lt.s32.totalorder %s34, 3
        %s396 = scalar_select %p395, %s34, 3
        %s397 = smul.addr %s396, 4
        %s398 = smul.addr %s397, 8
        %s399 = scalar_lea.vmem %s7, %s398
        %p400 = pneg %p237
        %p401 = pneg %p234
        %p402 = scmp.lt.s32.totalorder %s34, 3
        %s403 = scalar_select %p402, %s34, 3
        %s404 = smul.addr %s403, 8
        %s405 = scalar_lea.vmem %s8, %s404
        %p406 = scmp.lt.s32.totalorder %s34, 3
        %s407 = scalar_select %p406, %s34, 3
        %s408 = smul.addr %s407, 4
        %s409 = smul.addr %s408, 8
        %s410 = scalar_lea.vmem %s3, %s409
        %p411 = scmp.lt.s32.totalorder %s34, 3
        %s412 = scalar_select %p411, %s34, 3
        %s413 = smul.addr %s412, 16
        %s414 = smul.addr %s413, 8
        %s415 = scalar_lea.vmem %s4, %s414
        %p416 = scmp.lt.s32.totalorder %s34, 3
        %s417 = scalar_select %p416, %s34, 3
        %s418 = scalar_lea.vmem %s5, %s417
        %p419 = scmp.lt.s32.totalorder %s34, 3
        %s420 = scalar_select %p419, %s34, 3
        %s421 = scalar_lea.vmem %s6, %s420
        %p422 = scmp.lt.s32.totalorder %s34, 3
        %s423 = scalar_select %p422, %s34, 3
        %s424 = smul.addr %s423, 4
        %s425 = smul.addr %s424, 8
        %s426 = scalar_lea.vmem %s7, %s425
        %p427 = scmp.lt.s32.totalorder %s34, 3
        %s428 = scalar_select %p427, %s34, 3
        %s429 = smul.addr %s428, 8
        %s430 = scalar_lea.vmem %s8, %s429
        %s432 = sld [smem:[#allocation3 + %s34]]
        %v433 = vld [vmem:[%s339] sm:$0xff]
        %v434 = vld [vmem:[%s339 + $0x8] sm:$0xff]
        %v435 = vld [vmem:[%s339 + $0x10] sm:$0xff]
        %v436 = vld [vmem:[%s339 + $0x18] sm:$0xff]
        %v437 = vlaneseq
        %v438 = vshrl.u32 %v437, 7
        %v439 = vadd.s32 %v438, 8
        %v440 = vadd.s32 %v438, 16
        %v441 = vadd.s32 %v438, 24
        %v442 = vlaneseq
        %v443 = vand.u32 %v442, 127
        %vm444 = vcmp.eq.s32.totalorder %v438, %v443
        %vm445 = vcmp.eq.s32.totalorder %v439, %v443
        %vm446 = vcmp.eq.s32.totalorder %v440, %v443
        %vm447 = vcmp.eq.s32.totalorder %v441, %v443
        %v448 = vsel %vm444, 1, 0
        %v449 = vsel %vm445, 1, 0
        %v450 = vsel %vm446, 1, 0
        %v451 = vsel %vm447, 1, 0
        %v452 = vcvt.s32.f32 %v448
        %v453 = vcvt.s32.f32 %v449
        %v454 = vcvt.s32.f32 %v450
        %v455 = vcvt.s32.f32 %v451
        %v456 = vadd.f32 %v433, %v452
        %v457 = vadd.f32 %v434, %v453
        %v458 = vadd.f32 %v435, %v454
        %v459 = vadd.f32 %v436, %v455
        %v460 = vld [vmem:[%s349] sm:$0xff]
        %v461 = vld [vmem:[%s349 + $0x8] sm:$0xff]
        %v462 = vld [vmem:[%s349 + $0x10] sm:$0xff]
        %v463 = vld [vmem:[%s349 + $0x18] sm:$0xff]
        %v464 = vmul.f32 %v433, %v460
        %v465 = vmul.f32 %v434, %v461
        %v466 = vmul.f32 %v435, %v462
        %v467 = vmul.f32 %v436, %v463
        %v468 = vadd.f32 %v464, %v452
        %v469 = vadd.f32 %v465, %v453
        %v470 = vadd.f32 %v466, %v454
        %v471 = vadd.f32 %v467, %v455
        %v472 = vld [vmem:[%s410] sm:$0xff]
        %v473 = vld [vmem:[%s410 + $0x8] sm:$0xff]
        %v474 = vld [vmem:[%s410 + $0x10] sm:$0xff]
        %v475 = vld [vmem:[%s410 + $0x18] sm:$0xff]
        %v476 = vpack.c.bf16 %v473, %v472
        %v477 = vpack.c.bf16 %v475, %v474
        %v478 = vld [vmem:[%s415] sm:$0xff]
        %v479 = vld [vmem:[%s415 + $0x8] sm:$0xff]
        %v480 = vld [vmem:[%s415 + $0x10] sm:$0xff]
        %v481 = vld [vmem:[%s415 + $0x18] sm:$0xff]
        %v482 = vld [vmem:[%s415 + $0x20] sm:$0xff]
        %v483 = vld [vmem:[%s415 + $0x28] sm:$0xff]
        %v484 = vld [vmem:[%s415 + $0x30] sm:$0xff]
        %v485 = vld [vmem:[%s415 + $0x38] sm:$0xff]
        %v486 = vld [vmem:[%s415 + $0x40] sm:$0xff]
        %v487 = vld [vmem:[%s415 + $0x48] sm:$0xff]
        %v488 = vld [vmem:[%s415 + $0x50] sm:$0xff]
        %v489 = vld [vmem:[%s415 + $0x58] sm:$0xff]
        %v490 = vld [vmem:[%s415 + $0x60] sm:$0xff]
        %v491 = vld [vmem:[%s415 + $0x68] sm:$0xff]
        %v492 = vld [vmem:[%s415 + $0x70] sm:$0xff]
        %v493 = vld [vmem:[%s415 + $0x78] sm:$0xff]
        %v494 = vpack.c.bf16 %v479, %v478
        %v495 = vpack.c.bf16 %v481, %v480
        %v496 = vpack.c.bf16 %v483, %v482
        %v497 = vpack.c.bf16 %v485, %v484
        %v498 = vpack.c.bf16 %v487, %v486
        %v499 = vpack.c.bf16 %v489, %v488
        %v500 = vpack.c.bf16 %v491, %v490
        %v501 = vpack.c.bf16 %v493, %v492
        %502 = vmatpush.bf16.msra.mxu0 %v501
        %503 = vmatpush.bf16.msra.mxu0 %v500
        %504 = vmatpush.bf16.msra.mxu0 %v499
        %505 = vmatpush.bf16.msra.mxu0 %v498
        %506 = vmatpush.bf16.msra.mxu0 %v497
        %507 = vmatpush.bf16.msra.mxu0 %v496
        %508 = vmatpush.bf16.msra.mxu0 %v495
        %509 = vmatpush.bf16.msra.mxu0 %v494
        %510 = vmatmul.bf16.gmra.mxu0 %v476
        %v511 = vpop.f32.mrf.mxu0
        %v512 = vadd.f32 0.0, %v511
        %v513 = vpop.f32.mrf.mxu0
        %v514 = vadd.f32 0.0, %v513
        %515 = vmatmul.bf16.gmra.mxu0 %v477
        %v516 = vpop.f32.mrf.mxu0
        %v517 = vadd.f32 0.0, %v516
        %v518 = vpop.f32.mrf.mxu0
        %v519 = vadd.f32 0.0, %v518
        %520 = vdwg.mxu0
        %v521 = vpack.c.bf16 %v514, %v512
        %v522 = vpack.c.bf16 %v519, %v517
        %vm523 = vcmask 261120
        %v524 = vsel %vm523, %v456, 0.0
        %525 = vadd.xlane.f32.xlu0 %v524
        %v526 = vpop.xlane.xlu0 %525
        %v527 = vsel %vm523, %v457, 0.0
        %528 = vadd.xlane.f32.xlu0 %v527
        %v529 = vpop.xlane.xlu0 %528
        %v530 = vsel %vm523, %v458, 0.0
        %531 = vadd.xlane.f32.xlu0 %v530
        %v532 = vpop.xlane.xlu0 %531
        %v533 = vsel %vm523, %v459, 0.0
        %534 = vadd.xlane.f32.xlu0 %v533
        %v535 = vpop.xlane.xlu0 %534
        %v536 = vrcp.pop %v526
        %v537 = vmul.f32 %v526, %v536
        %v538 = vsub.f32 1.0, %v537
        %v539 = vmul.f32 %v536, %v538
        %v540 = vadd.f32 %v536, %v539
        %vm541 = vweird.f32 %v526
        %vm542 = vweird.f32 %v536
        %vm543 = vmor %vm541, %vm542
        %v544 = vsel %vm543, %v536, %v540
        %v545 = vand.u32 2147483647, %v526
        %vm546 = vcmp.eq.f32.partialorder %v545, 8.507059e+37
        %v547 = vand.u32 %v526, 2147483648
        %v548 = vor.u32 1.1754944e-38, %v547
        %v549 = vsel %vm546, %v548, %v544
        %v550 = vmul.f32 1.0, %v549
        %v551 = vrcp.pop %v529
        %v552 = vmul.f32 %v529, %v551
        %v553 = vsub.f32 1.0, %v552
        %v554 = vmul.f32 %v551, %v553
        %v555 = vadd.f32 %v551, %v554
        %vm556 = vweird.f32 %v529
        %vm557 = vweird.f32 %v551
        %vm558 = vmor %vm556, %vm557
        %v559 = vsel %vm558, %v551, %v555
        %v560 = vand.u32 2147483647, %v529
        %vm561 = vcmp.eq.f32.partialorder %v560, 8.507059e+37
        %v562 = vand.u32 %v529, 2147483648
        %v563 = vor.u32 1.1754944e-38, %v562
        %v564 = vsel %vm561, %v563, %v559
        %v565 = vmul.f32 1.0, %v564
        %v566 = vrcp.pop %v532
        %v567 = vmul.f32 %v532, %v566
        %v568 = vsub.f32 1.0, %v567
        %v569 = vmul.f32 %v566, %v568
        %v570 = vadd.f32 %v566, %v569
        %vm571 = vweird.f32 %v532
        %vm572 = vweird.f32 %v566
        %vm573 = vmor %vm571, %vm572
        %v574 = vsel %vm573, %v566, %v570
        %v575 = vand.u32 2147483647, %v532
        %vm576 = vcmp.eq.f32.partialorder %v575, 8.507059e+37
        %v577 = vand.u32 %v532, 2147483648
        %v578 = vor.u32 1.1754944e-38, %v577
        %v579 = vsel %vm576, %v578, %v574
        %v580 = vmul.f32 1.0, %v579
        %v581 = vrcp.pop %v535
        %v582 = vmul.f32 %v535, %v581
        %v583 = vsub.f32 1.0, %v582
        %v584 = vmul.f32 %v581, %v583
        %v585 = vadd.f32 %v581, %v584
        %vm586 = vweird.f32 %v535
        %vm587 = vweird.f32 %v581
        %vm588 = vmor %vm586, %vm587
        %v589 = vsel %vm588, %v581, %v585
        %v590 = vand.u32 2147483647, %v535
        %vm591 = vcmp.eq.f32.partialorder %v590, 8.507059e+37
        %v592 = vand.u32 %v535, 2147483648
        %v593 = vor.u32 1.1754944e-38, %v592
        %v594 = vsel %vm591, %v593, %v589
        %v595 = vmul.f32 1.0, %v594
        %v596 = vsel %vm523, %v468, 0.0
        %597 = vadd.xlane.f32.xlu0 %v596
        %v598 = vpop.xlane.xlu0 %597
        %v599 = vsel %vm523, %v469, 0.0
        %600 = vadd.xlane.f32.xlu0 %v599
        %v601 = vpop.xlane.xlu0 %600
        %v602 = vsel %vm523, %v470, 0.0
        %603 = vadd.xlane.f32.xlu0 %v602
        %v604 = vpop.xlane.xlu0 %603
        %v605 = vsel %vm523, %v471, 0.0
        %606 = vadd.xlane.f32.xlu0 %v605
        %v607 = vpop.xlane.xlu0 %606
        %v608 = vrcp.pop %v598
        %v609 = vmul.f32 %v598, %v608
        %v610 = vsub.f32 1.0, %v609
        %v611 = vmul.f32 %v608, %v610
        %v612 = vadd.f32 %v608, %v611
        %vm613 = vweird.f32 %v598
        %vm614 = vweird.f32 %v608
        %vm615 = vmor %vm613, %vm614
        %v616 = vsel %vm615, %v608, %v612
        %v617 = vand.u32 2147483647, %v598
        %vm618 = vcmp.eq.f32.partialorder %v617, 8.507059e+37
        %v619 = vand.u32 %v598, 2147483648
        %v620 = vor.u32 1.1754944e-38, %v619
        %v621 = vsel %vm618, %v620, %v616
        %v622 = vmul.f32 1.0, %v621
        %v623 = vrcp.pop %v601
        %v624 = vmul.f32 %v601, %v623
        %v625 = vsub.f32 1.0, %v624
        %v626 = vmul.f32 %v623, %v625
        %v627 = vadd.f32 %v623, %v626
        %vm628 = vweird.f32 %v601
        %vm629 = vweird.f32 %v623
        %vm630 = vmor %vm628, %vm629
        %v631 = vsel %vm630, %v623, %v627
        %v632 = vand.u32 2147483647, %v601
        %vm633 = vcmp.eq.f32.partialorder %v632, 8.507059e+37
        %v634 = vand.u32 %v601, 2147483648
        %v635 = vor.u32 1.1754944e-38, %v634
        %v636 = vsel %vm633, %v635, %v631
        %v637 = vmul.f32 1.0, %v636
        %v638 = vrcp.pop %v604
        %v639 = vmul.f32 %v604, %v638
        %v640 = vsub.f32 1.0, %v639
        %v641 = vmul.f32 %v638, %v640
        %v642 = vadd.f32 %v638, %v641
        %vm643 = vweird.f32 %v604
        %vm644 = vweird.f32 %v638
        %vm645 = vmor %vm643, %vm644
        %v646 = vsel %vm645, %v638, %v642
        %v647 = vand.u32 2147483647, %v604
        %vm648 = vcmp.eq.f32.partialorder %v647, 8.507059e+37
        %v649 = vand.u32 %v604, 2147483648
        %v650 = vor.u32 1.1754944e-38, %v649
        %v651 = vsel %vm648, %v650, %v646
        %v652 = vmul.f32 1.0, %v651
        %v653 = vrcp.pop %v607
        %v654 = vmul.f32 %v607, %v653
        %v655 = vsub.f32 1.0, %v654
        %v656 = vmul.f32 %v653, %v655
        %v657 = vadd.f32 %v653, %v656
        %vm658 = vweird.f32 %v607
        %vm659 = vweird.f32 %v653
        %vm660 = vmor %vm658, %vm659
        %v661 = vsel %vm660, %v653, %v657
        %v662 = vand.u32 2147483647, %v607
        %vm663 = vcmp.eq.f32.partialorder %v662, 8.507059e+37
        %v664 = vand.u32 %v607, 2147483648
        %v665 = vor.u32 1.1754944e-38, %v664
        %v666 = vsel %vm663, %v665, %v661
        %v667 = vmul.f32 1.0, %v666
        %v668 = vpack.c.bf16 %v457, %v456
        %v669 = vpack.c.bf16 %v459, %v458
        %v671 = vsel %vm523, %v668, 0
        %v674 = vsel %vm523, %v669, 0
        %676 = vmatpush.bf16.msra.mxu0 0
        %677 = vmatpush.bf16.msra.mxu0 0
        %678 = vmatpush.bf16.msra.mxu0 0
        %679 = vmatpush.bf16.msra.mxu0 0
        %680 = vmatpush.bf16.msra.mxu0 0
        %681 = vmatpush.bf16.msra.mxu0 0
        %682 = vmatpush.bf16.msra.mxu0 %v522
        %683 = vmatpush.bf16.msra.mxu0 %v521
        %684 = vmatmul.bf16.gmra.mxu0 %v671
        %v685 = vpop.f32.mrf.mxu0
        %v686 = vadd.f32 0.0, %v685
        %v687 = vpop.f32.mrf.mxu0
        %v688 = vadd.f32 0.0, %v687
        %689 = vmatmul.bf16.gmra.mxu0 %v674
        %v690 = vpop.f32.mrf.mxu0
        %v691 = vadd.f32 0.0, %v690
        %v692 = vpop.f32.mrf.mxu0
        %v693 = vadd.f32 0.0, %v692
        %694 = vdwg.mxu0
        %v695 = vmul.f32 %v686, %v550
        %v696 = vmul.f32 %v688, %v565
        %v697 = vmul.f32 %v691, %v580
        %v698 = vmul.f32 %v693, %v595
        %v699 = vld [vmem:[%s418] sm:$0x1]
        %v701 = vperm.slane %v699, 0
        %v703 = vadd.f32 %v695, %v701
        %v704 = vadd.f32 %v696, %v701
        %v705 = vadd.f32 %v697, %v701
        %v706 = vadd.f32 %v698, %v701
        %v707 = vpack.c.bf16 %v469, %v468
        %v708 = vpack.c.bf16 %v471, %v470
        %v710 = vsel %vm523, %v707, 0
        %v713 = vsel %vm523, %v708, 0
        %715 = vmatpush.bf16.msra.mxu0 0
        %716 = vmatpush.bf16.msra.mxu0 0
        %717 = vmatpush.bf16.msra.mxu0 0
        %718 = vmatpush.bf16.msra.mxu0 0
        %719 = vmatpush.bf16.msra.mxu0 0
        %720 = vmatpush.bf16.msra.mxu0 0
        %721 = vmatpush.bf16.msra.mxu0 %v522
        %722 = vmatpush.bf16.msra.mxu0 %v521
        %723 = vmatmul.bf16.gmra.mxu0 %v710
        %v724 = vpop.f32.mrf.mxu0
        %v725 = vadd.f32 0.0, %v724
        %v726 = vpop.f32.mrf.mxu0
        %v727 = vadd.f32 0.0, %v726
        %728 = vmatmul.bf16.gmra.mxu0 %v713
        %v729 = vpop.f32.mrf.mxu0
        %v730 = vadd.f32 0.0, %v729
        %v731 = vpop.f32.mrf.mxu0
        %v732 = vadd.f32 0.0, %v731
        %733 = vdwg.mxu0
        %v734 = vmul.f32 %v725, %v622
        %v735 = vmul.f32 %v727, %v637
        %v736 = vmul.f32 %v730, %v652
        %v737 = vmul.f32 %v732, %v667
        %v738 = vadd.f32 %v734, %v701
        %v739 = vadd.f32 %v735, %v701
        %v740 = vadd.f32 %v736, %v701
        %v741 = vadd.f32 %v737, %v701
        %v742 = vld [vmem:[%s421] sm:$0x1]
        %vm743 = vcmp.gt.f32.partialorder %v703, 0.0
        %vm744 = vcmp.gt.f32.partialorder %v704, 0.0
        %vm745 = vcmp.gt.f32.partialorder %v705, 0.0
        %vm746 = vcmp.gt.f32.partialorder %v706, 0.0
        %v748 = vperm.slane %v742, 0
        %v750 = vmul.f32 %v748, %v703
        %v751 = vmul.f32 %v748, %v704
        %v752 = vmul.f32 %v748, %v705
        %v753 = vmul.f32 %v748, %v706
        %v754 = vsel %vm743, %v703, %v750
        %v755 = vsel %vm744, %v704, %v751
        %v756 = vsel %vm745, %v705, %v752
        %v757 = vsel %vm746, %v706, %v753
        %vm758 = vcmp.gt.f32.partialorder %v738, 0.0
        %vm759 = vcmp.gt.f32.partialorder %v739, 0.0
        %vm760 = vcmp.gt.f32.partialorder %v740, 0.0
        %vm761 = vcmp.gt.f32.partialorder %v741, 0.0
        %v762 = vmul.f32 %v748, %v738
        %v763 = vmul.f32 %v748, %v739
        %v764 = vmul.f32 %v748, %v740
        %v765 = vmul.f32 %v748, %v741
        %v766 = vsel %vm758, %v738, %v762
        %v767 = vsel %vm759, %v739, %v763
        %v768 = vsel %vm760, %v740, %v764
        %v769 = vsel %vm761, %v741, %v765
        %v770 = vmul.f32 %v754, %v754
        %v771 = vmul.f32 %v755, %v755
        %v772 = vmul.f32 %v756, %v756
        %v773 = vmul.f32 %v757, %v757
        %774 = vadd.xlane.f32.xlu0 %v770
        %v775 = vpop.xlane.xlu0 %774
        %776 = vadd.xlane.f32.xlu0 %v771
        %v777 = vpop.xlane.xlu0 %776
        %778 = vadd.xlane.f32.xlu0 %v772
        %v779 = vpop.xlane.xlu0 %778
        %780 = vadd.xlane.f32.xlu0 %v773
        %v781 = vpop.xlane.xlu0 %780
        %v782 = vadd.f32 %v775, 1e-12
        %v783 = vadd.f32 %v777, 1e-12
        %v784 = vadd.f32 %v779, 1e-12
        %v785 = vadd.f32 %v781, 1e-12
        %v786 = vrsqrt.pop %v782
        %v787 = vmul.f32 %v786, %v782
        %v788 = vmul.f32 %v787, %v786
        %v789 = vmul.f32 0.5, %v788
        %v790 = vsub.f32 1.5, %v789
        %v791 = vmul.f32 %v786, %v790
        %vm792 = vweird.f32 %v782
        %vm793 = vweird.f32 %v786
        %vm794 = vmor %vm792, %vm793
        %v795 = vsel %vm794, %v786, %v791
        %v796 = vrsqrt.pop %v783
        %v797 = vmul.f32 %v796, %v783
        %v798 = vmul.f32 %v797, %v796
        %v799 = vmul.f32 0.5, %v798
        %v800 = vsub.f32 1.5, %v799
        %v801 = vmul.f32 %v796, %v800
        %vm802 = vweird.f32 %v783
        %vm803 = vweird.f32 %v796
        %vm804 = vmor %vm802, %vm803
        %v805 = vsel %vm804, %v796, %v801
        %v806 = vrsqrt.pop %v784
        %v807 = vmul.f32 %v806, %v784
        %v808 = vmul.f32 %v807, %v806
        %v809 = vmul.f32 0.5, %v808
        %v810 = vsub.f32 1.5, %v809
        %v811 = vmul.f32 %v806, %v810
        %vm812 = vweird.f32 %v784
        %vm813 = vweird.f32 %v806
        %vm814 = vmor %vm812, %vm813
        %v815 = vsel %vm814, %v806, %v811
        %v816 = vrsqrt.pop %v785
        %v817 = vmul.f32 %v816, %v785
        %v818 = vmul.f32 %v817, %v816
        %v819 = vmul.f32 0.5, %v818
        %v820 = vsub.f32 1.5, %v819
        %v821 = vmul.f32 %v816, %v820
        %vm822 = vweird.f32 %v785
        %vm823 = vweird.f32 %v816
        %vm824 = vmor %vm822, %vm823
        %v825 = vsel %vm824, %v816, %v821
        %v826 = vmul.f32 %v754, %v795
        %v827 = vmul.f32 %v755, %v805
        %v828 = vmul.f32 %v756, %v815
        %v829 = vmul.f32 %v757, %v825
        %v830 = vmul.f32 %v766, %v766
        %v831 = vmul.f32 %v767, %v767
        %v832 = vmul.f32 %v768, %v768
        %v833 = vmul.f32 %v769, %v769
        %834 = vadd.xlane.f32.xlu0 %v830
        %v835 = vpop.xlane.xlu0 %834
        %836 = vadd.xlane.f32.xlu0 %v831
        %v837 = vpop.xlane.xlu0 %836
        %838 = vadd.xlane.f32.xlu0 %v832
        %v839 = vpop.xlane.xlu0 %838
        %840 = vadd.xlane.f32.xlu0 %v833
        %v841 = vpop.xlane.xlu0 %840
        %v842 = vadd.f32 %v835, 1e-12
        %v843 = vadd.f32 %v837, 1e-12
        %v844 = vadd.f32 %v839, 1e-12
        %v845 = vadd.f32 %v841, 1e-12
        %v846 = vrsqrt.pop %v842
        %v847 = vmul.f32 %v846, %v842
        %v848 = vmul.f32 %v847, %v846
        %v849 = vmul.f32 0.5, %v848
        %v850 = vsub.f32 1.5, %v849
        %v851 = vmul.f32 %v846, %v850
        %vm852 = vweird.f32 %v842
        %vm853 = vweird.f32 %v846
        %vm854 = vmor %vm852, %vm853
        %v855 = vsel %vm854, %v846, %v851
        %v856 = vrsqrt.pop %v843
        %v857 = vmul.f32 %v856, %v843
        %v858 = vmul.f32 %v857, %v856
        %v859 = vmul.f32 0.5, %v858
        %v860 = vsub.f32 1.5, %v859
        %v861 = vmul.f32 %v856, %v860
        %vm862 = vweird.f32 %v843
        %vm863 = vweird.f32 %v856
        %vm864 = vmor %vm862, %vm863
        %v865 = vsel %vm864, %v856, %v861
        %v866 = vrsqrt.pop %v844
        %v867 = vmul.f32 %v866, %v844
        %v868 = vmul.f32 %v867, %v866
        %v869 = vmul.f32 0.5, %v868
        %v870 = vsub.f32 1.5, %v869
        %v871 = vmul.f32 %v866, %v870
        %vm872 = vweird.f32 %v844
        %vm873 = vweird.f32 %v866
        %vm874 = vmor %vm872, %vm873
        %v875 = vsel %vm874, %v866, %v871
        %v876 = vrsqrt.pop %v845
        %v877 = vmul.f32 %v876, %v845
        %v878 = vmul.f32 %v877, %v876
        %v879 = vmul.f32 0.5, %v878
        %v880 = vsub.f32 1.5, %v879
        %v881 = vmul.f32 %v876, %v880
        %vm882 = vweird.f32 %v845
        %vm883 = vweird.f32 %v876
        %vm884 = vmor %vm882, %vm883
        %v885 = vsel %vm884, %v876, %v881
        %v886 = vmul.f32 %v766, %v855
        %v887 = vmul.f32 %v767, %v865
        %v888 = vmul.f32 %v768, %v875
        %v889 = vmul.f32 %v769, %v885
        %890 = vmatpush.xpose.msra.mxu0 0.0
        %891 = vmatpush.xpose.msra.mxu0 0.0
        %892 = vmatpush.xpose.msra.mxu0 0.0
        %893 = vmatpush.xpose.msra.mxu0 0.0
        %894 = vmatpush.xpose.msra.mxu0 0.0
        %895 = vmatpush.xpose.msra.mxu0 0.0
        %896 = vmatpush.xpose.msra.mxu0 0.0
        %897 = vmatpush.xpose.msra.mxu0 0.0
        %898 = vmatpush.xpose.msra.mxu0 0.0
        %899 = vmatpush.xpose.msra.mxu0 0.0
        %900 = vmatpush.xpose.msra.mxu0 0.0
        %901 = vmatpush.xpose.msra.mxu0 0.0
        %902 = vmatpush.xpose.msra.mxu0 %v889
        %903 = vmatpush.xpose.msra.mxu0 %v888
        %904 = vmatpush.xpose.msra.mxu0 %v887
        %905 = vmatpush.xpose.msra.mxu0 %v886
        %906 = vmatmul.f32.gmra.mxu0 %v826
        %v907 = vpop.f32.mrf.mxu0
        %v908 = vadd.f32 0.0, %v907
        %909 = vmatmul.f32.gmra.mxu0 %v827
        %v910 = vpop.f32.mrf.mxu0
        %v911 = vadd.f32 0.0, %v910
        %912 = vmatmul.f32.gmra.mxu0 %v828
        %v913 = vpop.f32.mrf.mxu0
        %v914 = vadd.f32 0.0, %v913
        %915 = vmatmul.f32.gmra.mxu0 %v829
        %v916 = vpop.f32.mrf.mxu0
        %v917 = vadd.f32 0.0, %v916
        %918 = vdwg.mxu0
        %vm919 = vcmp.ge.s32.totalorder %v438, 16
        %vm920 = vcmp.ge.s32.totalorder %v439, 16
        %vm921 = vcmp.ge.s32.totalorder %v440, 16
        %vm922 = vcmp.ge.s32.totalorder %v441, 16
        %s923 = sadd.s32 %s432, 16
        %v924 = vstv %s923
        %vm925 = vcmp.lt.s32.totalorder %v438, %v924
        %vm926 = vcmp.lt.s32.totalorder %v439, %v924
        %vm927 = vcmp.lt.s32.totalorder %v440, %v924
        %vm928 = vcmp.lt.s32.totalorder %v441, %v924
        %vm929 = vmand %vm919, %vm925
        %vm930 = vmand %vm920, %vm926
        %vm931 = vmand %vm921, %vm927
        %vm932 = vmand %vm922, %vm928
        %v933 = vsel %vm929, 1, 0
        %v934 = vsel %vm930, 1, 0
        %v935 = vsel %vm931, 1, 0
        %v936 = vsel %vm932, 1, 0
        %v937 = vcvt.s32.f32 %v933
        %v938 = vcvt.s32.f32 %v934
        %v939 = vcvt.s32.f32 %v935
        %v940 = vcvt.s32.f32 %v936
        %v941 = vmul.f32 %v826, %v886
        %v942 = vmul.f32 %v827, %v887
        %v943 = vmul.f32 %v828, %v888
        %v944 = vmul.f32 %v829, %v889
        %945 = vadd.xlane.f32.xlu0 %v941
        %v946 = vpop.xlane.xlu0 %945
        %947 = vadd.xlane.f32.xlu0 %v942
        %v948 = vpop.xlane.xlu0 %947
        %949 = vadd.xlane.f32.xlu0 %v943
        %v950 = vpop.xlane.xlu0 %949
        %951 = vadd.xlane.f32.xlu0 %v944
        %v952 = vpop.xlane.xlu0 %951
        %v953 = vmul.f32 %v946, 1.442695
        %v954 = vpow.pop %v953
        %v955 = vmul.f32 %v948, 1.442695
        %v956 = vpow.pop %v955
        %v957 = vmul.f32 %v950, 1.442695
        %v958 = vpow.pop %v957
        %v959 = vmul.f32 %v952, 1.442695
        %v960 = vpow.pop %v959
        %v961 = vmul.f32 %v937, %v954
        %v962 = vmul.f32 %v938, %v956
        %v963 = vmul.f32 %v939, %v958
        %v964 = vmul.f32 %v940, %v960
        %vm965 = vcmask 7168
        %v966 = vsel %vm965, %v961, 0.0
        %v967 = vsel %vm965, %v962, 0.0
        %v968 = vadd.f32 %v966, %v967
        %v969 = vsel %vm965, %v963, 0.0
        %v970 = vadd.f32 %v968, %v969
        %v971 = vsel %vm965, %v964, 0.0
        %v972 = vadd.f32 %v970, %v971
        %973 = vadd.xlane.f32.xlu0 %v972
        %v974 = vpop.xlane.xlu0 %973
        %v975 = vrot.slane %v974, 4
        %v976 = vadd.f32 %v974, %v975
        %v977 = vrot.slane %v976, 2
        %v978 = vadd.f32 %v976, %v977
        %v979 = vrot.slane %v978, 1
        %v980 = vadd.f32 %v978, %v979
        %s981 = vtos %v980
        %v982 = vmul.f32 %v937, %v946
        %v983 = vmul.f32 %v938, %v948
        %v984 = vmul.f32 %v939, %v950
        %v985 = vmul.f32 %v940, %v952
        %v986 = vsel %vm965, %v982, 0.0
        %v987 = vsel %vm965, %v983, 0.0
        %v988 = vadd.f32 %v986, %v987
        %v989 = vsel %vm965, %v984, 0.0
        %v990 = vadd.f32 %v988, %v989
        %v991 = vsel %vm965, %v985, 0.0
        %v992 = vadd.f32 %v990, %v991
        %993 = vadd.xlane.f32.xlu0 %v992
        %v994 = vpop.xlane.xlu0 %993
        %v995 = vrot.slane %v994, 4
        %v996 = vadd.f32 %v994, %v995
        %v997 = vrot.slane %v996, 2
        %v998 = vadd.f32 %v996, %v997
        %v999 = vrot.slane %v998, 1
        %v1000 = vadd.f32 %v998, %v999
        %s1001 = vtos %v1000
        %v1002 = vmul.f32 %v908, 1.442695
        %v1003 = vpow.pop %v1002
        %v1004 = vmul.f32 %v911, 1.442695
        %v1005 = vpow.pop %v1004
        %v1006 = vmul.f32 %v914, 1.442695
        %v1007 = vpow.pop %v1006
        %v1008 = vmul.f32 %v917, 1.442695
        %v1009 = vpow.pop %v1008
        %v1010 = vmul.f32 %v937, %v452
        %v1011 = vmul.f32 %v938, %v453
        %v1012 = vmul.f32 %v939, %v454
        %v1013 = vmul.f32 %v940, %v455
        %v1015 = vsel %vm523, %v456, 0
        %v1018 = vsel %vm523, %v457, 0
        %v1021 = vsel %vm523, %v458, 0
        %v1024 = vsel %vm523, %v459, 0
        %1026 = vmatpush.msra.mxu0 0.0
        %1027 = vmatpush.msra.mxu0 0.0
        %1028 = vmatpush.msra.mxu0 0.0
        %1029 = vmatpush.msra.mxu0 0.0
        %1030 = vmatpush.msra.mxu0 0.0
        %1031 = vmatpush.msra.mxu0 0.0
        %1032 = vmatpush.msra.mxu0 0.0
        %1033 = vmatpush.msra.mxu0 0.0
        %1034 = vmatpush.msra.mxu0 0.0
        %1035 = vmatpush.msra.mxu0 0.0
        %1036 = vmatpush.msra.mxu0 0.0
        %1037 = vmatpush.msra.mxu0 0.0
        %1038 = vmatpush.msra.mxu0 %v1009
        %1039 = vmatpush.msra.mxu0 %v1007
        %1040 = vmatpush.msra.mxu0 %v1005
        %1041 = vmatpush.msra.mxu0 %v1003
        %1042 = vmatmul.f32.gmra.mxu0 %v1015
        %v1043 = vpop.f32.mrf.mxu0
        %v1044 = vadd.f32 0.0, %v1043
        %1045 = vmatmul.f32.gmra.mxu0 %v1018
        %v1046 = vpop.f32.mrf.mxu0
        %v1047 = vadd.f32 0.0, %v1046
        %1048 = vmatmul.f32.gmra.mxu0 %v1021
        %v1049 = vpop.f32.mrf.mxu0
        %v1050 = vadd.f32 0.0, %v1049
        %1051 = vmatmul.f32.gmra.mxu0 %v1024
        %v1052 = vpop.f32.mrf.mxu0
        %v1053 = vadd.f32 0.0, %v1052
        %1054 = vdwg.mxu0
        %v1055 = vmul.f32 %v1010, %v1044
        %v1056 = vmul.f32 %v1011, %v1047
        %v1057 = vmul.f32 %v1012, %v1050
        %v1058 = vmul.f32 %v1013, %v1053
        %v1059 = vsel %vm523, %v1055, 0.0
        %v1060 = vsel %vm523, %v1056, 0.0
        %v1061 = vadd.f32 %v1059, %v1060
        %v1062 = vsel %vm523, %v1057, 0.0
        %v1063 = vadd.f32 %v1061, %v1062
        %v1064 = vsel %vm523, %v1058, 0.0
        %v1065 = vadd.f32 %v1063, %v1064
        %1066 = vadd.xlane.f32.xlu0 %v1065
        %v1067 = vpop.xlane.xlu0 %1066
        %v1068 = vrot.slane %v1067, 4
        %v1069 = vadd.f32 %v1067, %v1068
        %v1070 = vrot.slane %v1069, 2
        %v1071 = vadd.f32 %v1069, %v1070
        %v1072 = vrot.slane %v1071, 1
        %v1073 = vadd.f32 %v1071, %v1072
        %s1074 = vtos %v1073
        %v1075 = vmul.f32 %v937, %v468
        %v1076 = vmul.f32 %v938, %v469
        %v1077 = vmul.f32 %v939, %v470
        %v1078 = vmul.f32 %v940, %v471
        %v1079 = vmul.f32 %v1075, %v1003
        %v1080 = vmul.f32 %v1076, %v1005
        %v1081 = vmul.f32 %v1077, %v1007
        %v1082 = vmul.f32 %v1078, %v1009
        %v1083 = vsel %vm523, %v1079, 0.0
        %v1084 = vsel %vm523, %v1080, 0.0
        %v1085 = vadd.f32 %v1083, %v1084
        %v1086 = vsel %vm523, %v1081, 0.0
        %v1087 = vadd.f32 %v1085, %v1086
        %v1088 = vsel %vm523, %v1082, 0.0
        %v1089 = vadd.f32 %v1087, %v1088
        %1090 = vadd.xlane.f32.xlu0 %v1089
        %v1091 = vpop.xlane.xlu0 %1090
        %v1092 = vrot.slane %v1091, 4
        %v1093 = vadd.f32 %v1091, %v1092
        %v1094 = vrot.slane %v1093, 2
        %v1095 = vadd.f32 %v1093, %v1094
        %v1096 = vrot.slane %v1095, 1
        %v1097 = vadd.f32 %v1095, %v1096
        %s1098 = vtos %v1097
        %s1099 = sadd.f32 %s981, %s1074
        %s1100 = sadd.f32 %s1099, %s1098
        %s1101 = ssub.f32 %s1100, %s1001
        %v1102 = vstv %s1101
        %v1103 = vlog2.pop %v1102
        %v1104 = vmul.f32 %v1103, 0.6931472
        %s1105 = vtos %v1104
        %v1106 = vmul.f32 %v754, %v937
        %v1107 = vmul.f32 %v755, %v938
        %v1108 = vmul.f32 %v756, %v939
        %v1109 = vmul.f32 %v757, %v940
        %1110 = vst [vmem:[%s426] sm:$0xff] %v1106
        %1111 = vst [vmem:[%s426 + $0x8] sm:$0xff] %v1107
        %1112 = vst [vmem:[%s426 + $0x10] sm:$0xff] %v1108
        %1113 = vst [vmem:[%s426 + $0x18] sm:$0xff] %v1109
        %v1114 = vstv %s1105
        %v1115 = vadd.f32 %v1114, 0.0
        %1116 = vst [vmem:[%s430] sm:$0xff] %v1115
        %p1117 = scmp.lt.s32.totalorder %s34, 3
        %s1118 = scalar_select %p1117, %s34, 3
        %s1119 = smul.addr %s1118, 4
        %s1120 = smul.addr %s1119, 8
        %s1121 = scalar_lea.vmem %s7, %s1120
        %p1122 = scmp.lt.s32.totalorder %s34, 3
        %s1123 = scalar_select %p1122, %s34, 3
        %s1124 = smul.addr %s1123, 8
        %s1125 = scalar_lea.vmem %s8, %s1124
        // Predicated region
        $region53: #{my_model_forward.6} parent=43 // pred_check
          %p1126 = pneg %p208
        $region54: #{my_model_forward.6} parent=43 // pred_check_branch
          %1128 = sbr.rel (%p1126) target = $region56
        $region55: #{my_model_forward.6} parent=43 // pred_region
          _
        $region56: #{my_model_forward.6} parent=43 // pred_fallthru
          _
        // Predicated region
        $region57: #{my_model_forward.6} parent=43 // pred_check
          %p1129 = pneg %p234
        $region58: #{my_model_forward.6} parent=43 // pred_check_branch
          %1131 = sbr.rel (%p1129) target = $region60
        $region59: #{my_model_forward.6} parent=43 // pred_region
          _
        $region60: #{my_model_forward.6} parent=43 // pred_fallthru
          _
      $region44: #{my_model_forward.6} parent=5 // pred_fallthru
        _
      %p1132 = scmp.le.s32.totalorder 2, %s29
      // Predicated region
      $region61: #{my_model_forward.6} parent=5 // pred_check
        %p1133 = pneg %p1132
      $region62: #{my_model_forward.6} parent=5 // pred_check_branch
        %1135 = sbr.rel (%p1133) target = $region64
      $region63: #{my_model_forward.6} parent=5 // pred_region
        %s1136 = ssub.s32 %s29, 2
        // Predicated region
        $region65: #{my_model_forward.6} parent=63 // pred_check
          %p1137 = pneg %p214
        $region66: #{my_model_forward.6} parent=63 // pred_check_branch
          %1139 = sbr.rel (%p1137) target = $region68
        $region67: #{my_model_forward.6} parent=63 // pred_region
          %p1140 = scmp.lt.s32.totalorder %s35, 3
          %s1141 = scalar_select %p1140, %s35, 3
          %s1142 = smul.addr %s1141, 4
          %s1143 = smul.addr %s1142, 8
          %s1144 = scalar_lea.vmem %s7, %s1143
        $region68: #{my_model_forward.6} parent=63 // pred_fallthru
          _
        // Predicated region
        $region69: #{my_model_forward.6} parent=63 // pred_check
          %p1145 = pneg %p240
        $region70: #{my_model_forward.6} parent=63 // pred_check_branch
          %1147 = sbr.rel (%p1145) target = $region72
        $region71: #{my_model_forward.6} parent=63 // pred_region
          %p1148 = scmp.lt.s32.totalorder %s35, 3
          %s1149 = scalar_select %p1148, %s35, 3
          %s1150 = smul.addr %s1149, 8
          %s1151 = scalar_lea.vmem %s8, %s1150
        $region72: #{my_model_forward.6} parent=63 // pred_fallthru
          _
      $region64: #{my_model_forward.6} parent=5 // pred_fallthru
        _
    $region6: #{my_model_forward.6} parent=1 // loop_footer
      %s33 = sadd.s32 1, %s29
    $region7: #{my_model_forward.6} parent=1 // loop_footer_branch
      %28 = sbr.rel target = $region3
    $region8: #{my_model_forward.6} parent=1 // loop_exit
      _
    %1152 = vsyncpa [#allocation5], 1
    %s1153 = scalar_lea.sflag [#allocation5], 1
    %1154 = vsyncpa %s1153, 1
    %1155 = vsyncpa [#allocation7], 1
    %s1156 = scalar_lea.sflag [#allocation7], 1
    %1157 = vsyncpa %s1156, 1

// kernel: my_model_forward.7
$region0: #{my_model_forward.7}
  #allocation0 [shape = 'u32[]', space=smem, size = 0x4, offset = 0x4, fixed_abs, tag = 'smem constant byte address 0x4 - core index']
  #allocation1 [shape = 'u32[72,128]{1,0:T(1,128)}', space=vmem, size = 0x9000, scoped, tag = 'internal scratch']
  #allocation2 [shape = 's32[1,1]{1,0:T(1,128)S(6)}', space=smem, size = 0x200, scoped, tag = 'scoped memory for my_model_forward.7']
  %s0 = inlined_call_operand.vmem [shape: f32[32,128], index: 0, kind: input, shape index: {}]
  %s1 = inlined_call_operand.vmem [shape: f32[128,128], index: 1, kind: input, shape index: {}]
  %s2 = inlined_call_operand.vmem [shape: f32[1,128], index: 2, kind: input, shape index: {}]
  %s3 = inlined_call_operand.vmem [shape: f32[1,128], index: 3, kind: input, shape index: {}]
  %s4 = inlined_call_operand.hbm [shape: f32[128,128], index: 4, kind: input, shape index: {}]
  %s5 = inlined_call_operand.vmem [shape: f32[1,128], index: 5, kind: input, shape index: {}]
  %s6 = inlined_call_operand.<no memory space> [shape: s32[1,1], index: 6, kind: input, shape index: {}]
  %s7 = inlined_call_operand.vmem [shape: f32[16,128], index: 7, kind: output, shape index: {}]
  %s8 = sld [smem:[#allocation0]]
  $region42: #{my_model_forward.7} parent=0
    _
  %s10 = ssub.s32 1, %s8
  %s11 = scalar_select 0, %s10, %s8
  %12 = sst [smem:[#allocation2]] %s6
  $region1: #{my_model_forward.7} parent=0
    #allocation3 [shape = 'u8[65536]{0}', space=vmem, size = 0x10000, scoped, tag = 'input window, operand 4, single buffered']
    #allocation4 [shape = 's32[1]{0}', space=sflag, size = 0x4, scoped, tag = 'scoped memory for my_model_forward.7']
    %13 = vsyncpa [#allocation4], 0
    // Predicated region
    $region2: #{my_model_forward.7} parent=1 // pred_check
      _
    $region3: #{my_model_forward.7} parent=1 // pred_check_branch
      %15 = sbr.rel (0) target = $region5
    $region4: #{my_model_forward.7} parent=1 // pred_region
      _
    $region5: #{my_model_forward.7} parent=1 // pred_fallthru
      _
    // Predicated region
    $region6: #{my_model_forward.7} parent=1 // pred_check
      _
    $region7: #{my_model_forward.7} parent=1 // pred_check_branch
      %17 = sbr.rel (0) target = $region9
    $region8: #{my_model_forward.7} parent=1 // pred_region
      _
    $region9: #{my_model_forward.7} parent=1 // pred_fallthru
      _
    // Predicated region
    $region10: #{my_model_forward.7} parent=1 // pred_check
      _
    $region11: #{my_model_forward.7} parent=1 // pred_check_branch
      %19 = sbr.rel (0) target = $region13
    $region12: #{my_model_forward.7} parent=1 // pred_region
      _
    $region13: #{my_model_forward.7} parent=1 // pred_fallthru
      _
    // Predicated region
    $region14: #{my_model_forward.7} parent=1 // pred_check
      _
    $region15: #{my_model_forward.7} parent=1 // pred_check_branch
      %21 = sbr.rel (0) target = $region17
    $region16: #{my_model_forward.7} parent=1 // pred_region
      _
    $region17: #{my_model_forward.7} parent=1 // pred_fallthru
      _
    // Predicated region
    $region18: #{my_model_forward.7} parent=1 // pred_check
      _
    $region19: #{my_model_forward.7} parent=1 // pred_check_branch
      %23 = sbr.rel (0) target = $region21
    $region20: #{my_model_forward.7} parent=1 // pred_region
      %25 = vsyncadd [#allocation4], 0
      %s26 = sshll.u32 %s4, 4
      %s27 = int_to_ptr.hbm [resolvable:$true] %s26
      %s28 = sshll.u32 [#allocation3], 4
      %s29 = int_to_ptr.vmem [resolvable:$true] %s28
      %34 = dma.hbm_to_vmem [thread:$0]  %s27, 2048, %s29, [#allocation4], 128, 128, 8
    $region21: #{my_model_forward.7} parent=1 // pred_fallthru
      _
    // Predicated region
    $region22: #{my_model_forward.7} parent=1 // pred_check
      _
    $region23: #{my_model_forward.7} parent=1 // pred_check_branch
      %36 = sbr.rel (0) target = $region25
    $region24: #{my_model_forward.7} parent=1 // pred_region
      _
    $region25: #{my_model_forward.7} parent=1 // pred_fallthru
      _
    // Predicated region
    $region26: #{my_model_forward.7} parent=1 // pred_check
      _
    $region27: #{my_model_forward.7} parent=1 // pred_check_branch
      %38 = sbr.rel (0) target = $region29
    $region28: #{my_model_forward.7} parent=1 // pred_region
      _
    $region29: #{my_model_forward.7} parent=1 // pred_fallthru
      _
    // Predicated region
    $region30: #{my_model_forward.7} parent=1 // pred_check
      _
    $region31: #{my_model_forward.7} parent=1 // pred_check_branch
      %40 = sbr.rel (0) target = $region33
    $region32: #{my_model_forward.7} parent=1 // pred_region
      %42 = dma.done [#allocation4], 2048
    $region33: #{my_model_forward.7} parent=1 // pred_fallthru
      _
    %v43 = vld [vmem:[%s0] sm:$0xff]
    %v44 = vld [vmem:[%s0 + $0x8] sm:$0xff]
    %v45 = vld [vmem:[%s0 + $0x10] sm:$0xff]
    %v46 = vld [vmem:[%s0 + $0x18] sm:$0xff]
    %v47 = vld [vmem:[%s1] sm:$0xff]
    %v48 = vld [vmem:[%s1 + $0x8] sm:$0xff]
    %v49 = vld [vmem:[%s1 + $0x10] sm:$0xff]
    %v50 = vld [vmem:[%s1 + $0x18] sm:$0xff]
    %v51 = vld [vmem:[%s1 + $0x20] sm:$0xff]
    %v52 = vld [vmem:[%s1 + $0x28] sm:$0xff]
    %v53 = vld [vmem:[%s1 + $0x30] sm:$0xff]
    %v54 = vld [vmem:[%s1 + $0x38] sm:$0xff]
    %v55 = vld [vmem:[%s1 + $0x40] sm:$0xff]
    %v56 = vld [vmem:[%s1 + $0x48] sm:$0xff]
    %v57 = vld [vmem:[%s1 + $0x50] sm:$0xff]
    %v58 = vld [vmem:[%s1 + $0x58] sm:$0xff]
    %v59 = vld [vmem:[%s1 + $0x60] sm:$0xff]
    %v60 = vld [vmem:[%s1 + $0x68] sm:$0xff]
    %v61 = vld [vmem:[%s1 + $0x70] sm:$0xff]
    %v62 = vld [vmem:[%s1 + $0x78] sm:$0xff]
    %v63 = vld [vmem:[%s2] sm:$0x1]
    %v65 = vperm.slane %v63, 0
    %67 = vmatpush.msra.mxu0 %v62
    %68 = vmatpush.msra.mxu0 %v61
    %69 = vmatpush.msra.mxu0 %v60
    %70 = vmatpush.msra.mxu0 %v59
    %71 = vmatpush.msra.mxu0 %v58
    %72 = vmatpush.msra.mxu0 %v57
    %73 = vmatpush.msra.mxu0 %v56
    %74 = vmatpush.msra.mxu0 %v55
    %75 = vmatpush.msra.mxu0 %v54
    %76 = vmatpush.msra.mxu0 %v53
    %77 = vmatpush.msra.mxu0 %v52
    %78 = vmatpush.msra.mxu0 %v51
    %79 = vmatpush.msra.mxu0 %v50
    %80 = vmatpush.msra.mxu0 %v49
    %81 = vmatpush.msra.mxu0 %v48
    %82 = vmatpush.msra.mxu0 %v47
    %83 = vmatmul.f32.gmra.mxu0 %v43
    %v84 = vpop.f32.mrf.mxu0
    %v85 = vadd.f32 %v65, %v84
    %86 = vmatmul.f32.gmra.mxu0 %v44
    %v87 = vpop.f32.mrf.mxu0
    %v88 = vadd.f32 %v65, %v87
    %89 = vmatmul.f32.gmra.mxu0 %v45
    %v90 = vpop.f32.mrf.mxu0
    %v91 = vadd.f32 %v65, %v90
    %92 = vmatmul.f32.gmra.mxu0 %v46
    %v93 = vpop.f32.mrf.mxu0
    %v94 = vadd.f32 %v65, %v93
    %95 = vdwg.mxu0
    %v96 = vtanh.pop %v85
    %v97 = vtanh.pop %v88
    %v98 = vtanh.pop %v91
    %v99 = vtanh.pop %v94
    %s100 = sld [smem:[#allocation2]]
    %v101 = vlaneseq
    %v102 = vshrl.u32 %v101, 7
    %v103 = vadd.s32 %v102, 8
    %v104 = vstv %s100
    %vm105 = vcmp.lt.s32.totalorder %v102, %v104
    %vm106 = vcmp.lt.s32.totalorder %v103, %v104
    %v107 = vsel %vm105, 1, 0
    %v108 = vsel %vm106, 1, 0
    %v109 = vcvt.s32.f32 %v107
    %v110 = vcvt.s32.f32 %v108
    %s111 = scvt.s32.f32 %s100
    %v112 = vstv %s111
    %v113 = vrcp.pop %v112
    %v114 = vmul.f32 %v112, %v113
    %v115 = vsub.f32 1.0, %v114
    %v116 = vmul.f32 %v113, %v115
    %v117 = vadd.f32 %v113, %v116
    %vm118 = vweird.f32 %v112
    %vm119 = vweird.f32 %v113
    %vm120 = vmor %vm118, %vm119
    %v121 = vsel %vm120, %v113, %v117
    %v122 = vand.u32 2147483647, %v112
    %vm123 = vcmp.eq.f32.partialorder %v122, 8.507059e+37
    %v124 = vand.u32 %v112, 2147483648
    %v125 = vor.u32 1.1754944e-38, %v124
    %v126 = vsel %vm123, %v125, %v121
    %s127 = vtos %v126
    %v128 = vmul.f32 %v96, %v109
    %v129 = vmul.f32 %v97, %v110
    %v130 = vadd.f32 %v128, %v129
    %v131 = vrot.slane %v130, 4
    %v132 = vadd.f32 %v130, %v131
    %v133 = vrot.slane %v132, 2
    %v134 = vadd.f32 %v132, %v133
    %v135 = vrot.slane %v134, 1
    %v136 = vadd.f32 %v134, %v135
    %v137 = vstv %s127
    %v138 = vmul.f32 %v136, %v137
    %v139 = vld [vmem:[%s3] sm:$0x1]
    %v140 = vmul.f32 %v138, %v139
    %vm141 = vcmask 1040384
    %v142 = vsel %vm141, %v140, 0.0
    %143 = vadd.xlane.f32.xlu0 %v142
    %v144 = vpop.xlane.xlu0 %143
    %v145 = vmul.f32 %v98, %v109
    %v146 = vmul.f32 %v99, %v110
    %v147 = vadd.f32 %v145, %v146
    %v148 = vrot.slane %v147, 4
    %v149 = vadd.f32 %v147, %v148
    %v150 = vrot.slane %v149, 2
    %v151 = vadd.f32 %v149, %v150
    %v152 = vrot.slane %v151, 1
    %v153 = vadd.f32 %v151, %v152
    %v154 = vmul.f32 %v153, %v137
    %v155 = vmul.f32 %v154, %v139
    %v156 = vsel %vm141, %v155, 0.0
    %157 = vadd.xlane.f32.xlu0 %v156
    %v158 = vpop.xlane.xlu0 %157
    %v160 = vrot.slane %v158, 7
    %v162 = vsel %vm141, %v144, %v160
    %vm163 = vcmask 1024
    %v164 = vsel %vm163, %v162, -inf
    %v165 = vrot.slane %v164, 4
    %v166 = vmax.f32 %v164, %v165
    %v167 = vrot.slane %v166, 2
    %v168 = vmax.f32 %v166, %v167
    %v169 = vrot.slane %v168, 1
    %v170 = vmax.f32 %v168, %v169
    %v171 = vsub.f32 %v162, %v170
    %v172 = vmul.f32 %v171, 1.442695
    %v173 = vpow.pop %v172
    %v174 = vsel %vm163, %v173, 0.0
    %v175 = vrot.slane %v174, 4
    %v176 = vadd.f32 %v174, %v175
    %v177 = vrot.slane %v176, 2
    %v178 = vadd.f32 %v176, %v177
    %v179 = vrot.slane %v178, 1
    %v180 = vadd.f32 %v178, %v179
    %v181 = vrcp.pop %v180
    %v182 = vmul.f32 %v180, %v181
    %v183 = vsub.f32 1.0, %v182
    %v184 = vmul.f32 %v181, %v183
    %v185 = vadd.f32 %v181, %v184
    %vm186 = vweird.f32 %v180
    %vm187 = vweird.f32 %v181
    %vm188 = vmor %vm186, %vm187
    %v189 = vsel %vm188, %v181, %v185
    %v190 = vand.u32 2147483647, %v180
    %vm191 = vcmp.eq.f32.partialorder %v190, 8.507059e+37
    %v192 = vand.u32 %v180, 2147483648
    %v193 = vor.u32 1.1754944e-38, %v192
    %v194 = vsel %vm191, %v193, %v189
    %v195 = vmul.f32 %v173, %v194
    %s197 = vtos %v195
    %v198 = vstv %s197
    %v200 = vmul.f32 %v198, %v43
    %v201 = vmul.f32 %v198, %v44
    %v202 = vadd.f32 %v200, 0.0
    %v203 = vadd.f32 %v201, 0.0
    %v204 = vrot.slane %v195, 1
    %s205 = vtos %v204
    %v206 = vstv %s205
    %v208 = vmul.f32 %v206, %v45
    %v209 = vmul.f32 %v206, %v46
    %v210 = vadd.f32 %v202, %v208
    %v211 = vadd.f32 %v203, %v209
    %v212 = vld [vmem:[#allocation3] sm:$0xff]
    %v213 = vld [vmem:[#allocation3 + $0x8] sm:$0xff]
    %v214 = vld [vmem:[#allocation3 + $0x10] sm:$0xff]
    %v215 = vld [vmem:[#allocation3 + $0x18] sm:$0xff]
    %v216 = vld [vmem:[#allocation3 + $0x20] sm:$0xff]
    %v217 = vld [vmem:[#allocation3 + $0x28] sm:$0xff]
    %v218 = vld [vmem:[#allocation3 + $0x30] sm:$0xff]
    %v219 = vld [vmem:[#allocation3 + $0x38] sm:$0xff]
    %v220 = vld [vmem:[#allocation3 + $0x40] sm:$0xff]
    %v221 = vld [vmem:[#allocation3 + $0x48] sm:$0xff]
    %v222 = vld [vmem:[#allocation3 + $0x50] sm:$0xff]
    %v223 = vld [vmem:[#allocation3 + $0x58] sm:$0xff]
    %v224 = vld [vmem:[#allocation3 + $0x60] sm:$0xff]
    %v225 = vld [vmem:[#allocation3 + $0x68] sm:$0xff]
    %v226 = vld [vmem:[#allocation3 + $0x70] sm:$0xff]
    %v227 = vld [vmem:[#allocation3 + $0x78] sm:$0xff]
    %v228 = vld [vmem:[%s5] sm:$0x1]
    %v230 = vperm.slane %v228, 0
    %232 = vmatpush.msra.mxu0 %v227
    %233 = vmatpush.msra.mxu0 %v226
    %234 = vmatpush.msra.mxu0 %v225
    %235 = vmatpush.msra.mxu0 %v224
    %236 = vmatpush.msra.mxu0 %v223
    %237 = vmatpush.msra.mxu0 %v222
    %238 = vmatpush.msra.mxu0 %v221
    %239 = vmatpush.msra.mxu0 %v220
    %240 = vmatpush.msra.mxu0 %v219
    %241 = vmatpush.msra.mxu0 %v218
    %242 = vmatpush.msra.mxu0 %v217
    %243 = vmatpush.msra.mxu0 %v216
    %244 = vmatpush.msra.mxu0 %v215
    %245 = vmatpush.msra.mxu0 %v214
    %246 = vmatpush.msra.mxu0 %v213
    %247 = vmatpush.msra.mxu0 %v212
    %248 = vmatmul.f32.gmra.mxu0 %v210
    %v249 = vpop.f32.mrf.mxu0
    %v250 = vadd.f32 %v230, %v249
    %251 = vmatmul.f32.gmra.mxu0 %v211
    %v252 = vpop.f32.mrf.mxu0
    %v253 = vadd.f32 %v230, %v252
    %254 = vdwg.mxu0
    %255 = vst [vmem:[%s7] sm:$0xff] %v250
    %256 = vst [vmem:[%s7 + $0x8] sm:$0xff] %v253
    // Predicated region
    $region34: #{my_model_forward.7} parent=1 // pred_check
      _
    $region35: #{my_model_forward.7} parent=1 // pred_check_branch
      %258 = sbr.rel (0) target = $region37
    $region36: #{my_model_forward.7} parent=1 // pred_region
      _
    $region37: #{my_model_forward.7} parent=1 // pred_fallthru
      _
    // Predicated region
    $region38: #{my_model_forward.7} parent=1 // pred_check
      _
    $region39: #{my_model_forward.7} parent=1 // pred_check_branch
      %260 = sbr.rel (0) target = $region41
    $region40: #{my_model_forward.7} parent=1 // pred_region
      _
    $region41: #{my_model_forward.7} parent=1 // pred_fallthru
      _
    %261 = vsyncpa [#allocation4], 1

</llo_original>
